<compile_context>
chip_gen: v7x
topology: tpu7x:2x2x1
jax: 0.10.0
libtpu: 0.0.40
codegen_flags: <defaults>
</compile_context>

<pallas_src>
import math

import jax
import jax.numpy as jnp
import numpy as np
from jax.experimental import pallas as pl
from jax.experimental.pallas import tpu as pltpu


# ------------------------------ Pallas kernel ------------------------------ #

def _condition_fused_kernel(p1_ref, w1_ref, b1_ref,
                            s2_ref, w2_ref, b2_ref,
                            s3_ref, w3_ref, b3_ref,
                            o_ref):
    """Whole Condition.forward for ONE batch element.

    p1_ref : (1, P1, K1)   im2col patches of the zero-padded input (conv1)
    w1_ref : (K1, C)       flattened conv1 weight (K1 zero-padded to 128-mult)
    s*_ref : (9, Pout, Pin) 0/1 tap-selection matrices (gather + zero-pad)
    w*_ref : (9, C, C)     per-tap conv weights, layout (tap, c_in, c_out)
    b*_ref : (1, C)        biases (float32)
    o_ref  : (1, 1, C)     mean over spatial of relu(conv3)
    """
    f32 = jnp.float32

    # ---- conv1: im2col GEMM + bias + ReLU (f32 accumulation on MXU) ----
    h = jnp.dot(p1_ref[0], w1_ref[...], preferred_element_type=f32)
    h = jnp.maximum(h + b1_ref[...], 0.0)                         # (P1, C) f32

    # ---- conv2 / conv3: per-tap gather-matmul + per-tap weight matmul ----
    for s_ref, w_ref, b_ref in ((s2_ref, w2_ref, b2_ref),
                                (s3_ref, w3_ref, b3_ref)):
        n_taps, p_out, _ = s_ref.shape
        c_out = w_ref.shape[2]
        hc = h.astype(s_ref.dtype)                  # MXU input dtype (f32/bf16)
        acc = jnp.zeros((p_out, c_out), f32)
        for t in range(n_taps):                     # static 9-tap unrolled loop
            rows = jnp.dot(s_ref[t], hc, preferred_element_type=f32)
            acc = acc + jnp.dot(rows.astype(hc.dtype), w_ref[t],
                                preferred_element_type=f32)
        h = jnp.maximum(acc + b_ref[...], 0.0)                    # (Pout, C)

    # ---- global spatial mean; 1/P folded into the reduction epilogue ----
    o_ref[0] = jnp.sum(h, axis=0, keepdims=True) * (1.0 / h.shape[0])


# -------------------------------- JAX glue --------------------------------- #

def _im2col(x_nhwc, k, stride):
    """Conv patches: (N, Ho*Wo, k*k*C). Tap order: (kh, kw) outer, C inner."""
    n, h, w, c = x_nhwc.shape
    ho = (h - k) // stride + 1
    wo = (w - k) // stride + 1
    taps = []
    for kh in range(k):
        for kw in range(k):
            taps.append(
                x_nhwc[:, kh:kh + stride * ho:stride, kw:kw + stride * wo:stride, :])
    patches = jnp.stack(taps, axis=3)                  # (N, Ho, Wo, k*k, C)
    return patches.reshape(n, ho * wo, k * k * c), ho, wo


def _flatten_weight(w_oihw):
    """(C_out, C_in, kh, kw) -> (kh*kw*C_in, C_out); matches _im2col order."""
    co, ci, kh, kw = w_oihw.shape
    return jnp.transpose(w_oihw, (2, 3, 1, 0)).reshape(kh * kw * ci, co)


def _per_tap_weight(w_oihw):
    """(C_out, C_in, k, k) -> (k*k, C_in, C_out); tap index t = kh*k + kw."""
    co, ci, kh, kw = w_oihw.shape
    return jnp.transpose(w_oihw, (2, 3, 1, 0)).reshape(kh * kw, ci, co)


def _tap_select(hin, win, k, stride, pad):
    """0/1 matrices S[t, p, q]: output position p gathers padded-input tap t
    from flattened input position q; all-zero rows implement ZeroPad2d zeros."""
    ho = (hin + 2 * pad - k) // stride + 1
    wo = (win + 2 * pad - k) // stride + 1
    s = np.zeros((k * k, ho * wo, hin * win), np.float32)
    for kh in range(k):
        for kw in range(k):
            t = kh * k + kw
            for i in range(ho):
                r = stride * i + kh - pad
                if not (0 <= r < hin):
                    continue
                for j in range(wo):
                    c = stride * j + kw - pad
                    if 0 <= c < win:
                        s[t, i * wo + j, r * win + c] = 1.0
    return jnp.asarray(s), ho, wo


def condition_forward(x_nchw, params, compute_dtype=jnp.float32):
    """Fused Pallas implementation of Condition.forward.

    Input NCHW -> output (N, nf). `compute_dtype` sets the MXU input dtype
    (jnp.bfloat16 recommended on v6e/v7x); accumulation stays float32.
    """
    x = jnp.transpose(x_nchw, (0, 2, 3, 1)).astype(jnp.float32)   # NCHW -> NHWC
    n = x.shape[0]
    nf = params["w1"].shape[0]

    # conv1: host-side im2col (only `in_nc` channels; layout op fused by XLA
    # with the transpose). Pad the contraction dim to a multiple of 128.
    x_pad = jnp.pad(x, ((0, 0), (1, 1), (1, 1), (0, 0)))          # nn.ZeroPad2d(1)
    patches, ho1, wo1 = _im2col(x_pad, 7, 2)
    k1 = patches.shape[2]
    k1p = ((k1 + 127) // 128) * 128
    patches = jnp.pad(patches, ((0, 0), (0, 0), (0, k1p - k1))).astype(compute_dtype)
    w1_flat = jnp.pad(_flatten_weight(params["w1"]),
                      ((0, k1p - k1), (0, 0))).astype(compute_dtype)

    # conv2 / conv3: exact 0/1 tap-selection matrices built at trace time.
    s2, ho2, wo2 = _tap_select(ho1, wo1, 3, 2, 1)
    s3, ho3, wo3 = _tap_select(ho2, wo2, 3, 2, 1)
    s2 = s2.astype(compute_dtype)
    s3 = s3.astype(compute_dtype)
    w2_taps = _per_tap_weight(params["w2"]).astype(compute_dtype)
    w3_taps = _per_tap_weight(params["w3"]).astype(compute_dtype)

    b1 = params["b1"].reshape(1, nf).astype(jnp.float32)
    b2 = params["b2"].reshape(1, nf).astype(jnp.float32)
    b3 = params["b3"].reshape(1, nf).astype(jnp.float32)

    p1, p2, p3 = ho1 * wo1, ho2 * wo2, ho3 * wo3

    out = pl.pallas_call(
        _condition_fused_kernel,
        out_shape=jax.ShapeDtypeStruct((n, 1, nf), jnp.float32),
        grid=(n,),
        in_specs=[
            pl.BlockSpec((1, p1, k1p), lambda i: (i, 0, 0)),   # per-image patches
            pl.BlockSpec((k1p, nf), lambda i: (0, 0)),         # resident weights:
            pl.BlockSpec((1, nf), lambda i: (0, 0)),           #  constant index
            pl.BlockSpec((9, p2, p1), lambda i: (0, 0, 0)),    #  maps -> DMA'd
            pl.BlockSpec((9, nf, nf), lambda i: (0, 0, 0)),    #  once, reused
            pl.BlockSpec((1, nf), lambda i: (0, 0)),
            pl.BlockSpec((9, p3, p2), lambda i: (0, 0, 0)),
            pl.BlockSpec((9, nf, nf), lambda i: (0, 0, 0)),
            pl.BlockSpec((1, nf), lambda i: (0, 0)),
        ],
        out_specs=pl.BlockSpec((1, 1, nf), lambda i: (i, 0, 0)),
        compiler_params=pltpu.CompilerParams(
            dimension_semantics=("parallel",)),   # shards batch across v7x's 2 TCs
    )(patches, w1_flat, b1, s2, w2_taps, b2, s3, w3_taps, b3)
    return out.reshape(n, nf)


# --------------------------- params & reference ----------------------------- #

def init_params(key, in_nc=3, nf=32):
    """Deterministic Conv2d-style (kaiming-uniform-like) init."""
    ks = jax.random.split(key, 6)

    def conv_init(kw_key, kb_key, cout, cin, k):
        fan_in = cin * k * k
        bound = 1.0 / math.sqrt(fan_in)
        w = jax.random.uniform(kw_key, (cout, cin, k, k), jnp.float32, -bound, bound)
        b = jax.random.uniform(kb_key, (cout,), jnp.float32, -bound, bound)
        return w, b

    w1, b1 = conv_init(ks[0], ks[1], nf, in_nc, 7)
    w2, b2 = conv_init(ks[2], ks[3], nf, nf, 3)
    w3, b3 = conv_init(ks[4], ks[5], nf, nf, 3)
    return dict(w1=w1, b1=b1, w2=w2, b2=b2, w3=w3, b3=b3)


def condition_forward_ref(x_nchw, params, compute_dtype=jnp.float32):
    """Plain-JAX reference matching PyTorch semantics (f32 accumulation)."""
    def conv(x, w, b, stride):
        x = jnp.pad(x, ((0, 0), (0, 0), (1, 1), (1, 1)))
        y = jax.lax.conv_general_dilated(
            x.astype(compute_dtype), w.astype(compute_dtype),
            window_strides=(stride, stride), padding="VALID",
            dimension_numbers=("NCHW", "OIHW", "NCHW"),
            preferred_element_type=jnp.float32)
        return jnp.maximum(y + b[None, :, None, None], 0.0)

    h = conv(x_nchw.astype(jnp.float32), params["w1"], params["b1"], 2)
    h = conv(h, params["w2"], params["b2"], 2)
    h = conv(h, params["w3"], params["b3"], 2)
    return jnp.mean(h, axis=(2, 3))


# ----------------------------------- main ----------------------------------- #

if __name__ == "__main__":
    key = jax.random.PRNGKey(0)
    k_x, k_p = jax.random.split(key)

    in_nc, nf = 3, 32
    x = jax.random.normal(k_x, (2, in_nc, 32, 32), jnp.float32)   # NCHW like PyTorch
    params = init_params(k_p, in_nc=in_nc, nf=nf)

    fwd_f32 = jax.jit(lambda a, p: condition_forward(a, p, jnp.float32))
    fwd_bf16 = jax.jit(lambda a, p: condition_forward(a, p, jnp.bfloat16))

    # Strict check: f32 MXU inputs vs. f32 reference.
    out_f32 = jax.block_until_ready(fwd_f32(x, params))
    ref_f32 = jax.block_until_ready(condition_forward_ref(x, params, jnp.float32))
    np.testing.assert_allclose(np.asarray(out_f32), np.asarray(ref_f32),
                               rtol=1e-4, atol=1e-5)
    assert out_f32.shape == (2, nf)

    # bf16-MXU path (v6e/v7x) vs. a bf16-input / f32-accumulation reference.
    out_bf16 = jax.block_until_ready(fwd_bf16(x, params))
    ref_bf16 = jax.block_until_ready(condition_forward_ref(x, params, jnp.bfloat16))
    np.testing.assert_allclose(np.asarray(out_bf16), np.asarray(ref_bf16),
                               rtol=1e-2, atol=1e-3)

    print("KERNEL_OK")
</pallas_src>

<mosaic_0001>
module attributes {stable_mosaic.version = 11 : i64} {
  func.func @_condition_fused_kernel(%arg0: i32, %arg1: memref<1x196x256xf32, #tpu.memory_space<vmem>>, %arg2: memref<256x32xf32, #tpu.memory_space<vmem>>, %arg3: memref<1x32xf32, #tpu.memory_space<vmem>>, %arg4: memref<9x49x196xf32, #tpu.memory_space<vmem>>, %arg5: memref<9x32x32xf32, #tpu.memory_space<vmem>>, %arg6: memref<1x32xf32, #tpu.memory_space<vmem>>, %arg7: memref<9x16x49xf32, #tpu.memory_space<vmem>>, %arg8: memref<9x32x32xf32, #tpu.memory_space<vmem>>, %arg9: memref<1x32xf32, #tpu.memory_space<vmem>>, %arg10: memref<1x1x32xf32, #tpu.memory_space<vmem>>) attributes {dimension_semantics = [#tpu.dimension_semantics<parallel>], iteration_bounds = array<i64: 2>, scalar_prefetch = 0 : i64, scratch_operands = 0 : i64, tpu.core_type = #tpu.core_type<tc>, window_params = [{transform_indices = @transform_0, window_bounds = array<i64: 1, 196, 256>}, {pipeline_mode = #tpu.pipeline_mode<synchronous>, transform_indices = @transform_1, window_bounds = array<i64: 256, 32>}, {pipeline_mode = #tpu.pipeline_mode<synchronous>, transform_indices = @transform_2, window_bounds = array<i64: 1, 32>}, {pipeline_mode = #tpu.pipeline_mode<synchronous>, transform_indices = @transform_3, window_bounds = array<i64: 9, 49, 196>}, {pipeline_mode = #tpu.pipeline_mode<synchronous>, transform_indices = @transform_4, window_bounds = array<i64: 9, 32, 32>}, {pipeline_mode = #tpu.pipeline_mode<synchronous>, transform_indices = @transform_5, window_bounds = array<i64: 1, 32>}, {pipeline_mode = #tpu.pipeline_mode<synchronous>, transform_indices = @transform_6, window_bounds = array<i64: 9, 16, 49>}, {pipeline_mode = #tpu.pipeline_mode<synchronous>, transform_indices = @transform_7, window_bounds = array<i64: 9, 32, 32>}, {pipeline_mode = #tpu.pipeline_mode<synchronous>, transform_indices = @transform_8, window_bounds = array<i64: 1, 32>}, {transform_indices = @transform_9, window_bounds = array<i64: 1, 1, 32>}]} {
    %c0 = arith.constant 0 : index
    %c0_0 = arith.constant 0 : index
    %c0_1 = arith.constant 0 : index
    %0 = vector.load %arg1[%c0, %c0_0, %c0_1] : memref<1x196x256xf32, #tpu.memory_space<vmem>>, vector<1x196x256xf32>
    %1 = vector.shape_cast %0 : vector<1x196x256xf32> to vector<196x256xf32>
    %c0_2 = arith.constant 0 : index
    %c0_3 = arith.constant 0 : index
    %2 = vector.load %arg2[%c0_2, %c0_3] : memref<256x32xf32, #tpu.memory_space<vmem>>, vector<256x32xf32>
    %cst = arith.constant dense<0.000000e+00> : vector<196x32xf32>
    %3 = tpu.matmul %1, %2, %cst {dimension_numbers = #tpu.dot_dimension_numbers<[1], [0], [0], [1], [0, 0, 1, 1], [], []>} : vector<196x256xf32>, vector<256x32xf32>, vector<196x32xf32> -> vector<196x32xf32>
    %c0_4 = arith.constant 0 : index
    %c0_5 = arith.constant 0 : index
    %4 = vector.load %arg3[%c0_4, %c0_5] : memref<1x32xf32, #tpu.memory_space<vmem>>, vector<1x32xf32>
    %5 = vector.broadcast %4 : vector<1x32xf32> to vector<196x32xf32>
    %6 = arith.addf %3, %5 : vector<196x32xf32>
    %cst_6 = arith.constant 0.000000e+00 : f32
    %7 = vector.broadcast %cst_6 : f32 to vector<196x32xf32>
    %8 = arith.maximumf %6, %7 : vector<196x32xf32>
    %cst_7 = arith.constant 0.000000e+00 : f32
    %9 = vector.broadcast %cst_7 : f32 to vector<49x32xf32>
    %c0_8 = arith.constant 0 : index
    %c0_9 = arith.constant 0 : index
    %c0_10 = arith.constant 0 : index
    %10 = vector.load %arg4[%c0_8, %c0_9, %c0_10] : memref<9x49x196xf32, #tpu.memory_space<vmem>>, vector<1x49x196xf32>
    %11 = vector.shape_cast %10 : vector<1x49x196xf32> to vector<49x196xf32>
    %cst_11 = arith.constant dense<0.000000e+00> : vector<49x32xf32>
    %12 = tpu.matmul %11, %8, %cst_11 {dimension_numbers = #tpu.dot_dimension_numbers<[1], [0], [0], [1], [0, 0, 1, 1], [], []>} : vector<49x196xf32>, vector<196x32xf32>, vector<49x32xf32> -> vector<49x32xf32>
    %c0_12 = arith.constant 0 : index
    %c0_13 = arith.constant 0 : index
    %c0_14 = arith.constant 0 : index
    %13 = vector.load %arg5[%c0_12, %c0_13, %c0_14] : memref<9x32x32xf32, #tpu.memory_space<vmem>>, vector<1x32x32xf32>
    %14 = vector.shape_cast %13 : vector<1x32x32xf32> to vector<32x32xf32>
    %cst_15 = arith.constant dense<0.000000e+00> : vector<49x32xf32>
    %15 = tpu.matmul %12, %14, %cst_15 {dimension_numbers = #tpu.dot_dimension_numbers<[1], [0], [0], [1], [0, 0, 1, 1], [], []>} : vector<49x32xf32>, vector<32x32xf32>, vector<49x32xf32> -> vector<49x32xf32>
    %16 = arith.addf %9, %15 : vector<49x32xf32>
    %c1 = arith.constant 1 : index
    %c0_16 = arith.constant 0 : index
    %c0_17 = arith.constant 0 : index
    %17 = vector.load %arg4[%c1, %c0_16, %c0_17] : memref<9x49x196xf32, #tpu.memory_space<vmem>>, vector<1x49x196xf32>
    %18 = vector.shape_cast %17 : vector<1x49x196xf32> to vector<49x196xf32>
    %cst_18 = arith.constant dense<0.000000e+00> : vector<49x32xf32>
    %19 = tpu.matmul %18, %8, %cst_18 {dimension_numbers = #tpu.dot_dimension_numbers<[1], [0], [0], [1], [0, 0, 1, 1], [], []>} : vector<49x196xf32>, vector<196x32xf32>, vector<49x32xf32> -> vector<49x32xf32>
    %c1_19 = arith.constant 1 : index
    %c0_20 = arith.constant 0 : index
    %c0_21 = arith.constant 0 : index
    %20 = vector.load %arg5[%c1_19, %c0_20, %c0_21] : memref<9x32x32xf32, #tpu.memory_space<vmem>>, vector<1x32x32xf32>
    %21 = vector.shape_cast %20 : vector<1x32x32xf32> to vector<32x32xf32>
    %cst_22 = arith.constant dense<0.000000e+00> : vector<49x32xf32>
    %22 = tpu.matmul %19, %21, %cst_22 {dimension_numbers = #tpu.dot_dimension_numbers<[1], [0], [0], [1], [0, 0, 1, 1], [], []>} : vector<49x32xf32>, vector<32x32xf32>, vector<49x32xf32> -> vector<49x32xf32>
    %23 = arith.addf %16, %22 : vector<49x32xf32>
    %c2 = arith.constant 2 : index
    %c0_23 = arith.constant 0 : index
    %c0_24 = arith.constant 0 : index
    %24 = vector.load %arg4[%c2, %c0_23, %c0_24] : memref<9x49x196xf32, #tpu.memory_space<vmem>>, vector<1x49x196xf32>
    %25 = vector.shape_cast %24 : vector<1x49x196xf32> to vector<49x196xf32>
    %cst_25 = arith.constant dense<0.000000e+00> : vector<49x32xf32>
    %26 = tpu.matmul %25, %8, %cst_25 {dimension_numbers = #tpu.dot_dimension_numbers<[1], [0], [0], [1], [0, 0, 1, 1], [], []>} : vector<49x196xf32>, vector<196x32xf32>, vector<49x32xf32> -> vector<49x32xf32>
    %c2_26 = arith.constant 2 : index
    %c0_27 = arith.constant 0 : index
    %c0_28 = arith.constant 0 : index
    %27 = vector.load %arg5[%c2_26, %c0_27, %c0_28] : memref<9x32x32xf32, #tpu.memory_space<vmem>>, vector<1x32x32xf32>
    %28 = vector.shape_cast %27 : vector<1x32x32xf32> to vector<32x32xf32>
    %cst_29 = arith.constant dense<0.000000e+00> : vector<49x32xf32>
    %29 = tpu.matmul %26, %28, %cst_29 {dimension_numbers = #tpu.dot_dimension_numbers<[1], [0], [0], [1], [0, 0, 1, 1], [], []>} : vector<49x32xf32>, vector<32x32xf32>, vector<49x32xf32> -> vector<49x32xf32>
    %30 = arith.addf %23, %29 : vector<49x32xf32>
    %c3 = arith.constant 3 : index
    %c0_30 = arith.constant 0 : index
    %c0_31 = arith.constant 0 : index
    %31 = vector.load %arg4[%c3, %c0_30, %c0_31] : memref<9x49x196xf32, #tpu.memory_space<vmem>>, vector<1x49x196xf32>
    %32 = vector.shape_cast %31 : vector<1x49x196xf32> to vector<49x196xf32>
    %cst_32 = arith.constant dense<0.000000e+00> : vector<49x32xf32>
    %33 = tpu.matmul %32, %8, %cst_32 {dimension_numbers = #tpu.dot_dimension_numbers<[1], [0], [0], [1], [0, 0, 1, 1], [], []>} : vector<49x196xf32>, vector<196x32xf32>, vector<49x32xf32> -> vector<49x32xf32>
    %c3_33 = arith.constant 3 : index
    %c0_34 = arith.constant 0 : index
    %c0_35 = arith.constant 0 : index
    %34 = vector.load %arg5[%c3_33, %c0_34, %c0_35] : memref<9x32x32xf32, #tpu.memory_space<vmem>>, vector<1x32x32xf32>
    %35 = vector.shape_cast %34 : vector<1x32x32xf32> to vector<32x32xf32>
    %cst_36 = arith.constant dense<0.000000e+00> : vector<49x32xf32>
    %36 = tpu.matmul %33, %35, %cst_36 {dimension_numbers = #tpu.dot_dimension_numbers<[1], [0], [0], [1], [0, 0, 1, 1], [], []>} : vector<49x32xf32>, vector<32x32xf32>, vector<49x32xf32> -> vector<49x32xf32>
    %37 = arith.addf %30, %36 : vector<49x32xf32>
    %c4 = arith.constant 4 : index
    %c0_37 = arith.constant 0 : index
    %c0_38 = arith.constant 0 : index
    %38 = vector.load %arg4[%c4, %c0_37, %c0_38] : memref<9x49x196xf32, #tpu.memory_space<vmem>>, vector<1x49x196xf32>
    %39 = vector.shape_cast %38 : vector<1x49x196xf32> to vector<49x196xf32>
    %cst_39 = arith.constant dense<0.000000e+00> : vector<49x32xf32>
    %40 = tpu.matmul %39, %8, %cst_39 {dimension_numbers = #tpu.dot_dimension_numbers<[1], [0], [0], [1], [0, 0, 1, 1], [], []>} : vector<49x196xf32>, vector<196x32xf32>, vector<49x32xf32> -> vector<49x32xf32>
    %c4_40 = arith.constant 4 : index
    %c0_41 = arith.constant 0 : index
    %c0_42 = arith.constant 0 : index
    %41 = vector.load %arg5[%c4_40, %c0_41, %c0_42] : memref<9x32x32xf32, #tpu.memory_space<vmem>>, vector<1x32x32xf32>
    %42 = vector.shape_cast %41 : vector<1x32x32xf32> to vector<32x32xf32>
    %cst_43 = arith.constant dense<0.000000e+00> : vector<49x32xf32>
    %43 = tpu.matmul %40, %42, %cst_43 {dimension_numbers = #tpu.dot_dimension_numbers<[1], [0], [0], [1], [0, 0, 1, 1], [], []>} : vector<49x32xf32>, vector<32x32xf32>, vector<49x32xf32> -> vector<49x32xf32>
    %44 = arith.addf %37, %43 : vector<49x32xf32>
    %c5 = arith.constant 5 : index
    %c0_44 = arith.constant 0 : index
    %c0_45 = arith.constant 0 : index
    %45 = vector.load %arg4[%c5, %c0_44, %c0_45] : memref<9x49x196xf32, #tpu.memory_space<vmem>>, vector<1x49x196xf32>
    %46 = vector.shape_cast %45 : vector<1x49x196xf32> to vector<49x196xf32>
    %cst_46 = arith.constant dense<0.000000e+00> : vector<49x32xf32>
    %47 = tpu.matmul %46, %8, %cst_46 {dimension_numbers = #tpu.dot_dimension_numbers<[1], [0], [0], [1], [0, 0, 1, 1], [], []>} : vector<49x196xf32>, vector<196x32xf32>, vector<49x32xf32> -> vector<49x32xf32>
    %c5_47 = arith.constant 5 : index
    %c0_48 = arith.constant 0 : index
    %c0_49 = arith.constant 0 : index
    %48 = vector.load %arg5[%c5_47, %c0_48, %c0_49] : memref<9x32x32xf32, #tpu.memory_space<vmem>>, vector<1x32x32xf32>
    %49 = vector.shape_cast %48 : vector<1x32x32xf32> to vector<32x32xf32>
    %cst_50 = arith.constant dense<0.000000e+00> : vector<49x32xf32>
    %50 = tpu.matmul %47, %49, %cst_50 {dimension_numbers = #tpu.dot_dimension_numbers<[1], [0], [0], [1], [0, 0, 1, 1], [], []>} : vector<49x32xf32>, vector<32x32xf32>, vector<49x32xf32> -> vector<49x32xf32>
    %51 = arith.addf %44, %50 : vector<49x32xf32>
    %c6 = arith.constant 6 : index
    %c0_51 = arith.constant 0 : index
    %c0_52 = arith.constant 0 : index
    %52 = vector.load %arg4[%c6, %c0_51, %c0_52] : memref<9x49x196xf32, #tpu.memory_space<vmem>>, vector<1x49x196xf32>
    %53 = vector.shape_cast %52 : vector<1x49x196xf32> to vector<49x196xf32>
    %cst_53 = arith.constant dense<0.000000e+00> : vector<49x32xf32>
    %54 = tpu.matmul %53, %8, %cst_53 {dimension_numbers = #tpu.dot_dimension_numbers<[1], [0], [0], [1], [0, 0, 1, 1], [], []>} : vector<49x196xf32>, vector<196x32xf32>, vector<49x32xf32> -> vector<49x32xf32>
    %c6_54 = arith.constant 6 : index
    %c0_55 = arith.constant 0 : index
    %c0_56 = arith.constant 0 : index
    %55 = vector.load %arg5[%c6_54, %c0_55, %c0_56] : memref<9x32x32xf32, #tpu.memory_space<vmem>>, vector<1x32x32xf32>
    %56 = vector.shape_cast %55 : vector<1x32x32xf32> to vector<32x32xf32>
    %cst_57 = arith.constant dense<0.000000e+00> : vector<49x32xf32>
    %57 = tpu.matmul %54, %56, %cst_57 {dimension_numbers = #tpu.dot_dimension_numbers<[1], [0], [0], [1], [0, 0, 1, 1], [], []>} : vector<49x32xf32>, vector<32x32xf32>, vector<49x32xf32> -> vector<49x32xf32>
    %58 = arith.addf %51, %57 : vector<49x32xf32>
    %c7 = arith.constant 7 : index
    %c0_58 = arith.constant 0 : index
    %c0_59 = arith.constant 0 : index
    %59 = vector.load %arg4[%c7, %c0_58, %c0_59] : memref<9x49x196xf32, #tpu.memory_space<vmem>>, vector<1x49x196xf32>
    %60 = vector.shape_cast %59 : vector<1x49x196xf32> to vector<49x196xf32>
    %cst_60 = arith.constant dense<0.000000e+00> : vector<49x32xf32>
    %61 = tpu.matmul %60, %8, %cst_60 {dimension_numbers = #tpu.dot_dimension_numbers<[1], [0], [0], [1], [0, 0, 1, 1], [], []>} : vector<49x196xf32>, vector<196x32xf32>, vector<49x32xf32> -> vector<49x32xf32>
    %c7_61 = arith.constant 7 : index
    %c0_62 = arith.constant 0 : index
    %c0_63 = arith.constant 0 : index
    %62 = vector.load %arg5[%c7_61, %c0_62, %c0_63] : memref<9x32x32xf32, #tpu.memory_space<vmem>>, vector<1x32x32xf32>
    %63 = vector.shape_cast %62 : vector<1x32x32xf32> to vector<32x32xf32>
    %cst_64 = arith.constant dense<0.000000e+00> : vector<49x32xf32>
    %64 = tpu.matmul %61, %63, %cst_64 {dimension_numbers = #tpu.dot_dimension_numbers<[1], [0], [0], [1], [0, 0, 1, 1], [], []>} : vector<49x32xf32>, vector<32x32xf32>, vector<49x32xf32> -> vector<49x32xf32>
    %65 = arith.addf %58, %64 : vector<49x32xf32>
    %c8 = arith.constant 8 : index
    %c0_65 = arith.constant 0 : index
    %c0_66 = arith.constant 0 : index
    %66 = vector.load %arg4[%c8, %c0_65, %c0_66] : memref<9x49x196xf32, #tpu.memory_space<vmem>>, vector<1x49x196xf32>
    %67 = vector.shape_cast %66 : vector<1x49x196xf32> to vector<49x196xf32>
    %cst_67 = arith.constant dense<0.000000e+00> : vector<49x32xf32>
    %68 = tpu.matmul %67, %8, %cst_67 {dimension_numbers = #tpu.dot_dimension_numbers<[1], [0], [0], [1], [0, 0, 1, 1], [], []>} : vector<49x196xf32>, vector<196x32xf32>, vector<49x32xf32> -> vector<49x32xf32>
    %c8_68 = arith.constant 8 : index
    %c0_69 = arith.constant 0 : index
    %c0_70 = arith.constant 0 : index
    %69 = vector.load %arg5[%c8_68, %c0_69, %c0_70] : memref<9x32x32xf32, #tpu.memory_space<vmem>>, vector<1x32x32xf32>
    %70 = vector.shape_cast %69 : vector<1x32x32xf32> to vector<32x32xf32>
    %cst_71 = arith.constant dense<0.000000e+00> : vector<49x32xf32>
    %71 = tpu.matmul %68, %70, %cst_71 {dimension_numbers = #tpu.dot_dimension_numbers<[1], [0], [0], [1], [0, 0, 1, 1], [], []>} : vector<49x32xf32>, vector<32x32xf32>, vector<49x32xf32> -> vector<49x32xf32>
    %72 = arith.addf %65, %71 : vector<49x32xf32>
    %c0_72 = arith.constant 0 : index
    %c0_73 = arith.constant 0 : index
    %73 = vector.load %arg6[%c0_72, %c0_73] : memref<1x32xf32, #tpu.memory_space<vmem>>, vector<1x32xf32>
    %74 = vector.broadcast %73 : vector<1x32xf32> to vector<49x32xf32>
    %75 = arith.addf %72, %74 : vector<49x32xf32>
    %cst_74 = arith.constant 0.000000e+00 : f32
    %76 = vector.broadcast %cst_74 : f32 to vector<49x32xf32>
    %77 = arith.maximumf %75, %76 : vector<49x32xf32>
    %cst_75 = arith.constant 0.000000e+00 : f32
    %78 = vector.broadcast %cst_75 : f32 to vector<16x32xf32>
    %c0_76 = arith.constant 0 : index
    %c0_77 = arith.constant 0 : index
    %c0_78 = arith.constant 0 : index
    %79 = vector.load %arg7[%c0_76, %c0_77, %c0_78] : memref<9x16x49xf32, #tpu.memory_space<vmem>>, vector<1x16x49xf32>
    %80 = vector.shape_cast %79 : vector<1x16x49xf32> to vector<16x49xf32>
    %cst_79 = arith.constant dense<0.000000e+00> : vector<16x32xf32>
    %81 = tpu.matmul %80, %77, %cst_79 {dimension_numbers = #tpu.dot_dimension_numbers<[1], [0], [0], [1], [0, 0, 1, 1], [], []>} : vector<16x49xf32>, vector<49x32xf32>, vector<16x32xf32> -> vector<16x32xf32>
    %c0_80 = arith.constant 0 : index
    %c0_81 = arith.constant 0 : index
    %c0_82 = arith.constant 0 : index
    %82 = vector.load %arg8[%c0_80, %c0_81, %c0_82] : memref<9x32x32xf32, #tpu.memory_space<vmem>>, vector<1x32x32xf32>
    %83 = vector.shape_cast %82 : vector<1x32x32xf32> to vector<32x32xf32>
    %cst_83 = arith.constant dense<0.000000e+00> : vector<16x32xf32>
    %84 = tpu.matmul %81, %83, %cst_83 {dimension_numbers = #tpu.dot_dimension_numbers<[1], [0], [0], [1], [0, 0, 1, 1], [], []>} : vector<16x32xf32>, vector<32x32xf32>, vector<16x32xf32> -> vector<16x32xf32>
    %85 = arith.addf %78, %84 : vector<16x32xf32>
    %c1_84 = arith.constant 1 : index
    %c0_85 = arith.constant 0 : index
    %c0_86 = arith.constant 0 : index
    %86 = vector.load %arg7[%c1_84, %c0_85, %c0_86] : memref<9x16x49xf32, #tpu.memory_space<vmem>>, vector<1x16x49xf32>
    %87 = vector.shape_cast %86 : vector<1x16x49xf32> to vector<16x49xf32>
    %cst_87 = arith.constant dense<0.000000e+00> : vector<16x32xf32>
    %88 = tpu.matmul %87, %77, %cst_87 {dimension_numbers = #tpu.dot_dimension_numbers<[1], [0], [0], [1], [0, 0, 1, 1], [], []>} : vector<16x49xf32>, vector<49x32xf32>, vector<16x32xf32> -> vector<16x32xf32>
    %c1_88 = arith.constant 1 : index
    %c0_89 = arith.constant 0 : index
    %c0_90 = arith.constant 0 : index
    %89 = vector.load %arg8[%c1_88, %c0_89, %c0_90] : memref<9x32x32xf32, #tpu.memory_space<vmem>>, vector<1x32x32xf32>
    %90 = vector.shape_cast %89 : vector<1x32x32xf32> to vector<32x32xf32>
    %cst_91 = arith.constant dense<0.000000e+00> : vector<16x32xf32>
    %91 = tpu.matmul %88, %90, %cst_91 {dimension_numbers = #tpu.dot_dimension_numbers<[1], [0], [0], [1], [0, 0, 1, 1], [], []>} : vector<16x32xf32>, vector<32x32xf32>, vector<16x32xf32> -> vector<16x32xf32>
    %92 = arith.addf %85, %91 : vector<16x32xf32>
    %c2_92 = arith.constant 2 : index
    %c0_93 = arith.constant 0 : index
    %c0_94 = arith.constant 0 : index
    %93 = vector.load %arg7[%c2_92, %c0_93, %c0_94] : memref<9x16x49xf32, #tpu.memory_space<vmem>>, vector<1x16x49xf32>
    %94 = vector.shape_cast %93 : vector<1x16x49xf32> to vector<16x49xf32>
    %cst_95 = arith.constant dense<0.000000e+00> : vector<16x32xf32>
    %95 = tpu.matmul %94, %77, %cst_95 {dimension_numbers = #tpu.dot_dimension_numbers<[1], [0], [0], [1], [0, 0, 1, 1], [], []>} : vector<16x49xf32>, vector<49x32xf32>, vector<16x32xf32> -> vector<16x32xf32>
    %c2_96 = arith.constant 2 : index
    %c0_97 = arith.constant 0 : index
    %c0_98 = arith.constant 0 : index
    %96 = vector.load %arg8[%c2_96, %c0_97, %c0_98] : memref<9x32x32xf32, #tpu.memory_space<vmem>>, vector<1x32x32xf32>
    %97 = vector.shape_cast %96 : vector<1x32x32xf32> to vector<32x32xf32>
    %cst_99 = arith.constant dense<0.000000e+00> : vector<16x32xf32>
    %98 = tpu.matmul %95, %97, %cst_99 {dimension_numbers = #tpu.dot_dimension_numbers<[1], [0], [0], [1], [0, 0, 1, 1], [], []>} : vector<16x32xf32>, vector<32x32xf32>, vector<16x32xf32> -> vector<16x32xf32>
    %99 = arith.addf %92, %98 : vector<16x32xf32>
    %c3_100 = arith.constant 3 : index
    %c0_101 = arith.constant 0 : index
    %c0_102 = arith.constant 0 : index
    %100 = vector.load %arg7[%c3_100, %c0_101, %c0_102] : memref<9x16x49xf32, #tpu.memory_space<vmem>>, vector<1x16x49xf32>
    %101 = vector.shape_cast %100 : vector<1x16x49xf32> to vector<16x49xf32>
    %cst_103 = arith.constant dense<0.000000e+00> : vector<16x32xf32>
    %102 = tpu.matmul %101, %77, %cst_103 {dimension_numbers = #tpu.dot_dimension_numbers<[1], [0], [0], [1], [0, 0, 1, 1], [], []>} : vector<16x49xf32>, vector<49x32xf32>, vector<16x32xf32> -> vector<16x32xf32>
    %c3_104 = arith.constant 3 : index
    %c0_105 = arith.constant 0 : index
    %c0_106 = arith.constant 0 : index
    %103 = vector.load %arg8[%c3_104, %c0_105, %c0_106] : memref<9x32x32xf32, #tpu.memory_space<vmem>>, vector<1x32x32xf32>
    %104 = vector.shape_cast %103 : vector<1x32x32xf32> to vector<32x32xf32>
    %cst_107 = arith.constant dense<0.000000e+00> : vector<16x32xf32>
    %105 = tpu.matmul %102, %104, %cst_107 {dimension_numbers = #tpu.dot_dimension_numbers<[1], [0], [0], [1], [0, 0, 1, 1], [], []>} : vector<16x32xf32>, vector<32x32xf32>, vector<16x32xf32> -> vector<16x32xf32>
    %106 = arith.addf %99, %105 : vector<16x32xf32>
    %c4_108 = arith.constant 4 : index
    %c0_109 = arith.constant 0 : index
    %c0_110 = arith.constant 0 : index
    %107 = vector.load %arg7[%c4_108, %c0_109, %c0_110] : memref<9x16x49xf32, #tpu.memory_space<vmem>>, vector<1x16x49xf32>
    %108 = vector.shape_cast %107 : vector<1x16x49xf32> to vector<16x49xf32>
    %cst_111 = arith.constant dense<0.000000e+00> : vector<16x32xf32>
    %109 = tpu.matmul %108, %77, %cst_111 {dimension_numbers = #tpu.dot_dimension_numbers<[1], [0], [0], [1], [0, 0, 1, 1], [], []>} : vector<16x49xf32>, vector<49x32xf32>, vector<16x32xf32> -> vector<16x32xf32>
    %c4_112 = arith.constant 4 : index
    %c0_113 = arith.constant 0 : index
    %c0_114 = arith.constant 0 : index
    %110 = vector.load %arg8[%c4_112, %c0_113, %c0_114] : memref<9x32x32xf32, #tpu.memory_space<vmem>>, vector<1x32x32xf32>
    %111 = vector.shape_cast %110 : vector<1x32x32xf32> to vector<32x32xf32>
    %cst_115 = arith.constant dense<0.000000e+00> : vector<16x32xf32>
    %112 = tpu.matmul %109, %111, %cst_115 {dimension_numbers = #tpu.dot_dimension_numbers<[1], [0], [0], [1], [0, 0, 1, 1], [], []>} : vector<16x32xf32>, vector<32x32xf32>, vector<16x32xf32> -> vector<16x32xf32>
    %113 = arith.addf %106, %112 : vector<16x32xf32>
    %c5_116 = arith.constant 5 : index
    %c0_117 = arith.constant 0 : index
    %c0_118 = arith.constant 0 : index
    %114 = vector.load %arg7[%c5_116, %c0_117, %c0_118] : memref<9x16x49xf32, #tpu.memory_space<vmem>>, vector<1x16x49xf32>
    %115 = vector.shape_cast %114 : vector<1x16x49xf32> to vector<16x49xf32>
    %cst_119 = arith.constant dense<0.000000e+00> : vector<16x32xf32>
    %116 = tpu.matmul %115, %77, %cst_119 {dimension_numbers = #tpu.dot_dimension_numbers<[1], [0], [0], [1], [0, 0, 1, 1], [], []>} : vector<16x49xf32>, vector<49x32xf32>, vector<16x32xf32> -> vector<16x32xf32>
    %c5_120 = arith.constant 5 : index
    %c0_121 = arith.constant 0 : index
    %c0_122 = arith.constant 0 : index
    %117 = vector.load %arg8[%c5_120, %c0_121, %c0_122] : memref<9x32x32xf32, #tpu.memory_space<vmem>>, vector<1x32x32xf32>
    %118 = vector.shape_cast %117 : vector<1x32x32xf32> to vector<32x32xf32>
    %cst_123 = arith.constant dense<0.000000e+00> : vector<16x32xf32>
    %119 = tpu.matmul %116, %118, %cst_123 {dimension_numbers = #tpu.dot_dimension_numbers<[1], [0], [0], [1], [0, 0, 1, 1], [], []>} : vector<16x32xf32>, vector<32x32xf32>, vector<16x32xf32> -> vector<16x32xf32>
    %120 = arith.addf %113, %119 : vector<16x32xf32>
    %c6_124 = arith.constant 6 : index
    %c0_125 = arith.constant 0 : index
    %c0_126 = arith.constant 0 : index
    %121 = vector.load %arg7[%c6_124, %c0_125, %c0_126] : memref<9x16x49xf32, #tpu.memory_space<vmem>>, vector<1x16x49xf32>
    %122 = vector.shape_cast %121 : vector<1x16x49xf32> to vector<16x49xf32>
    %cst_127 = arith.constant dense<0.000000e+00> : vector<16x32xf32>
    %123 = tpu.matmul %122, %77, %cst_127 {dimension_numbers = #tpu.dot_dimension_numbers<[1], [0], [0], [1], [0, 0, 1, 1], [], []>} : vector<16x49xf32>, vector<49x32xf32>, vector<16x32xf32> -> vector<16x32xf32>
    %c6_128 = arith.constant 6 : index
    %c0_129 = arith.constant 0 : index
    %c0_130 = arith.constant 0 : index
    %124 = vector.load %arg8[%c6_128, %c0_129, %c0_130] : memref<9x32x32xf32, #tpu.memory_space<vmem>>, vector<1x32x32xf32>
    %125 = vector.shape_cast %124 : vector<1x32x32xf32> to vector<32x32xf32>
    %cst_131 = arith.constant dense<0.000000e+00> : vector<16x32xf32>
    %126 = tpu.matmul %123, %125, %cst_131 {dimension_numbers = #tpu.dot_dimension_numbers<[1], [0], [0], [1], [0, 0, 1, 1], [], []>} : vector<16x32xf32>, vector<32x32xf32>, vector<16x32xf32> -> vector<16x32xf32>
    %127 = arith.addf %120, %126 : vector<16x32xf32>
    %c7_132 = arith.constant 7 : index
    %c0_133 = arith.constant 0 : index
    %c0_134 = arith.constant 0 : index
    %128 = vector.load %arg7[%c7_132, %c0_133, %c0_134] : memref<9x16x49xf32, #tpu.memory_space<vmem>>, vector<1x16x49xf32>
    %129 = vector.shape_cast %128 : vector<1x16x49xf32> to vector<16x49xf32>
    %cst_135 = arith.constant dense<0.000000e+00> : vector<16x32xf32>
    %130 = tpu.matmul %129, %77, %cst_135 {dimension_numbers = #tpu.dot_dimension_numbers<[1], [0], [0], [1], [0, 0, 1, 1], [], []>} : vector<16x49xf32>, vector<49x32xf32>, vector<16x32xf32> -> vector<16x32xf32>
    %c7_136 = arith.constant 7 : index
    %c0_137 = arith.constant 0 : index
    %c0_138 = arith.constant 0 : index
    %131 = vector.load %arg8[%c7_136, %c0_137, %c0_138] : memref<9x32x32xf32, #tpu.memory_space<vmem>>, vector<1x32x32xf32>
    %132 = vector.shape_cast %131 : vector<1x32x32xf32> to vector<32x32xf32>
    %cst_139 = arith.constant dense<0.000000e+00> : vector<16x32xf32>
    %133 = tpu.matmul %130, %132, %cst_139 {dimension_numbers = #tpu.dot_dimension_numbers<[1], [0], [0], [1], [0, 0, 1, 1], [], []>} : vector<16x32xf32>, vector<32x32xf32>, vector<16x32xf32> -> vector<16x32xf32>
    %134 = arith.addf %127, %133 : vector<16x32xf32>
    %c8_140 = arith.constant 8 : index
    %c0_141 = arith.constant 0 : index
    %c0_142 = arith.constant 0 : index
    %135 = vector.load %arg7[%c8_140, %c0_141, %c0_142] : memref<9x16x49xf32, #tpu.memory_space<vmem>>, vector<1x16x49xf32>
    %136 = vector.shape_cast %135 : vector<1x16x49xf32> to vector<16x49xf32>
    %cst_143 = arith.constant dense<0.000000e+00> : vector<16x32xf32>
    %137 = tpu.matmul %136, %77, %cst_143 {dimension_numbers = #tpu.dot_dimension_numbers<[1], [0], [0], [1], [0, 0, 1, 1], [], []>} : vector<16x49xf32>, vector<49x32xf32>, vector<16x32xf32> -> vector<16x32xf32>
    %c8_144 = arith.constant 8 : index
    %c0_145 = arith.constant 0 : index
    %c0_146 = arith.constant 0 : index
    %138 = vector.load %arg8[%c8_144, %c0_145, %c0_146] : memref<9x32x32xf32, #tpu.memory_space<vmem>>, vector<1x32x32xf32>
    %139 = vector.shape_cast %138 : vector<1x32x32xf32> to vector<32x32xf32>
    %cst_147 = arith.constant dense<0.000000e+00> : vector<16x32xf32>
    %140 = tpu.matmul %137, %139, %cst_147 {dimension_numbers = #tpu.dot_dimension_numbers<[1], [0], [0], [1], [0, 0, 1, 1], [], []>} : vector<16x32xf32>, vector<32x32xf32>, vector<16x32xf32> -> vector<16x32xf32>
    %141 = arith.addf %134, %140 : vector<16x32xf32>
    %c0_148 = arith.constant 0 : index
    %c0_149 = arith.constant 0 : index
    %142 = vector.load %arg9[%c0_148, %c0_149] : memref<1x32xf32, #tpu.memory_space<vmem>>, vector<1x32xf32>
    %143 = vector.broadcast %142 : vector<1x32xf32> to vector<16x32xf32>
    %144 = arith.addf %141, %143 : vector<16x32xf32>
    %cst_150 = arith.constant 0.000000e+00 : f32
    %145 = vector.broadcast %cst_150 : f32 to vector<16x32xf32>
    %146 = arith.maximumf %144, %145 : vector<16x32xf32>
    %cst_151 = arith.constant dense<0.000000e+00> : vector<32xf32>
    %147 = vector.multi_reduction <add>, %146, %cst_151 [0] : vector<16x32xf32> to vector<32xf32>
    %148 = vector.shape_cast %147 : vector<32xf32> to vector<1x32xf32>
    %cst_152 = arith.constant 6.250000e-02 : f32
    %149 = vector.broadcast %cst_152 : f32 to vector<1x32xf32>
    %150 = arith.mulf %148, %149 : vector<1x32xf32>
    %c0_153 = arith.constant 0 : index
    %c0_154 = arith.constant 0 : index
    %c0_155 = arith.constant 0 : index
    %151 = vector.load %arg10[%c0_153, %c0_154, %c0_155] : memref<1x1x32xf32, #tpu.memory_space<vmem>>, vector<1x1x32xf32>
    %152 = vector.shape_cast %151 : vector<1x1x32xf32> to vector<1x32xf32>
    %153 = vector.shape_cast %150 : vector<1x32xf32> to vector<1x1x32xf32>
    tpu.vector_store %arg10[%c0_153, %c0_154, %c0_155], %153 {strides = array<i32>} : memref<1x1x32xf32, #tpu.memory_space<vmem>>, vector<1x1x32xf32>,
    return
  }
  func.func @transform_0(%arg0: i32) -> (i32, i32, i32) {
    %c0_i32 = arith.constant 0 : i32
    %c0_i32_0 = arith.constant 0 : i32
    %c0_i32_1 = arith.constant 0 : i32
    return %arg0, %c0_i32, %c0_i32_0 : i32, i32, i32
  }
  func.func @transform_1(%arg0: i32) -> (i32, i32) {
    %c0_i32 = arith.constant 0 : i32
    %c0_i32_0 = arith.constant 0 : i32
    %c0_i32_1 = arith.constant 0 : i32
    return %c0_i32, %c0_i32_0 : i32, i32
  }
  func.func @transform_2(%arg0: i32) -> (i32, i32) {
    %c0_i32 = arith.constant 0 : i32
    %c0_i32_0 = arith.constant 0 : i32
    %c0_i32_1 = arith.constant 0 : i32
    return %c0_i32, %c0_i32_0 : i32, i32
  }
  func.func @transform_3(%arg0: i32) -> (i32, i32, i32) {
    %c0_i32 = arith.constant 0 : i32
    %c0_i32_0 = arith.constant 0 : i32
    %c0_i32_1 = arith.constant 0 : i32
    %c0_i32_2 = arith.constant 0 : i32
    return %c0_i32, %c0_i32_0, %c0_i32_1 : i32, i32, i32
  }
  func.func @transform_4(%arg0: i32) -> (i32, i32, i32) {
    %c0_i32 = arith.constant 0 : i32
    %c0_i32_0 = arith.constant 0 : i32
    %c0_i32_1 = arith.constant 0 : i32
    %c0_i32_2 = arith.constant 0 : i32
    return %c0_i32, %c0_i32_0, %c0_i32_1 : i32, i32, i32
  }
  func.func @transform_5(%arg0: i32) -> (i32, i32) {
    %c0_i32 = arith.constant 0 : i32
    %c0_i32_0 = arith.constant 0 : i32
    %c0_i32_1 = arith.constant 0 : i32
    return %c0_i32, %c0_i32_0 : i32, i32
  }
  func.func @transform_6(%arg0: i32) -> (i32, i32, i32) {
    %c0_i32 = arith.constant 0 : i32
    %c0_i32_0 = arith.constant 0 : i32
    %c0_i32_1 = arith.constant 0 : i32
    %c0_i32_2 = arith.constant 0 : i32
    return %c0_i32, %c0_i32_0, %c0_i32_1 : i32, i32, i32
  }
  func.func @transform_7(%arg0: i32) -> (i32, i32, i32) {
    %c0_i32 = arith.constant 0 : i32
    %c0_i32_0 = arith.constant 0 : i32
    %c0_i32_1 = arith.constant 0 : i32
    %c0_i32_2 = arith.constant 0 : i32
    return %c0_i32, %c0_i32_0, %c0_i32_1 : i32, i32, i32
  }
  func.func @transform_8(%arg0: i32) -> (i32, i32) {
    %c0_i32 = arith.constant 0 : i32
    %c0_i32_0 = arith.constant 0 : i32
    %c0_i32_1 = arith.constant 0 : i32
    return %c0_i32, %c0_i32_0 : i32, i32
  }
  func.func @transform_9(%arg0: i32) -> (i32, i32, i32) {
    %c0_i32 = arith.constant 0 : i32
    %c0_i32_0 = arith.constant 0 : i32
    %c0_i32_1 = arith.constant 0 : i32
    return %arg0, %c0_i32, %c0_i32_0 : i32, i32, i32
  }
}

</mosaic_0001>

<llo_original>
// kernel: _lambda_.1
$region0: #{_lambda_.1}
  #allocation0 [shape = 'u32[]', space=smem, size = 0x4, offset = 0x4, fixed_abs, tag = 'smem constant byte address 0x4 - core index']
  #allocation1 [shape = 'u32[144,128]{1,0:T(1,128)}', space=vmem, size = 0x12000, scoped, tag = 'internal scratch']
  %s0 = inlined_call_operand.vmem [shape: f32[2,196,256], index: 0, kind: input, shape index: {}]
  %s1 = inlined_call_operand.vmem [shape: f32[256,32], index: 1, kind: input, shape index: {}]
  %s2 = inlined_call_operand.vmem [shape: f32[1,32], index: 2, kind: input, shape index: {}]
  %s3 = inlined_call_operand.vmem [shape: f32[9,49,196], index: 3, kind: input, shape index: {}]
  %s4 = inlined_call_operand.vmem [shape: f32[9,32,32], index: 4, kind: input, shape index: {}]
  %s5 = inlined_call_operand.vmem [shape: f32[1,32], index: 5, kind: input, shape index: {}]
  %s6 = inlined_call_operand.vmem [shape: f32[9,16,49], index: 6, kind: input, shape index: {}]
  %s7 = inlined_call_operand.vmem [shape: f32[9,32,32], index: 7, kind: input, shape index: {}]
  %s8 = inlined_call_operand.vmem [shape: f32[1,32], index: 8, kind: input, shape index: {}]
  %s9 = inlined_call_operand.hbm [shape: f32[2,1,32], index: 9, kind: output, shape index: {}]
  %s10 = sld [smem:[#allocation0]]
  $region69: #{_lambda_.1} parent=0
    _
  %s12 = ssub.s32 1, %s10
  %s13 = scalar_select 0, %s12, %s10
  $region1: #{_lambda_.1} parent=0
    #allocation2 [shape = 'u8[1024]{0}', space=vmem, size = 0x400, scoped, tag = 'output window, operand 0']
    #allocation3 [shape = 's32[2]{0}', space=sflag, size = 0x8, scoped, tag = 'scoped memory for _lambda_.1']
    %14 = vsyncpa [#allocation3], 0
    %s15 = scalar_lea.sflag [#allocation3], 1
    %16 = vsyncpa %s15, 0
    loop: start=0, step=1, limit=4
    $region2: #{_lambda_.1} parent=1 // loop_pre_header
      _
    $region3: #{_lambda_.1} parent=1 // loop_header
      %s18 = sphi 0, %s22
      %p19 = scmp.ge.s32.totalorder %s18, 4
      %s28 = sphi 0, %s30
      %s31 = sphi 0, %s28
      %s32 = sphi 0, %s31
      %s48 = sphi 0, %s32
      %s52 = sphi 0, %s52
      %s54 = sphi 0, %s52
      %s55 = sphi 0, %s54
      %s69 = sphi 0, %s55
      %s73 = sphi 0, %s73
      %s75 = sphi 0, %s73
      %s76 = sphi 0, %s75
      %s90 = sphi 0, %s76
      %s94 = sphi 0, %s94
      %s96 = sphi 0, %s94
      %s97 = sphi 0, %s96
      %s111 = sphi 0, %s97
      %s115 = sphi 0, %s115
      %s117 = sphi 0, %s115
      %s118 = sphi 0, %s117
      %s132 = sphi 0, %s118
      %s136 = sphi 0, %s136
      %s138 = sphi 0, %s136
      %s139 = sphi 0, %s138
      %s153 = sphi 0, %s139
      %s157 = sphi 0, %s157
      %s159 = sphi 0, %s157
      %s160 = sphi 0, %s159
      %s174 = sphi 0, %s160
      %s178 = sphi 0, %s178
      %s180 = sphi 0, %s178
      %s181 = sphi 0, %s180
      %s195 = sphi 0, %s181
      %s199 = sphi 0, %s199
      %s201 = sphi 0, %s199
      %s202 = sphi 0, %s201
      %s216 = sphi 0, %s202
      %s222 = sphi 0, %s224
      %s225 = sphi 0, %s222
      %s226 = sphi 0, %s225
      %s242 = sphi 0, %s226
    $region4: #{_lambda_.1} parent=1 // loop_header_branch
      %21 = sbr.rel (%p19) target = $region8
    $region5: #{_lambda_.1} parent=1 // loop_body
      %s23 = ssub.s32 %s18, 1
      %s24 = ssub.s32 %s18, 2
      %s25 = sadd.s32 %s18, 1
      %s26 = ssub.s32 %s18, %s25
      %p27 = scmp.eq.s32.totalorder %s26, 0
      %s29 = sadd.s32 %s28, 1
      %s30 = scalar_select %p27, %s28, %s29
      %p33 = pneg %p27
      %p34 = scmp.eq.s32.totalorder %s18, 1
      %p35 = por %p33, %p34
      %p36 = scmp.ne.s32.totalorder %s28, %s31
      %p37 = scmp.eq.s32.totalorder %s18, 0
      %p38 = por %p36, %p37
      %p39 = scmp.ne.s32.totalorder %s28, %s31
      %p40 = scmp.eq.s32.totalorder %s23, 1
      %p41 = por %p39, %p40
      %p42 = scmp.ne.s32.totalorder %s31, %s32
      %p43 = scmp.eq.s32.totalorder %s23, 0
      %p44 = por %p42, %p43
      %p45 = scmp.ne.s32.totalorder %s31, %s32
      %p46 = scmp.eq.s32.totalorder %s24, 1
      %p47 = por %p45, %p46
      %p49 = scmp.ne.s32.totalorder %s32, %s48
      %p50 = scmp.eq.s32.totalorder %s24, 0
      %p51 = por %p49, %p50
      %s53 = sadd.s32 %s52, 1
      %p56 = scmp.eq.s32.totalorder %s18, 1
      %p57 = scmp.ne.s32.totalorder %s52, %s54
      %p58 = scmp.eq.s32.totalorder %s18, 0
      %p59 = por %p57, %p58
      %p60 = scmp.ne.s32.totalorder %s52, %s54
      %p61 = scmp.eq.s32.totalorder %s23, 1
      %p62 = por %p60, %p61
      %p63 = scmp.ne.s32.totalorder %s54, %s55
      %p64 = scmp.eq.s32.totalorder %s23, 0
      %p65 = por %p63, %p64
      %p66 = scmp.ne.s32.totalorder %s54, %s55
      %p67 = scmp.eq.s32.totalorder %s24, 1
      %p68 = por %p66, %p67
      %p70 = scmp.ne.s32.totalorder %s55, %s69
      %p71 = scmp.eq.s32.totalorder %s24, 0
      %p72 = por %p70, %p71
      %s74 = sadd.s32 %s73, 1
      %p77 = scmp.eq.s32.totalorder %s18, 1
      %p78 = scmp.ne.s32.totalorder %s73, %s75
      %p79 = scmp.eq.s32.totalorder %s18, 0
      %p80 = por %p78, %p79
      %p81 = scmp.ne.s32.totalorder %s73, %s75
      %p82 = scmp.eq.s32.totalorder %s23, 1
      %p83 = por %p81, %p82
      %p84 = scmp.ne.s32.totalorder %s75, %s76
      %p85 = scmp.eq.s32.totalorder %s23, 0
      %p86 = por %p84, %p85
      %p87 = scmp.ne.s32.totalorder %s75, %s76
      %p88 = scmp.eq.s32.totalorder %s24, 1
      %p89 = por %p87, %p88
      %p91 = scmp.ne.s32.totalorder %s76, %s90
      %p92 = scmp.eq.s32.totalorder %s24, 0
      %p93 = por %p91, %p92
      %s95 = sadd.s32 %s94, 1
      %p98 = scmp.eq.s32.totalorder %s18, 1
      %p99 = scmp.ne.s32.totalorder %s94, %s96
      %p100 = scmp.eq.s32.totalorder %s18, 0
      %p101 = por %p99, %p100
      %p102 = scmp.ne.s32.totalorder %s94, %s96
      %p103 = scmp.eq.s32.totalorder %s23, 1
      %p104 = por %p102, %p103
      %p105 = scmp.ne.s32.totalorder %s96, %s97
      %p106 = scmp.eq.s32.totalorder %s23, 0
      %p107 = por %p105, %p106
      %p108 = scmp.ne.s32.totalorder %s96, %s97
      %p109 = scmp.eq.s32.totalorder %s24, 1
      %p110 = por %p108, %p109
      %p112 = scmp.ne.s32.totalorder %s97, %s111
      %p113 = scmp.eq.s32.totalorder %s24, 0
      %p114 = por %p112, %p113
      %s116 = sadd.s32 %s115, 1
      %p119 = scmp.eq.s32.totalorder %s18, 1
      %p120 = scmp.ne.s32.totalorder %s115, %s117
      %p121 = scmp.eq.s32.totalorder %s18, 0
      %p122 = por %p120, %p121
      %p123 = scmp.ne.s32.totalorder %s115, %s117
      %p124 = scmp.eq.s32.totalorder %s23, 1
      %p125 = por %p123, %p124
      %p126 = scmp.ne.s32.totalorder %s117, %s118
      %p127 = scmp.eq.s32.totalorder %s23, 0
      %p128 = por %p126, %p127
      %p129 = scmp.ne.s32.totalorder %s117, %s118
      %p130 = scmp.eq.s32.totalorder %s24, 1
      %p131 = por %p129, %p130
      %p133 = scmp.ne.s32.totalorder %s118, %s132
      %p134 = scmp.eq.s32.totalorder %s24, 0
      %p135 = por %p133, %p134
      %s137 = sadd.s32 %s136, 1
      %p140 = scmp.eq.s32.totalorder %s18, 1
      %p141 = scmp.ne.s32.totalorder %s136, %s138
      %p142 = scmp.eq.s32.totalorder %s18, 0
      %p143 = por %p141, %p142
      %p144 = scmp.ne.s32.totalorder %s136, %s138
      %p145 = scmp.eq.s32.totalorder %s23, 1
      %p146 = por %p144, %p145
      %p147 = scmp.ne.s32.totalorder %s138, %s139
      %p148 = scmp.eq.s32.totalorder %s23, 0
      %p149 = por %p147, %p148
      %p150 = scmp.ne.s32.totalorder %s138, %s139
      %p151 = scmp.eq.s32.totalorder %s24, 1
      %p152 = por %p150, %p151
      %p154 = scmp.ne.s32.totalorder %s139, %s153
      %p155 = scmp.eq.s32.totalorder %s24, 0
      %p156 = por %p154, %p155
      %s158 = sadd.s32 %s157, 1
      %p161 = scmp.eq.s32.totalorder %s18, 1
      %p162 = scmp.ne.s32.totalorder %s157, %s159
      %p163 = scmp.eq.s32.totalorder %s18, 0
      %p164 = por %p162, %p163
      %p165 = scmp.ne.s32.totalorder %s157, %s159
      %p166 = scmp.eq.s32.totalorder %s23, 1
      %p167 = por %p165, %p166
      %p168 = scmp.ne.s32.totalorder %s159, %s160
      %p169 = scmp.eq.s32.totalorder %s23, 0
      %p170 = por %p168, %p169
      %p171 = scmp.ne.s32.totalorder %s159, %s160
      %p172 = scmp.eq.s32.totalorder %s24, 1
      %p173 = por %p171, %p172
      %p175 = scmp.ne.s32.totalorder %s160, %s174
      %p176 = scmp.eq.s32.totalorder %s24, 0
      %p177 = por %p175, %p176
      %s179 = sadd.s32 %s178, 1
      %p182 = scmp.eq.s32.totalorder %s18, 1
      %p183 = scmp.ne.s32.totalorder %s178, %s180
      %p184 = scmp.eq.s32.totalorder %s18, 0
      %p185 = por %p183, %p184
      %p186 = scmp.ne.s32.totalorder %s178, %s180
      %p187 = scmp.eq.s32.totalorder %s23, 1
      %p188 = por %p186, %p187
      %p189 = scmp.ne.s32.totalorder %s180, %s181
      %p190 = scmp.eq.s32.totalorder %s23, 0
      %p191 = por %p189, %p190
      %p192 = scmp.ne.s32.totalorder %s180, %s181
      %p193 = scmp.eq.s32.totalorder %s24, 1
      %p194 = por %p192, %p193
      %p196 = scmp.ne.s32.totalorder %s181, %s195
      %p197 = scmp.eq.s32.totalorder %s24, 0
      %p198 = por %p196, %p197
      %s200 = sadd.s32 %s199, 1
      %p203 = scmp.eq.s32.totalorder %s18, 1
      %p204 = scmp.ne.s32.totalorder %s199, %s201
      %p205 = scmp.eq.s32.totalorder %s18, 0
      %p206 = por %p204, %p205
      %p207 = scmp.ne.s32.totalorder %s199, %s201
      %p208 = scmp.eq.s32.totalorder %s23, 1
      %p209 = por %p207, %p208
      %p210 = scmp.ne.s32.totalorder %s201, %s202
      %p211 = scmp.eq.s32.totalorder %s23, 0
      %p212 = por %p210, %p211
      %p213 = scmp.ne.s32.totalorder %s201, %s202
      %p214 = scmp.eq.s32.totalorder %s24, 1
      %p215 = por %p213, %p214
      %p217 = scmp.ne.s32.totalorder %s202, %s216
      %p218 = scmp.eq.s32.totalorder %s24, 0
      %p219 = por %p217, %p218
      %s220 = ssub.s32 %s18, %s25
      %p221 = scmp.eq.s32.totalorder %s220, 0
      %s223 = sadd.s32 %s222, 1
      %s224 = scalar_select %p221, %s222, %s223
      %p227 = pneg %p221
      %p228 = scmp.eq.s32.totalorder %s18, 1
      %p229 = por %p227, %p228
      %p230 = scmp.ne.s32.totalorder %s222, %s225
      %p231 = scmp.eq.s32.totalorder %s18, 0
      %p232 = por %p230, %p231
      %p233 = scmp.ne.s32.totalorder %s222, %s225
      %p234 = scmp.eq.s32.totalorder %s23, 1
      %p235 = por %p233, %p234
      %p236 = scmp.ne.s32.totalorder %s225, %s226
      %p237 = scmp.eq.s32.totalorder %s23, 0
      %p238 = por %p236, %p237
      %p239 = scmp.ne.s32.totalorder %s225, %s226
      %p240 = scmp.eq.s32.totalorder %s24, 1
      %p241 = por %p239, %p240
      %p243 = scmp.ne.s32.totalorder %s226, %s242
      %p244 = scmp.eq.s32.totalorder %s24, 0
      %p245 = por %p243, %p244
      %p246 = scmp.le.s32.totalorder 1, %s18
      %p247 = scmp.lt.s32.totalorder %s18, 3
      %p248 = pnand %p246, %p247
      %p249 = pneg %p248
      // Predicated region
      $region9: #{_lambda_.1} parent=5 // pred_check
        _
      $region10: #{_lambda_.1} parent=5 // pred_check_branch
        %251 = sbr.rel (%p248) target = $region12
      $region11: #{_lambda_.1} parent=5 // pred_region
        %s252 = ssub.s32 %s18, 1
        // Predicated region
        $region13: #{_lambda_.1} parent=11 // pred_check
          %p253 = pneg %p65
        $region14: #{_lambda_.1} parent=11 // pred_check_branch
          %255 = sbr.rel (%p253) target = $region16
        $region15: #{_lambda_.1} parent=11 // pred_region
          _
        $region16: #{_lambda_.1} parent=11 // pred_fallthru
          _
        // Predicated region
        $region17: #{_lambda_.1} parent=11 // pred_check
          %p256 = pneg %p86
        $region18: #{_lambda_.1} parent=11 // pred_check_branch
          %258 = sbr.rel (%p256) target = $region20
        $region19: #{_lambda_.1} parent=11 // pred_region
          _
        $region20: #{_lambda_.1} parent=11 // pred_fallthru
          _
        // Predicated region
        $region21: #{_lambda_.1} parent=11 // pred_check
          %p259 = pneg %p107
        $region22: #{_lambda_.1} parent=11 // pred_check_branch
          %261 = sbr.rel (%p259) target = $region24
        $region23: #{_lambda_.1} parent=11 // pred_region
          _
        $region24: #{_lambda_.1} parent=11 // pred_fallthru
          _
        // Predicated region
        $region25: #{_lambda_.1} parent=11 // pred_check
          %p262 = pneg %p128
        $region26: #{_lambda_.1} parent=11 // pred_check_branch
          %264 = sbr.rel (%p262) target = $region28
        $region27: #{_lambda_.1} parent=11 // pred_region
          _
        $region28: #{_lambda_.1} parent=11 // pred_fallthru
          _
        // Predicated region
        $region29: #{_lambda_.1} parent=11 // pred_check
          %p265 = pneg %p149
        $region30: #{_lambda_.1} parent=11 // pred_check_branch
          %267 = sbr.rel (%p265) target = $region32
        $region31: #{_lambda_.1} parent=11 // pred_region
          _
        $region32: #{_lambda_.1} parent=11 // pred_fallthru
          _
        // Predicated region
        $region33: #{_lambda_.1} parent=11 // pred_check
          %p268 = pneg %p170
        $region34: #{_lambda_.1} parent=11 // pred_check_branch
          %270 = sbr.rel (%p268) target = $region36
        $region35: #{_lambda_.1} parent=11 // pred_region
          _
        $region36: #{_lambda_.1} parent=11 // pred_fallthru
          _
        // Predicated region
        $region37: #{_lambda_.1} parent=11 // pred_check
          %p271 = pneg %p191
        $region38: #{_lambda_.1} parent=11 // pred_check_branch
          %273 = sbr.rel (%p271) target = $region40
        $region39: #{_lambda_.1} parent=11 // pred_region
          _
        $region40: #{_lambda_.1} parent=11 // pred_fallthru
          _
        // Predicated region
        $region41: #{_lambda_.1} parent=11 // pred_check
          %p274 = pneg %p212
        $region42: #{_lambda_.1} parent=11 // pred_check_branch
          %276 = sbr.rel (%p274) target = $region44
        $region43: #{_lambda_.1} parent=11 // pred_region
          _
        $region44: #{_lambda_.1} parent=11 // pred_fallthru
          _
      $region12: #{_lambda_.1} parent=5 // pred_fallthru
        _
      %p277 = scmp.lt.s32.totalorder %s18, 2
      // Predicated region
      $region45: #{_lambda_.1} parent=5 // pred_check
        %p278 = pneg %p277
      $region46: #{_lambda_.1} parent=5 // pred_check_branch
        %280 = sbr.rel (%p278) target = $region48
      $region47: #{_lambda_.1} parent=5 // pred_region
        // Predicated region
        $region49: #{_lambda_.1} parent=47 // pred_check
          %p281 = pneg %p38
        $region50: #{_lambda_.1} parent=47 // pred_check_branch
          %283 = sbr.rel (%p281) target = $region52
        $region51: #{_lambda_.1} parent=47 // pred_region
          %p284 = scmp.lt.s32.totalorder %s18, 1
          %s285 = scalar_select %p284, %s18, 1
          %s286 = smul.addr %s285, 50
          %s287 = smul.addr %s286, 8
          %s288 = scalar_lea.vmem %s0, %s287
        $region52: #{_lambda_.1} parent=47 // pred_fallthru
          _
      $region48: #{_lambda_.1} parent=5 // pred_fallthru
        _
      %p289 = scmp.le.s32.totalorder 1, %s18
      %p290 = scmp.lt.s32.totalorder %s18, 3
      %p291 = pnand %p289, %p290
      %p292 = pneg %p291
      // Predicated region
      $region53: #{_lambda_.1} parent=5 // pred_check
        _
      $region54: #{_lambda_.1} parent=5 // pred_check_branch
        %294 = sbr.rel (%p291) target = $region56
      $region55: #{_lambda_.1} parent=5 // pred_region
        %s295 = ssub.s32 %s18, 1
        %p296 = scmp.lt.s32.totalorder %s23, 1
        %s297 = scalar_select %p296, %s23, 1
        %s298 = smul.addr %s297, 50
        %s299 = smul.addr %s298, 8
        %s300 = scalar_lea.vmem %s0, %s299
        %p301 = pneg %p44
        %p302 = pneg %p41
        %p303 = pneg %p65
        %p304 = pneg %p62
        %p305 = pneg %p86
        %p306 = pneg %p83
        %p307 = pneg %p107
        %p308 = pneg %p104
        %p309 = pneg %p128
        %p310 = pneg %p125
        %p311 = pneg %p149
        %p312 = pneg %p146
        %p313 = pneg %p170
        %p314 = pneg %p167
        %p315 = pneg %p191
        %p316 = pneg %p188
        %p317 = pneg %p212
        %p318 = pneg %p209
        %p319 = pneg %p238
        %p320 = pneg %p235
        %s321 = sand.u32 %s225, 1
        %s322 = scalar_lea.sflag [#allocation3], %s321
        %s323 = sand.u32 %s225, 1
        %s324 = scalar_lea.vmem [#allocation2], %s323
        %p325 = scmp.lt.s32.totalorder %s23, 1
        %s326 = scalar_select %p325, %s23, 1
        %s327 = smul.addr %s326, 50
        %s328 = smul.addr %s327, 8
        %s329 = scalar_lea.vmem %s0, %s328
        %v330 = vld [vmem:[%s329] sm:$0xff]
        %v331 = vld [vmem:[%s329 + $0x8] sm:$0xff]
        %v332 = vld [vmem:[%s329 + $0x10] sm:$0xff]
        %v333 = vld [vmem:[%s329 + $0x18] sm:$0xff]
        %v334 = vld [vmem:[%s329 + $0x20] sm:$0xff]
        %v335 = vld [vmem:[%s329 + $0x28] sm:$0xff]
        %v336 = vld [vmem:[%s329 + $0x30] sm:$0xff]
        %v337 = vld [vmem:[%s329 + $0x38] sm:$0xff]
        %v338 = vld [vmem:[%s329 + $0x40] sm:$0xff]
        %v339 = vld [vmem:[%s329 + $0x48] sm:$0xff]
        %v340 = vld [vmem:[%s329 + $0x50] sm:$0xff]
        %v341 = vld [vmem:[%s329 + $0x58] sm:$0xff]
        %v342 = vld [vmem:[%s329 + $0x60] sm:$0xff]
        %v343 = vld [vmem:[%s329 + $0x68] sm:$0xff]
        %v344 = vld [vmem:[%s329 + $0x70] sm:$0xff]
        %v345 = vld [vmem:[%s329 + $0x78] sm:$0xff]
        %v346 = vld [vmem:[%s329 + $0x80] sm:$0xff]
        %v347 = vld [vmem:[%s329 + $0x88] sm:$0xff]
        %v348 = vld [vmem:[%s329 + $0x90] sm:$0xff]
        %v349 = vld [vmem:[%s329 + $0x98] sm:$0xff]
        %v350 = vld [vmem:[%s329 + $0xa0] sm:$0xff]
        %v351 = vld [vmem:[%s329 + $0xa8] sm:$0xff]
        %v352 = vld [vmem:[%s329 + $0xb0] sm:$0xff]
        %v353 = vld [vmem:[%s329 + $0xb8] sm:$0xff]
        %v354 = vld [vmem:[%s329 + $0xc0] sm:$0xff]
        %v355 = vld [vmem:[%s329 + $0xc8] sm:$0xff]
        %v356 = vld [vmem:[%s329 + $0xd0] sm:$0xff]
        %v357 = vld [vmem:[%s329 + $0xd8] sm:$0xff]
        %v358 = vld [vmem:[%s329 + $0xe0] sm:$0xff]
        %v359 = vld [vmem:[%s329 + $0xe8] sm:$0xff]
        %v360 = vld [vmem:[%s329 + $0xf0] sm:$0xff]
        %v361 = vld [vmem:[%s329 + $0xf8] sm:$0xff]
        %v362 = vld [vmem:[%s329 + $0x100] sm:$0xff]
        %v363 = vld [vmem:[%s329 + $0x108] sm:$0xff]
        %v364 = vld [vmem:[%s329 + $0x110] sm:$0xff]
        %v365 = vld [vmem:[%s329 + $0x118] sm:$0xff]
        %v366 = vld [vmem:[%s329 + $0x120] sm:$0xff]
        %v367 = vld [vmem:[%s329 + $0x128] sm:$0xff]
        %v368 = vld [vmem:[%s329 + $0x130] sm:$0xff]
        %v369 = vld [vmem:[%s329 + $0x138] sm:$0xff]
        %v370 = vld [vmem:[%s329 + $0x140] sm:$0xff]
        %v371 = vld [vmem:[%s329 + $0x148] sm:$0xff]
        %v372 = vld [vmem:[%s329 + $0x150] sm:$0xff]
        %v373 = vld [vmem:[%s329 + $0x158] sm:$0xff]
        %v374 = vld [vmem:[%s329 + $0x160] sm:$0xff]
        %v375 = vld [vmem:[%s329 + $0x168] sm:$0xff]
        %v376 = vld [vmem:[%s329 + $0x170] sm:$0xff]
        %v377 = vld [vmem:[%s329 + $0x178] sm:$0xff]
        %v378 = vld [vmem:[%s329 + $0x180] sm:$0xf]
        %v379 = vld [vmem:[%s329 + $0x188] sm:$0xf]
        %v380 = vld [vmem:[%s1] sm:$0xff]
        %v381 = vld [vmem:[%s1 + $0x8] sm:$0xff]
        %v382 = vld [vmem:[%s1 + $0x10] sm:$0xff]
        %v383 = vld [vmem:[%s1 + $0x18] sm:$0xff]
        %v384 = vld [vmem:[%s1 + $0x20] sm:$0xff]
        %v385 = vld [vmem:[%s1 + $0x28] sm:$0xff]
        %v386 = vld [vmem:[%s1 + $0x30] sm:$0xff]
        %v387 = vld [vmem:[%s1 + $0x38] sm:$0xff]
        %v388 = vld [vmem:[%s1 + $0x40] sm:$0xff]
        %v389 = vld [vmem:[%s1 + $0x48] sm:$0xff]
        %v390 = vld [vmem:[%s1 + $0x50] sm:$0xff]
        %v391 = vld [vmem:[%s1 + $0x58] sm:$0xff]
        %v392 = vld [vmem:[%s1 + $0x60] sm:$0xff]
        %v393 = vld [vmem:[%s1 + $0x68] sm:$0xff]
        %v394 = vld [vmem:[%s1 + $0x70] sm:$0xff]
        %v395 = vld [vmem:[%s1 + $0x78] sm:$0xff]
        %v396 = vld [vmem:[%s1 + $0x80] sm:$0xff]
        %v397 = vld [vmem:[%s1 + $0x88] sm:$0xff]
        %v398 = vld [vmem:[%s1 + $0x90] sm:$0xff]
        %v399 = vld [vmem:[%s1 + $0x98] sm:$0xff]
        %v400 = vld [vmem:[%s1 + $0xa0] sm:$0xff]
        %v401 = vld [vmem:[%s1 + $0xa8] sm:$0xff]
        %v402 = vld [vmem:[%s1 + $0xb0] sm:$0xff]
        %v403 = vld [vmem:[%s1 + $0xb8] sm:$0xff]
        %v404 = vld [vmem:[%s1 + $0xc0] sm:$0xff]
        %v405 = vld [vmem:[%s1 + $0xc8] sm:$0xff]
        %v406 = vld [vmem:[%s1 + $0xd0] sm:$0xff]
        %v407 = vld [vmem:[%s1 + $0xd8] sm:$0xff]
        %v408 = vld [vmem:[%s1 + $0xe0] sm:$0xff]
        %v409 = vld [vmem:[%s1 + $0xe8] sm:$0xff]
        %v410 = vld [vmem:[%s1 + $0xf0] sm:$0xff]
        %v411 = vld [vmem:[%s1 + $0xf8] sm:$0xff]
        %v412 = vld [vmem:[%s2] sm:$0x1]
        %v414 = vlaneseq
        %v415 = vshrl.u32 %v414, 7
        %v416 = vsub.s32 0, %v415
        %v417 = vrot.slane %v412, %v416
        %419 = vmatprep.subr.mxu0 0.0
        %420 = vmatpush1.msra.mxu0 %v380
        %421 = vmatprep.subr.mxu0 0.0
        %422 = vmatpush1.msra.mxu0 %v381
        %423 = vmatprep.subr.mxu0 0.0
        %424 = vmatpush1.msra.mxu0 %v382
        %425 = vmatprep.subr.mxu0 0.0
        %426 = vmatpush1.msra.mxu0 %v383
        %427 = vmatprep.subr.mxu0 0.0
        %428 = vmatpush1.msra.mxu0 %v384
        %429 = vmatprep.subr.mxu0 0.0
        %430 = vmatpush1.msra.mxu0 %v385
        %431 = vmatprep.subr.mxu0 0.0
        %432 = vmatpush1.msra.mxu0 %v386
        %433 = vmatprep.subr.mxu0 0.0
        %434 = vmatpush1.msra.mxu0 %v387
        %435 = vmatprep.subr.mxu0 0.0
        %436 = vmatpush1.msra.mxu0 %v388
        %437 = vmatprep.subr.mxu0 0.0
        %438 = vmatpush1.msra.mxu0 %v389
        %439 = vmatprep.subr.mxu0 0.0
        %440 = vmatpush1.msra.mxu0 %v390
        %441 = vmatprep.subr.mxu0 0.0
        %442 = vmatpush1.msra.mxu0 %v391
        %443 = vmatprep.subr.mxu0 0.0
        %444 = vmatpush1.msra.mxu0 %v392
        %445 = vmatprep.subr.mxu0 0.0
        %446 = vmatpush1.msra.mxu0 %v393
        %447 = vmatprep.subr.mxu0 0.0
        %448 = vmatpush1.msra.mxu0 %v394
        %449 = vmatprep.subr.mxu0 0.0
        %450 = vmatpush1.msra.mxu0 %v395
        %451 = vmatprep.subr.mxu0 0.0
        %452 = vmatpush1.msra.mxu0 %v396
        %453 = vmatprep.subr.mxu0 0.0
        %454 = vmatpush1.msra.mxu0 %v397
        %455 = vmatprep.subr.mxu0 0.0
        %456 = vmatpush1.msra.mxu0 %v398
        %457 = vmatprep.subr.mxu0 0.0
        %458 = vmatpush1.msra.mxu0 %v399
        %459 = vmatprep.subr.mxu0 0.0
        %460 = vmatpush1.msra.mxu0 %v400
        %461 = vmatprep.subr.mxu0 0.0
        %462 = vmatpush1.msra.mxu0 %v401
        %463 = vmatprep.subr.mxu0 0.0
        %464 = vmatpush1.msra.mxu0 %v402
        %465 = vmatprep.subr.mxu0 0.0
        %466 = vmatpush1.msra.mxu0 %v403
        %467 = vmatprep.subr.mxu0 0.0
        %468 = vmatpush1.msra.mxu0 %v404
        %469 = vmatprep.subr.mxu0 0.0
        %470 = vmatpush1.msra.mxu0 %v405
        %471 = vmatprep.subr.mxu0 0.0
        %472 = vmatpush1.msra.mxu0 %v406
        %473 = vmatprep.subr.mxu0 0.0
        %474 = vmatpush1.msra.mxu0 %v407
        %475 = vmatprep.subr.mxu0 0.0
        %476 = vmatpush1.msra.mxu0 %v408
        %477 = vmatprep.subr.mxu0 0.0
        %478 = vmatpush1.msra.mxu0 %v409
        %479 = vmatprep.subr.mxu0 0.0
        %480 = vmatpush1.msra.mxu0 %v410
        %481 = vmatprep.subr.mxu0 0.0
        %482 = vmatpush1.msra.mxu0 %v411
        %483 = vmatprep.mubr.f32.mxu0 %v331
        %484 = vmatmul.mubr.f32.gmra.mrb[0].mxu0 %v330
        %v485 = vpop.f32.mrb[0].mxu0
        %v486 = vadd.f32 %v417, %v485
        %v487 = vpop.f32.mrb[0].mxu0
        %488 = vmatprep.mubr.f32.mxu0 %v333
        %489 = vmatmul.mubr.f32.gmra.mrb[0].mxu0 %v332
        %v490 = vpop.f32.mrb[0].mxu0
        %v491 = vadd.f32 %v417, %v490
        %v492 = vpop.f32.mrb[0].mxu0
        %493 = vmatprep.mubr.f32.mxu0 %v335
        %494 = vmatmul.mubr.f32.gmra.mrb[0].mxu0 %v334
        %v495 = vpop.f32.mrb[0].mxu0
        %v496 = vadd.f32 %v417, %v495
        %v497 = vpop.f32.mrb[0].mxu0
        %498 = vmatprep.mubr.f32.mxu0 %v337
        %499 = vmatmul.mubr.f32.gmra.mrb[0].mxu0 %v336
        %v500 = vpop.f32.mrb[0].mxu0
        %v501 = vadd.f32 %v417, %v500
        %v502 = vpop.f32.mrb[0].mxu0
        %503 = vmatprep.mubr.f32.mxu0 %v339
        %504 = vmatmul.mubr.f32.gmra.mrb[0].mxu0 %v338
        %v505 = vpop.f32.mrb[0].mxu0
        %v506 = vadd.f32 %v417, %v505
        %v507 = vpop.f32.mrb[0].mxu0
        %508 = vmatprep.mubr.f32.mxu0 %v341
        %509 = vmatmul.mubr.f32.gmra.mrb[0].mxu0 %v340
        %v510 = vpop.f32.mrb[0].mxu0
        %v511 = vadd.f32 %v417, %v510
        %v512 = vpop.f32.mrb[0].mxu0
        %513 = vmatprep.mubr.f32.mxu0 %v343
        %514 = vmatmul.mubr.f32.gmra.mrb[0].mxu0 %v342
        %v515 = vpop.f32.mrb[0].mxu0
        %v516 = vadd.f32 %v417, %v515
        %v517 = vpop.f32.mrb[0].mxu0
        %518 = vmatprep.mubr.f32.mxu0 %v345
        %519 = vmatmul.mubr.f32.gmra.mrb[0].mxu0 %v344
        %v520 = vpop.f32.mrb[0].mxu0
        %v521 = vadd.f32 %v417, %v520
        %v522 = vpop.f32.mrb[0].mxu0
        %523 = vmatprep.mubr.f32.mxu0 %v347
        %524 = vmatmul.mubr.f32.gmra.mrb[0].mxu0 %v346
        %v525 = vpop.f32.mrb[0].mxu0
        %v526 = vadd.f32 %v417, %v525
        %v527 = vpop.f32.mrb[0].mxu0
        %528 = vmatprep.mubr.f32.mxu0 %v349
        %529 = vmatmul.mubr.f32.gmra.mrb[0].mxu0 %v348
        %v530 = vpop.f32.mrb[0].mxu0
        %v531 = vadd.f32 %v417, %v530
        %v532 = vpop.f32.mrb[0].mxu0
        %533 = vmatprep.mubr.f32.mxu0 %v351
        %534 = vmatmul.mubr.f32.gmra.mrb[0].mxu0 %v350
        %v535 = vpop.f32.mrb[0].mxu0
        %v536 = vadd.f32 %v417, %v535
        %v537 = vpop.f32.mrb[0].mxu0
        %538 = vmatprep.mubr.f32.mxu0 %v353
        %539 = vmatmul.mubr.f32.gmra.mrb[0].mxu0 %v352
        %v540 = vpop.f32.mrb[0].mxu0
        %v541 = vadd.f32 %v417, %v540
        %v542 = vpop.f32.mrb[0].mxu0
        %543 = vmatprep.mubr.f32.mxu0 %v355
        %544 = vmatmul.mubr.f32.gmra.mrb[0].mxu0 %v354
        %v545 = vpop.f32.mrb[0].mxu0
        %v546 = vadd.f32 %v417, %v545
        %v547 = vpop.f32.mrb[0].mxu0
        %548 = vmatprep.mubr.f32.mxu0 %v357
        %549 = vmatmul.mubr.f32.gmra.mrb[0].mxu0 %v356
        %v550 = vpop.f32.mrb[0].mxu0
        %v551 = vadd.f32 %v417, %v550
        %v552 = vpop.f32.mrb[0].mxu0
        %553 = vmatprep.mubr.f32.mxu0 %v359
        %554 = vmatmul.mubr.f32.gmra.mrb[0].mxu0 %v358
        %v555 = vpop.f32.mrb[0].mxu0
        %v556 = vadd.f32 %v417, %v555
        %v557 = vpop.f32.mrb[0].mxu0
        %558 = vmatprep.mubr.f32.mxu0 %v361
        %559 = vmatmul.mubr.f32.gmra.mrb[0].mxu0 %v360
        %v560 = vpop.f32.mrb[0].mxu0
        %v561 = vadd.f32 %v417, %v560
        %v562 = vpop.f32.mrb[0].mxu0
        %563 = vmatprep.mubr.f32.mxu0 %v363
        %564 = vmatmul.mubr.f32.gmra.mrb[0].mxu0 %v362
        %v565 = vpop.f32.mrb[0].mxu0
        %v566 = vadd.f32 %v417, %v565
        %v567 = vpop.f32.mrb[0].mxu0
        %568 = vmatprep.mubr.f32.mxu0 %v365
        %569 = vmatmul.mubr.f32.gmra.mrb[0].mxu0 %v364
        %v570 = vpop.f32.mrb[0].mxu0
        %v571 = vadd.f32 %v417, %v570
        %v572 = vpop.f32.mrb[0].mxu0
        %573 = vmatprep.mubr.f32.mxu0 %v367
        %574 = vmatmul.mubr.f32.gmra.mrb[0].mxu0 %v366
        %v575 = vpop.f32.mrb[0].mxu0
        %v576 = vadd.f32 %v417, %v575
        %v577 = vpop.f32.mrb[0].mxu0
        %578 = vmatprep.mubr.f32.mxu0 %v369
        %579 = vmatmul.mubr.f32.gmra.mrb[0].mxu0 %v368
        %v580 = vpop.f32.mrb[0].mxu0
        %v581 = vadd.f32 %v417, %v580
        %v582 = vpop.f32.mrb[0].mxu0
        %583 = vmatprep.mubr.f32.mxu0 %v371
        %584 = vmatmul.mubr.f32.gmra.mrb[0].mxu0 %v370
        %v585 = vpop.f32.mrb[0].mxu0
        %v586 = vadd.f32 %v417, %v585
        %v587 = vpop.f32.mrb[0].mxu0
        %588 = vmatprep.mubr.f32.mxu0 %v373
        %589 = vmatmul.mubr.f32.gmra.mrb[0].mxu0 %v372
        %v590 = vpop.f32.mrb[0].mxu0
        %v591 = vadd.f32 %v417, %v590
        %v592 = vpop.f32.mrb[0].mxu0
        %593 = vmatprep.mubr.f32.mxu0 %v375
        %594 = vmatmul.mubr.f32.gmra.mrb[0].mxu0 %v374
        %v595 = vpop.f32.mrb[0].mxu0
        %v596 = vadd.f32 %v417, %v595
        %v597 = vpop.f32.mrb[0].mxu0
        %598 = vmatprep.mubr.f32.mxu0 %v377
        %599 = vmatmul.mubr.f32.gmra.mrb[0].mxu0 %v376
        %v600 = vpop.f32.mrb[0].mxu0
        %v601 = vadd.f32 %v417, %v600
        %v602 = vpop.f32.mrb[0].mxu0
        %603 = vmatprep.mubr.f32.mxu0 %v379
        %604 = vmatmul.mubr.f32.gmra.mrb[0].mxu0 %v378
        %v605 = vpop.f32.mrb[0].mxu0
        %v606 = vadd.f32 %v417, %v605
        %v607 = vpop.f32.mrb[0].mxu0
        %608 = vdwg.mxu0
        %v609 = vmax.f32 %v486, 0.0
        %v610 = vmax.f32 %v491, 0.0
        %v611 = vmax.f32 %v496, 0.0
        %v612 = vmax.f32 %v501, 0.0
        %v613 = vmax.f32 %v506, 0.0
        %v614 = vmax.f32 %v511, 0.0
        %v615 = vmax.f32 %v516, 0.0
        %v616 = vmax.f32 %v521, 0.0
        %v617 = vmax.f32 %v526, 0.0
        %v618 = vmax.f32 %v531, 0.0
        %v619 = vmax.f32 %v536, 0.0
        %v620 = vmax.f32 %v541, 0.0
        %v621 = vmax.f32 %v546, 0.0
        %v622 = vmax.f32 %v551, 0.0
        %v623 = vmax.f32 %v556, 0.0
        %v624 = vmax.f32 %v561, 0.0
        %v625 = vmax.f32 %v566, 0.0
        %v626 = vmax.f32 %v571, 0.0
        %v627 = vmax.f32 %v576, 0.0
        %v628 = vmax.f32 %v581, 0.0
        %v629 = vmax.f32 %v586, 0.0
        %v630 = vmax.f32 %v591, 0.0
        %v631 = vmax.f32 %v596, 0.0
        %v632 = vmax.f32 %v601, 0.0
        %v633 = vmax.f32 %v606, 0.0
        %v634 = vld [vmem:[%s3] sm:$0xff]
        %v635 = vld [vmem:[%s3 + $0x8] sm:$0xff]
        %v636 = vld [vmem:[%s3 + $0x10] sm:$0xff]
        %v637 = vld [vmem:[%s3 + $0x18] sm:$0xff]
        %v638 = vld [vmem:[%s3 + $0x20] sm:$0xff]
        %v639 = vld [vmem:[%s3 + $0x28] sm:$0xff]
        %v640 = vld [vmem:[%s3 + $0x30] sm:$0xff]
        %v641 = vld [vmem:[%s3 + $0x38] sm:$0xff]
        %v642 = vld [vmem:[%s3 + $0x40] sm:$0xff]
        %v643 = vld [vmem:[%s3 + $0x48] sm:$0xff]
        %v644 = vld [vmem:[%s3 + $0x50] sm:$0xff]
        %v645 = vld [vmem:[%s3 + $0x58] sm:$0xff]
        %v646 = vld [vmem:[%s3 + $0x60] sm:$0x1]
        %v647 = vld [vmem:[%s3 + $0x68] sm:$0x1]
        %vm648 = vcmask 556032
        %v650 = vsel %vm648, %v635, 0
        %v653 = vsel %vm648, %v637, 0
        %v656 = vsel %vm648, %v639, 0
        %v659 = vsel %vm648, %v641, 0
        %v662 = vsel %vm648, %v643, 0
        %v665 = vsel %vm648, %v645, 0
        %v668 = vsel %vm648, %v647, 0
        %vm670 = vcmask 1043456
        %v672 = vsel %vm670, %v633, 0
        %674 = vmatprep.subr.mxu0 0.0
        %675 = vmatpush1.msra.mxu0 %v609
        %676 = vmatprep.subr.mxu0 0.0
        %677 = vmatpush1.msra.mxu0 %v610
        %678 = vmatprep.subr.mxu0 0.0
        %679 = vmatpush1.msra.mxu0 %v611
        %680 = vmatprep.subr.mxu0 0.0
        %681 = vmatpush1.msra.mxu0 %v612
        %682 = vmatprep.subr.mxu0 0.0
        %683 = vmatpush1.msra.mxu0 %v613
        %684 = vmatprep.subr.mxu0 0.0
        %685 = vmatpush1.msra.mxu0 %v614
        %686 = vmatprep.subr.mxu0 0.0
        %687 = vmatpush1.msra.mxu0 %v615
        %688 = vmatprep.subr.mxu0 0.0
        %689 = vmatpush1.msra.mxu0 %v616
        %690 = vmatprep.subr.mxu0 0.0
        %691 = vmatpush1.msra.mxu0 %v617
        %692 = vmatprep.subr.mxu0 0.0
        %693 = vmatpush1.msra.mxu0 %v618
        %694 = vmatprep.subr.mxu0 0.0
        %695 = vmatpush1.msra.mxu0 %v619
        %696 = vmatprep.subr.mxu0 0.0
        %697 = vmatpush1.msra.mxu0 %v620
        %698 = vmatprep.subr.mxu0 0.0
        %699 = vmatpush1.msra.mxu0 %v621
        %700 = vmatprep.subr.mxu0 0.0
        %701 = vmatpush1.msra.mxu0 %v622
        %702 = vmatprep.subr.mxu0 0.0
        %703 = vmatpush1.msra.mxu0 %v623
        %704 = vmatprep.subr.mxu0 0.0
        %705 = vmatpush1.msra.mxu0 %v624
        %706 = vmatprep.subr.mxu0 0.0
        %707 = vmatpush1.msra.mxu0 %v625
        %708 = vmatprep.subr.mxu0 0.0
        %709 = vmatpush1.msra.mxu0 %v626
        %710 = vmatprep.subr.mxu0 0.0
        %711 = vmatpush1.msra.mxu0 %v627
        %712 = vmatprep.subr.mxu0 0.0
        %713 = vmatpush1.msra.mxu0 %v628
        %714 = vmatprep.subr.mxu0 0.0
        %715 = vmatpush1.msra.mxu0 %v629
        %716 = vmatprep.subr.mxu0 0.0
        %717 = vmatpush1.msra.mxu0 %v630
        %718 = vmatprep.subr.mxu0 0.0
        %719 = vmatpush1.msra.mxu0 %v631
        %720 = vmatprep.subr.mxu0 0.0
        %721 = vmatpush1.msra.mxu0 %v632
        %722 = vmatprep.subr.mxu0 0.0
        %723 = vmatpush1.msra.mxu0 %v672
        %724 = vmatprep.subr.mxu0 0.0
        %725 = vmatpush1.msra.mxu0 0.0
        %726 = vmatprep.subr.mxu0 0.0
        %727 = vmatpush1.msra.mxu0 0.0
        %728 = vmatprep.subr.mxu0 0.0
        %729 = vmatpush1.msra.mxu0 0.0
        %730 = vmatprep.subr.mxu0 0.0
        %731 = vmatpush1.msra.mxu0 0.0
        %732 = vmatprep.subr.mxu0 0.0
        %733 = vmatpush1.msra.mxu0 0.0
        %734 = vmatprep.subr.mxu0 0.0
        %735 = vmatpush1.msra.mxu0 0.0
        %736 = vmatprep.subr.mxu0 0.0
        %737 = vmatpush1.msra.mxu0 0.0
        %738 = vmatprep.mubr.f32.mxu0 %v650
        %739 = vmatmul.mubr.f32.gmra.mrb[0].mxu0 %v634
        %v740 = vpop.f32.mrb[0].mxu0
        %v741 = vadd.f32 0.0, %v740
        %v742 = vpop.f32.mrb[0].mxu0
        %743 = vmatprep.mubr.f32.mxu0 %v653
        %744 = vmatmul.mubr.f32.gmra.mrb[0].mxu0 %v636
        %v745 = vpop.f32.mrb[0].mxu0
        %v746 = vadd.f32 0.0, %v745
        %v747 = vpop.f32.mrb[0].mxu0
        %748 = vmatprep.mubr.f32.mxu0 %v656
        %749 = vmatmul.mubr.f32.gmra.mrb[0].mxu0 %v638
        %v750 = vpop.f32.mrb[0].mxu0
        %v751 = vadd.f32 0.0, %v750
        %v752 = vpop.f32.mrb[0].mxu0
        %753 = vmatprep.mubr.f32.mxu0 %v659
        %754 = vmatmul.mubr.f32.gmra.mrb[0].mxu0 %v640
        %v755 = vpop.f32.mrb[0].mxu0
        %v756 = vadd.f32 0.0, %v755
        %v757 = vpop.f32.mrb[0].mxu0
        %758 = vmatprep.mubr.f32.mxu0 %v662
        %759 = vmatmul.mubr.f32.gmra.mrb[0].mxu0 %v642
        %v760 = vpop.f32.mrb[0].mxu0
        %v761 = vadd.f32 0.0, %v760
        %v762 = vpop.f32.mrb[0].mxu0
        %763 = vmatprep.mubr.f32.mxu0 %v665
        %764 = vmatmul.mubr.f32.gmra.mrb[0].mxu0 %v644
        %v765 = vpop.f32.mrb[0].mxu0
        %v766 = vadd.f32 0.0, %v765
        %v767 = vpop.f32.mrb[0].mxu0
        %768 = vmatprep.mubr.f32.mxu0 %v668
        %769 = vmatmul.mubr.f32.gmra.mrb[0].mxu0 %v646
        %v770 = vpop.f32.mrb[0].mxu0
        %v771 = vadd.f32 0.0, %v770
        %v772 = vpop.f32.mrb[0].mxu0
        %773 = vdwg.mxu0
        %v774 = vld [vmem:[%s4] sm:$0xff]
        %v775 = vld [vmem:[%s4 + $0x8] sm:$0xff]
        %v776 = vld [vmem:[%s4 + $0x10] sm:$0xff]
        %v777 = vld [vmem:[%s4 + $0x18] sm:$0xff]
        %s778 = scalar_lea.vmem %s3, 112
        %v779 = vld [vmem:[%s778] sm:$0xff]
        %v780 = vld [vmem:[%s778 + $0x8] sm:$0xff]
        %v781 = vld [vmem:[%s778 + $0x10] sm:$0xff]
        %v782 = vld [vmem:[%s778 + $0x18] sm:$0xff]
        %v783 = vld [vmem:[%s778 + $0x20] sm:$0xff]
        %v784 = vld [vmem:[%s778 + $0x28] sm:$0xff]
        %v785 = vld [vmem:[%s778 + $0x30] sm:$0xff]
        %v786 = vld [vmem:[%s778 + $0x38] sm:$0xff]
        %v787 = vld [vmem:[%s778 + $0x40] sm:$0xff]
        %v788 = vld [vmem:[%s778 + $0x48] sm:$0xff]
        %v789 = vld [vmem:[%s778 + $0x50] sm:$0xff]
        %v790 = vld [vmem:[%s778 + $0x58] sm:$0xff]
        %v791 = vld [vmem:[%s778 + $0x60] sm:$0x1]
        %v792 = vld [vmem:[%s778 + $0x68] sm:$0x1]
        %v794 = vsel %vm648, %v780, 0
        %v797 = vsel %vm648, %v782, 0
        %v800 = vsel %vm648, %v784, 0
        %v803 = vsel %vm648, %v786, 0
        %v806 = vsel %vm648, %v788, 0
        %v809 = vsel %vm648, %v790, 0
        %v812 = vsel %vm648, %v792, 0
        %814 = vmatprep.subr.mxu0 0.0
        %815 = vmatpush1.msra.mxu0 %v609
        %816 = vmatprep.subr.mxu0 0.0
        %817 = vmatpush1.msra.mxu0 %v610
        %818 = vmatprep.subr.mxu0 0.0
        %819 = vmatpush1.msra.mxu0 %v611
        %820 = vmatprep.subr.mxu0 0.0
        %821 = vmatpush1.msra.mxu0 %v612
        %822 = vmatprep.subr.mxu0 0.0
        %823 = vmatpush1.msra.mxu0 %v613
        %824 = vmatprep.subr.mxu0 0.0
        %825 = vmatpush1.msra.mxu0 %v614
        %826 = vmatprep.subr.mxu0 0.0
        %827 = vmatpush1.msra.mxu0 %v615
        %828 = vmatprep.subr.mxu0 0.0
        %829 = vmatpush1.msra.mxu0 %v616
        %830 = vmatprep.subr.mxu0 0.0
        %831 = vmatpush1.msra.mxu0 %v617
        %832 = vmatprep.subr.mxu0 0.0
        %833 = vmatpush1.msra.mxu0 %v618
        %834 = vmatprep.subr.mxu0 0.0
        %835 = vmatpush1.msra.mxu0 %v619
        %836 = vmatprep.subr.mxu0 0.0
        %837 = vmatpush1.msra.mxu0 %v620
        %838 = vmatprep.subr.mxu0 0.0
        %839 = vmatpush1.msra.mxu0 %v621
        %840 = vmatprep.subr.mxu0 0.0
        %841 = vmatpush1.msra.mxu0 %v622
        %842 = vmatprep.subr.mxu0 0.0
        %843 = vmatpush1.msra.mxu0 %v623
        %844 = vmatprep.subr.mxu0 0.0
        %845 = vmatpush1.msra.mxu0 %v624
        %846 = vmatprep.subr.mxu0 0.0
        %847 = vmatpush1.msra.mxu0 %v625
        %848 = vmatprep.subr.mxu0 0.0
        %849 = vmatpush1.msra.mxu0 %v626
        %850 = vmatprep.subr.mxu0 0.0
        %851 = vmatpush1.msra.mxu0 %v627
        %852 = vmatprep.subr.mxu0 0.0
        %853 = vmatpush1.msra.mxu0 %v628
        %854 = vmatprep.subr.mxu0 0.0
        %855 = vmatpush1.msra.mxu0 %v629
        %856 = vmatprep.subr.mxu0 0.0
        %857 = vmatpush1.msra.mxu0 %v630
        %858 = vmatprep.subr.mxu0 0.0
        %859 = vmatpush1.msra.mxu0 %v631
        %860 = vmatprep.subr.mxu0 0.0
        %861 = vmatpush1.msra.mxu0 %v632
        %862 = vmatprep.subr.mxu0 0.0
        %863 = vmatpush1.msra.mxu0 %v672
        %864 = vmatprep.subr.mxu0 0.0
        %865 = vmatpush1.msra.mxu0 0.0
        %866 = vmatprep.subr.mxu0 0.0
        %867 = vmatpush1.msra.mxu0 0.0
        %868 = vmatprep.subr.mxu0 0.0
        %869 = vmatpush1.msra.mxu0 0.0
        %870 = vmatprep.subr.mxu0 0.0
        %871 = vmatpush1.msra.mxu0 0.0
        %872 = vmatprep.subr.mxu0 0.0
        %873 = vmatpush1.msra.mxu0 0.0
        %874 = vmatprep.subr.mxu0 0.0
        %875 = vmatpush1.msra.mxu0 0.0
        %876 = vmatprep.subr.mxu0 0.0
        %877 = vmatpush1.msra.mxu0 0.0
        %878 = vmatprep.mubr.f32.mxu0 %v794
        %879 = vmatmul.mubr.f32.gmra.mrb[0].mxu0 %v779
        %v880 = vpop.f32.mrb[0].mxu0
        %v881 = vadd.f32 0.0, %v880
        %v882 = vpop.f32.mrb[0].mxu0
        %883 = vmatprep.mubr.f32.mxu0 %v797
        %884 = vmatmul.mubr.f32.gmra.mrb[0].mxu0 %v781
        %v885 = vpop.f32.mrb[0].mxu0
        %v886 = vadd.f32 0.0, %v885
        %v887 = vpop.f32.mrb[0].mxu0
        %888 = vmatprep.mubr.f32.mxu0 %v800
        %889 = vmatmul.mubr.f32.gmra.mrb[0].mxu0 %v783
        %v890 = vpop.f32.mrb[0].mxu0
        %v891 = vadd.f32 0.0, %v890
        %v892 = vpop.f32.mrb[0].mxu0
        %893 = vmatprep.mubr.f32.mxu0 %v803
        %894 = vmatmul.mubr.f32.gmra.mrb[0].mxu0 %v785
        %v895 = vpop.f32.mrb[0].mxu0
        %v896 = vadd.f32 0.0, %v895
        %v897 = vpop.f32.mrb[0].mxu0
        %898 = vmatprep.mubr.f32.mxu0 %v806
        %899 = vmatmul.mubr.f32.gmra.mrb[0].mxu0 %v787
        %v900 = vpop.f32.mrb[0].mxu0
        %v901 = vadd.f32 0.0, %v900
        %v902 = vpop.f32.mrb[0].mxu0
        %903 = vmatprep.mubr.f32.mxu0 %v809
        %904 = vmatmul.mubr.f32.gmra.mrb[0].mxu0 %v789
        %v905 = vpop.f32.mrb[0].mxu0
        %v906 = vadd.f32 0.0, %v905
        %v907 = vpop.f32.mrb[0].mxu0
        %908 = vmatprep.mubr.f32.mxu0 %v812
        %909 = vmatmul.mubr.f32.gmra.mrb[0].mxu0 %v791
        %v910 = vpop.f32.mrb[0].mxu0
        %v911 = vadd.f32 0.0, %v910
        %v912 = vpop.f32.mrb[0].mxu0
        %913 = vdwg.mxu0
        %s914 = scalar_lea.vmem %s4, 32
        %v915 = vld [vmem:[%s914] sm:$0xff]
        %v916 = vld [vmem:[%s914 + $0x8] sm:$0xff]
        %v917 = vld [vmem:[%s914 + $0x10] sm:$0xff]
        %v918 = vld [vmem:[%s914 + $0x18] sm:$0xff]
        %vm919 = vcmask 261120
        %v921 = vsel %vm919, %v881, 0
        %v924 = vsel %vm919, %v886, 0
        %v927 = vsel %vm919, %v891, 0
        %v930 = vsel %vm919, %v896, 0
        %v933 = vsel %vm919, %v901, 0
        %v936 = vsel %vm919, %v906, 0
        %v939 = vsel %vm919, %v911, 0
        %941 = vmatprep.subr.mxu0 0.0
        %942 = vmatpush1.msra.mxu0 %v915
        %943 = vmatprep.subr.mxu0 0.0
        %944 = vmatpush1.msra.mxu0 %v916
        %945 = vmatprep.subr.mxu0 0.0
        %946 = vmatpush1.msra.mxu0 %v917
        %947 = vmatprep.subr.mxu0 0.0
        %948 = vmatpush1.msra.mxu0 %v918
        %949 = vmatprep.subr.mxu0 0.0
        %950 = vmatpush1.msra.mxu0 0.0
        %951 = vmatprep.subr.mxu0 0.0
        %952 = vmatpush1.msra.mxu0 0.0
        %953 = vmatprep.subr.mxu0 0.0
        %954 = vmatpush1.msra.mxu0 0.0
        %955 = vmatprep.subr.mxu0 0.0
        %956 = vmatpush1.msra.mxu0 0.0
        %957 = vmatprep.subr.mxu0 0.0
        %958 = vmatpush1.msra.mxu0 0.0
        %959 = vmatprep.subr.mxu0 0.0
        %960 = vmatpush1.msra.mxu0 0.0
        %961 = vmatprep.subr.mxu0 0.0
        %962 = vmatpush1.msra.mxu0 0.0
        %963 = vmatprep.subr.mxu0 0.0
        %964 = vmatpush1.msra.mxu0 0.0
        %965 = vmatprep.subr.mxu0 0.0
        %966 = vmatpush1.msra.mxu0 0.0
        %967 = vmatprep.subr.mxu0 0.0
        %968 = vmatpush1.msra.mxu0 0.0
        %969 = vmatprep.subr.mxu0 0.0
        %970 = vmatpush1.msra.mxu0 0.0
        %971 = vmatprep.subr.mxu0 0.0
        %972 = vmatpush1.msra.mxu0 0.0
        %973 = vmatprep.subr.mxu0 0.0
        %974 = vmatpush1.msra.mxu0 0.0
        %975 = vmatprep.subr.mxu0 0.0
        %976 = vmatpush1.msra.mxu0 0.0
        %977 = vmatprep.subr.mxu0 0.0
        %978 = vmatpush1.msra.mxu0 0.0
        %979 = vmatprep.subr.mxu0 0.0
        %980 = vmatpush1.msra.mxu0 0.0
        %981 = vmatprep.subr.mxu0 0.0
        %982 = vmatpush1.msra.mxu0 0.0
        %983 = vmatprep.subr.mxu0 0.0
        %984 = vmatpush1.msra.mxu0 0.0
        %985 = vmatprep.subr.mxu0 0.0
        %986 = vmatpush1.msra.mxu0 0.0
        %987 = vmatprep.subr.mxu0 0.0
        %988 = vmatpush1.msra.mxu0 0.0
        %989 = vmatprep.subr.mxu0 0.0
        %990 = vmatpush1.msra.mxu0 0.0
        %991 = vmatprep.subr.mxu0 0.0
        %992 = vmatpush1.msra.mxu0 0.0
        %993 = vmatprep.subr.mxu0 0.0
        %994 = vmatpush1.msra.mxu0 0.0
        %995 = vmatprep.subr.mxu0 0.0
        %996 = vmatpush1.msra.mxu0 0.0
        %997 = vmatprep.subr.mxu0 0.0
        %998 = vmatpush1.msra.mxu0 0.0
        %999 = vmatprep.subr.mxu0 0.0
        %1000 = vmatpush1.msra.mxu0 0.0
        %1001 = vmatprep.subr.mxu0 0.0
        %1002 = vmatpush1.msra.mxu0 0.0
        %1003 = vmatprep.subr.mxu0 0.0
        %1004 = vmatpush1.msra.mxu0 0.0
        %1005 = vmatprep.mubr.f32.mxu0 0.0
        %1006 = vmatmul.mubr.f32.gmra.mrb[0].mxu0 %v921
        %v1007 = vpop.f32.mrb[0].mxu0
        %v1008 = vadd.f32 0.0, %v1007
        %v1009 = vpop.f32.mrb[0].mxu0
        %1010 = vmatprep.mubr.f32.mxu0 0.0
        %1011 = vmatmul.mubr.f32.gmra.mrb[0].mxu0 %v924
        %v1012 = vpop.f32.mrb[0].mxu0
        %v1013 = vadd.f32 0.0, %v1012
        %v1014 = vpop.f32.mrb[0].mxu0
        %1015 = vmatprep.mubr.f32.mxu0 0.0
        %1016 = vmatmul.mubr.f32.gmra.mrb[0].mxu0 %v927
        %v1017 = vpop.f32.mrb[0].mxu0
        %v1018 = vadd.f32 0.0, %v1017
        %v1019 = vpop.f32.mrb[0].mxu0
        %1020 = vmatprep.mubr.f32.mxu0 0.0
        %1021 = vmatmul.mubr.f32.gmra.mrb[0].mxu0 %v930
        %v1022 = vpop.f32.mrb[0].mxu0
        %v1023 = vadd.f32 0.0, %v1022
        %v1024 = vpop.f32.mrb[0].mxu0
        %1025 = vmatprep.mubr.f32.mxu0 0.0
        %1026 = vmatmul.mubr.f32.gmra.mrb[0].mxu0 %v933
        %v1027 = vpop.f32.mrb[0].mxu0
        %v1028 = vadd.f32 0.0, %v1027
        %v1029 = vpop.f32.mrb[0].mxu0
        %1030 = vmatprep.mubr.f32.mxu0 0.0
        %1031 = vmatmul.mubr.f32.gmra.mrb[0].mxu0 %v936
        %v1032 = vpop.f32.mrb[0].mxu0
        %v1033 = vadd.f32 0.0, %v1032
        %v1034 = vpop.f32.mrb[0].mxu0
        %1035 = vmatprep.mubr.f32.mxu0 0.0
        %1036 = vmatmul.mubr.f32.gmra.mrb[0].mxu0 %v939
        %v1037 = vpop.f32.mrb[0].mxu0
        %v1038 = vadd.f32 0.0, %v1037
        %v1039 = vpop.f32.mrb[0].mxu0
        %1040 = vdwg.mxu0
        %v1042 = vsel %vm919, %v741, 0
        %v1045 = vsel %vm919, %v746, 0
        %v1048 = vsel %vm919, %v751, 0
        %v1051 = vsel %vm919, %v756, 0
        %v1054 = vsel %vm919, %v761, 0
        %v1057 = vsel %vm919, %v766, 0
        %v1060 = vsel %vm919, %v771, 0
        %1062 = vmatprep.subr.mxu0 0.0
        %1063 = vmatpush1.msra.mxu0 %v774
        %1064 = vmatprep.subr.mxu0 0.0
        %1065 = vmatpush1.msra.mxu0 %v775
        %1066 = vmatprep.subr.mxu0 0.0
        %1067 = vmatpush1.msra.mxu0 %v776
        %1068 = vmatprep.subr.mxu0 0.0
        %1069 = vmatpush1.msra.mxu0 %v777
        %1070 = vmatprep.subr.mxu0 0.0
        %1071 = vmatpush1.msra.mxu0 0.0
        %1072 = vmatprep.subr.mxu0 0.0
        %1073 = vmatpush1.msra.mxu0 0.0
        %1074 = vmatprep.subr.mxu0 0.0
        %1075 = vmatpush1.msra.mxu0 0.0
        %1076 = vmatprep.subr.mxu0 0.0
        %1077 = vmatpush1.msra.mxu0 0.0
        %1078 = vmatprep.subr.mxu0 0.0
        %1079 = vmatpush1.msra.mxu0 0.0
        %1080 = vmatprep.subr.mxu0 0.0
        %1081 = vmatpush1.msra.mxu0 0.0
        %1082 = vmatprep.subr.mxu0 0.0
        %1083 = vmatpush1.msra.mxu0 0.0
        %1084 = vmatprep.subr.mxu0 0.0
        %1085 = vmatpush1.msra.mxu0 0.0
        %1086 = vmatprep.subr.mxu0 0.0
        %1087 = vmatpush1.msra.mxu0 0.0
        %1088 = vmatprep.subr.mxu0 0.0
        %1089 = vmatpush1.msra.mxu0 0.0
        %1090 = vmatprep.subr.mxu0 0.0
        %1091 = vmatpush1.msra.mxu0 0.0
        %1092 = vmatprep.subr.mxu0 0.0
        %1093 = vmatpush1.msra.mxu0 0.0
        %1094 = vmatprep.subr.mxu0 0.0
        %1095 = vmatpush1.msra.mxu0 0.0
        %1096 = vmatprep.subr.mxu0 0.0
        %1097 = vmatpush1.msra.mxu0 0.0
        %1098 = vmatprep.subr.mxu0 0.0
        %1099 = vmatpush1.msra.mxu0 0.0
        %1100 = vmatprep.subr.mxu0 0.0
        %1101 = vmatpush1.msra.mxu0 0.0
        %1102 = vmatprep.subr.mxu0 0.0
        %1103 = vmatpush1.msra.mxu0 0.0
        %1104 = vmatprep.subr.mxu0 0.0
        %1105 = vmatpush1.msra.mxu0 0.0
        %1106 = vmatprep.subr.mxu0 0.0
        %1107 = vmatpush1.msra.mxu0 0.0
        %1108 = vmatprep.subr.mxu0 0.0
        %1109 = vmatpush1.msra.mxu0 0.0
        %1110 = vmatprep.subr.mxu0 0.0
        %1111 = vmatpush1.msra.mxu0 0.0
        %1112 = vmatprep.subr.mxu0 0.0
        %1113 = vmatpush1.msra.mxu0 0.0
        %1114 = vmatprep.subr.mxu0 0.0
        %1115 = vmatpush1.msra.mxu0 0.0
        %1116 = vmatprep.subr.mxu0 0.0
        %1117 = vmatpush1.msra.mxu0 0.0
        %1118 = vmatprep.subr.mxu0 0.0
        %1119 = vmatpush1.msra.mxu0 0.0
        %1120 = vmatprep.subr.mxu0 0.0
        %1121 = vmatpush1.msra.mxu0 0.0
        %1122 = vmatprep.subr.mxu0 0.0
        %1123 = vmatpush1.msra.mxu0 0.0
        %1124 = vmatprep.subr.mxu0 0.0
        %1125 = vmatpush1.msra.mxu0 0.0
        %1126 = vmatprep.mubr.f32.mxu0 0.0
        %1127 = vmatmul.mubr.f32.gmra.mrb[0].mxu0 %v1042
        %v1128 = vpop.f32.mrb[0].mxu0
        %v1129 = vadd.f32 %v1008, %v1128
        %v1130 = vpop.f32.mrb[0].mxu0
        %1131 = vmatprep.mubr.f32.mxu0 0.0
        %1132 = vmatmul.mubr.f32.gmra.mrb[0].mxu0 %v1045
        %v1133 = vpop.f32.mrb[0].mxu0
        %v1134 = vadd.f32 %v1013, %v1133
        %v1135 = vpop.f32.mrb[0].mxu0
        %1136 = vmatprep.mubr.f32.mxu0 0.0
        %1137 = vmatmul.mubr.f32.gmra.mrb[0].mxu0 %v1048
        %v1138 = vpop.f32.mrb[0].mxu0
        %v1139 = vadd.f32 %v1018, %v1138
        %v1140 = vpop.f32.mrb[0].mxu0
        %1141 = vmatprep.mubr.f32.mxu0 0.0
        %1142 = vmatmul.mubr.f32.gmra.mrb[0].mxu0 %v1051
        %v1143 = vpop.f32.mrb[0].mxu0
        %v1144 = vadd.f32 %v1023, %v1143
        %v1145 = vpop.f32.mrb[0].mxu0
        %1146 = vmatprep.mubr.f32.mxu0 0.0
        %1147 = vmatmul.mubr.f32.gmra.mrb[0].mxu0 %v1054
        %v1148 = vpop.f32.mrb[0].mxu0
        %v1149 = vadd.f32 %v1028, %v1148
        %v1150 = vpop.f32.mrb[0].mxu0
        %1151 = vmatprep.mubr.f32.mxu0 0.0
        %1152 = vmatmul.mubr.f32.gmra.mrb[0].mxu0 %v1057
        %v1153 = vpop.f32.mrb[0].mxu0
        %v1154 = vadd.f32 %v1033, %v1153
        %v1155 = vpop.f32.mrb[0].mxu0
        %1156 = vmatprep.mubr.f32.mxu0 0.0
        %1157 = vmatmul.mubr.f32.gmra.mrb[0].mxu0 %v1060
        %v1158 = vpop.f32.mrb[0].mxu0
        %v1159 = vadd.f32 %v1038, %v1158
        %v1160 = vpop.f32.mrb[0].mxu0
        %1161 = vdwg.mxu0
        %s1162 = scalar_lea.vmem %s3, 224
        %v1163 = vld [vmem:[%s1162] sm:$0xff]
        %v1164 = vld [vmem:[%s1162 + $0x8] sm:$0xff]
        %v1165 = vld [vmem:[%s1162 + $0x10] sm:$0xff]
        %v1166 = vld [vmem:[%s1162 + $0x18] sm:$0xff]
        %v1167 = vld [vmem:[%s1162 + $0x20] sm:$0xff]
        %v1168 = vld [vmem:[%s1162 + $0x28] sm:$0xff]
        %v1169 = vld [vmem:[%s1162 + $0x30] sm:$0xff]
        %v1170 = vld [vmem:[%s1162 + $0x38] sm:$0xff]
        %v1171 = vld [vmem:[%s1162 + $0x40] sm:$0xff]
        %v1172 = vld [vmem:[%s1162 + $0x48] sm:$0xff]
        %v1173 = vld [vmem:[%s1162 + $0x50] sm:$0xff]
        %v1174 = vld [vmem:[%s1162 + $0x58] sm:$0xff]
        %v1175 = vld [vmem:[%s1162 + $0x60] sm:$0x1]
        %v1176 = vld [vmem:[%s1162 + $0x68] sm:$0x1]
        %v1178 = vsel %vm648, %v1164, 0
        %v1181 = vsel %vm648, %v1166, 0
        %v1184 = vsel %vm648, %v1168, 0
        %v1187 = vsel %vm648, %v1170, 0
        %v1190 = vsel %vm648, %v1172, 0
        %v1193 = vsel %vm648, %v1174, 0
        %v1196 = vsel %vm648, %v1176, 0
        %1198 = vmatprep.subr.mxu0 0.0
        %1199 = vmatpush1.msra.mxu0 %v609
        %1200 = vmatprep.subr.mxu0 0.0
        %1201 = vmatpush1.msra.mxu0 %v610
        %1202 = vmatprep.subr.mxu0 0.0
        %1203 = vmatpush1.msra.mxu0 %v611
        %1204 = vmatprep.subr.mxu0 0.0
        %1205 = vmatpush1.msra.mxu0 %v612
        %1206 = vmatprep.subr.mxu0 0.0
        %1207 = vmatpush1.msra.mxu0 %v613
        %1208 = vmatprep.subr.mxu0 0.0
        %1209 = vmatpush1.msra.mxu0 %v614
        %1210 = vmatprep.subr.mxu0 0.0
        %1211 = vmatpush1.msra.mxu0 %v615
        %1212 = vmatprep.subr.mxu0 0.0
        %1213 = vmatpush1.msra.mxu0 %v616
        %1214 = vmatprep.subr.mxu0 0.0
        %1215 = vmatpush1.msra.mxu0 %v617
        %1216 = vmatprep.subr.mxu0 0.0
        %1217 = vmatpush1.msra.mxu0 %v618
        %1218 = vmatprep.subr.mxu0 0.0
        %1219 = vmatpush1.msra.mxu0 %v619
        %1220 = vmatprep.subr.mxu0 0.0
        %1221 = vmatpush1.msra.mxu0 %v620
        %1222 = vmatprep.subr.mxu0 0.0
        %1223 = vmatpush1.msra.mxu0 %v621
        %1224 = vmatprep.subr.mxu0 0.0
        %1225 = vmatpush1.msra.mxu0 %v622
        %1226 = vmatprep.subr.mxu0 0.0
        %1227 = vmatpush1.msra.mxu0 %v623
        %1228 = vmatprep.subr.mxu0 0.0
        %1229 = vmatpush1.msra.mxu0 %v624
        %1230 = vmatprep.subr.mxu0 0.0
        %1231 = vmatpush1.msra.mxu0 %v625
        %1232 = vmatprep.subr.mxu0 0.0
        %1233 = vmatpush1.msra.mxu0 %v626
        %1234 = vmatprep.subr.mxu0 0.0
        %1235 = vmatpush1.msra.mxu0 %v627
        %1236 = vmatprep.subr.mxu0 0.0
        %1237 = vmatpush1.msra.mxu0 %v628
        %1238 = vmatprep.subr.mxu0 0.0
        %1239 = vmatpush1.msra.mxu0 %v629
        %1240 = vmatprep.subr.mxu0 0.0
        %1241 = vmatpush1.msra.mxu0 %v630
        %1242 = vmatprep.subr.mxu0 0.0
        %1243 = vmatpush1.msra.mxu0 %v631
        %1244 = vmatprep.subr.mxu0 0.0
        %1245 = vmatpush1.msra.mxu0 %v632
        %1246 = vmatprep.subr.mxu0 0.0
        %1247 = vmatpush1.msra.mxu0 %v672
        %1248 = vmatprep.subr.mxu0 0.0
        %1249 = vmatpush1.msra.mxu0 0.0
        %1250 = vmatprep.subr.mxu0 0.0
        %1251 = vmatpush1.msra.mxu0 0.0
        %1252 = vmatprep.subr.mxu0 0.0
        %1253 = vmatpush1.msra.mxu0 0.0
        %1254 = vmatprep.subr.mxu0 0.0
        %1255 = vmatpush1.msra.mxu0 0.0
        %1256 = vmatprep.subr.mxu0 0.0
        %1257 = vmatpush1.msra.mxu0 0.0
        %1258 = vmatprep.subr.mxu0 0.0
        %1259 = vmatpush1.msra.mxu0 0.0
        %1260 = vmatprep.subr.mxu0 0.0
        %1261 = vmatpush1.msra.mxu0 0.0
        %1262 = vmatprep.mubr.f32.mxu0 %v1178
        %1263 = vmatmul.mubr.f32.gmra.mrb[0].mxu0 %v1163
        %v1264 = vpop.f32.mrb[0].mxu0
        %v1265 = vadd.f32 0.0, %v1264
        %v1266 = vpop.f32.mrb[0].mxu0
        %1267 = vmatprep.mubr.f32.mxu0 %v1181
        %1268 = vmatmul.mubr.f32.gmra.mrb[0].mxu0 %v1165
        %v1269 = vpop.f32.mrb[0].mxu0
        %v1270 = vadd.f32 0.0, %v1269
        %v1271 = vpop.f32.mrb[0].mxu0
        %1272 = vmatprep.mubr.f32.mxu0 %v1184
        %1273 = vmatmul.mubr.f32.gmra.mrb[0].mxu0 %v1167
        %v1274 = vpop.f32.mrb[0].mxu0
        %v1275 = vadd.f32 0.0, %v1274
        %v1276 = vpop.f32.mrb[0].mxu0
        %1277 = vmatprep.mubr.f32.mxu0 %v1187
        %1278 = vmatmul.mubr.f32.gmra.mrb[0].mxu0 %v1169
        %v1279 = vpop.f32.mrb[0].mxu0
        %v1280 = vadd.f32 0.0, %v1279
        %v1281 = vpop.f32.mrb[0].mxu0
        %1282 = vmatprep.mubr.f32.mxu0 %v1190
        %1283 = vmatmul.mubr.f32.gmra.mrb[0].mxu0 %v1171
        %v1284 = vpop.f32.mrb[0].mxu0
        %v1285 = vadd.f32 0.0, %v1284
        %v1286 = vpop.f32.mrb[0].mxu0
        %1287 = vmatprep.mubr.f32.mxu0 %v1193
        %1288 = vmatmul.mubr.f32.gmra.mrb[0].mxu0 %v1173
        %v1289 = vpop.f32.mrb[0].mxu0
        %v1290 = vadd.f32 0.0, %v1289
        %v1291 = vpop.f32.mrb[0].mxu0
        %1292 = vmatprep.mubr.f32.mxu0 %v1196
        %1293 = vmatmul.mubr.f32.gmra.mrb[0].mxu0 %v1175
        %v1294 = vpop.f32.mrb[0].mxu0
        %v1295 = vadd.f32 0.0, %v1294
        %v1296 = vpop.f32.mrb[0].mxu0
        %1297 = vdwg.mxu0
        %s1298 = scalar_lea.vmem %s4, 64
        %v1299 = vld [vmem:[%s1298] sm:$0xff]
        %v1300 = vld [vmem:[%s1298 + $0x8] sm:$0xff]
        %v1301 = vld [vmem:[%s1298 + $0x10] sm:$0xff]
        %v1302 = vld [vmem:[%s1298 + $0x18] sm:$0xff]
        %v1304 = vsel %vm919, %v1265, 0
        %v1307 = vsel %vm919, %v1270, 0
        %v1310 = vsel %vm919, %v1275, 0
        %v1313 = vsel %vm919, %v1280, 0
        %v1316 = vsel %vm919, %v1285, 0
        %v1319 = vsel %vm919, %v1290, 0
        %v1322 = vsel %vm919, %v1295, 0
        %1324 = vmatprep.subr.mxu0 0.0
        %1325 = vmatpush1.msra.mxu0 %v1299
        %1326 = vmatprep.subr.mxu0 0.0
        %1327 = vmatpush1.msra.mxu0 %v1300
        %1328 = vmatprep.subr.mxu0 0.0
        %1329 = vmatpush1.msra.mxu0 %v1301
        %1330 = vmatprep.subr.mxu0 0.0
        %1331 = vmatpush1.msra.mxu0 %v1302
        %1332 = vmatprep.subr.mxu0 0.0
        %1333 = vmatpush1.msra.mxu0 0.0
        %1334 = vmatprep.subr.mxu0 0.0
        %1335 = vmatpush1.msra.mxu0 0.0
        %1336 = vmatprep.subr.mxu0 0.0
        %1337 = vmatpush1.msra.mxu0 0.0
        %1338 = vmatprep.subr.mxu0 0.0
        %1339 = vmatpush1.msra.mxu0 0.0
        %1340 = vmatprep.subr.mxu0 0.0
        %1341 = vmatpush1.msra.mxu0 0.0
        %1342 = vmatprep.subr.mxu0 0.0
        %1343 = vmatpush1.msra.mxu0 0.0
        %1344 = vmatprep.subr.mxu0 0.0
        %1345 = vmatpush1.msra.mxu0 0.0
        %1346 = vmatprep.subr.mxu0 0.0
        %1347 = vmatpush1.msra.mxu0 0.0
        %1348 = vmatprep.subr.mxu0 0.0
        %1349 = vmatpush1.msra.mxu0 0.0
        %1350 = vmatprep.subr.mxu0 0.0
        %1351 = vmatpush1.msra.mxu0 0.0
        %1352 = vmatprep.subr.mxu0 0.0
        %1353 = vmatpush1.msra.mxu0 0.0
        %1354 = vmatprep.subr.mxu0 0.0
        %1355 = vmatpush1.msra.mxu0 0.0
        %1356 = vmatprep.subr.mxu0 0.0
        %1357 = vmatpush1.msra.mxu0 0.0
        %1358 = vmatprep.subr.mxu0 0.0
        %1359 = vmatpush1.msra.mxu0 0.0
        %1360 = vmatprep.subr.mxu0 0.0
        %1361 = vmatpush1.msra.mxu0 0.0
        %1362 = vmatprep.subr.mxu0 0.0
        %1363 = vmatpush1.msra.mxu0 0.0
        %1364 = vmatprep.subr.mxu0 0.0
        %1365 = vmatpush1.msra.mxu0 0.0
        %1366 = vmatprep.subr.mxu0 0.0
        %1367 = vmatpush1.msra.mxu0 0.0
        %1368 = vmatprep.subr.mxu0 0.0
        %1369 = vmatpush1.msra.mxu0 0.0
        %1370 = vmatprep.subr.mxu0 0.0
        %1371 = vmatpush1.msra.mxu0 0.0
        %1372 = vmatprep.subr.mxu0 0.0
        %1373 = vmatpush1.msra.mxu0 0.0
        %1374 = vmatprep.subr.mxu0 0.0
        %1375 = vmatpush1.msra.mxu0 0.0
        %1376 = vmatprep.subr.mxu0 0.0
        %1377 = vmatpush1.msra.mxu0 0.0
        %1378 = vmatprep.subr.mxu0 0.0
        %1379 = vmatpush1.msra.mxu0 0.0
        %1380 = vmatprep.subr.mxu0 0.0
        %1381 = vmatpush1.msra.mxu0 0.0
        %1382 = vmatprep.subr.mxu0 0.0
        %1383 = vmatpush1.msra.mxu0 0.0
        %1384 = vmatprep.subr.mxu0 0.0
        %1385 = vmatpush1.msra.mxu0 0.0
        %1386 = vmatprep.subr.mxu0 0.0
        %1387 = vmatpush1.msra.mxu0 0.0
        %1388 = vmatprep.mubr.f32.mxu0 0.0
        %1389 = vmatmul.mubr.f32.gmra.mrb[0].mxu0 %v1304
        %v1390 = vpop.f32.mrb[0].mxu0
        %v1391 = vadd.f32 0.0, %v1390
        %v1392 = vpop.f32.mrb[0].mxu0
        %1393 = vmatprep.mubr.f32.mxu0 0.0
        %1394 = vmatmul.mubr.f32.gmra.mrb[0].mxu0 %v1307
        %v1395 = vpop.f32.mrb[0].mxu0
        %v1396 = vadd.f32 0.0, %v1395
        %v1397 = vpop.f32.mrb[0].mxu0
        %1398 = vmatprep.mubr.f32.mxu0 0.0
        %1399 = vmatmul.mubr.f32.gmra.mrb[0].mxu0 %v1310
        %v1400 = vpop.f32.mrb[0].mxu0
        %v1401 = vadd.f32 0.0, %v1400
        %v1402 = vpop.f32.mrb[0].mxu0
        %1403 = vmatprep.mubr.f32.mxu0 0.0
        %1404 = vmatmul.mubr.f32.gmra.mrb[0].mxu0 %v1313
        %v1405 = vpop.f32.mrb[0].mxu0
        %v1406 = vadd.f32 0.0, %v1405
        %v1407 = vpop.f32.mrb[0].mxu0
        %1408 = vmatprep.mubr.f32.mxu0 0.0
        %1409 = vmatmul.mubr.f32.gmra.mrb[0].mxu0 %v1316
        %v1410 = vpop.f32.mrb[0].mxu0
        %v1411 = vadd.f32 0.0, %v1410
        %v1412 = vpop.f32.mrb[0].mxu0
        %1413 = vmatprep.mubr.f32.mxu0 0.0
        %1414 = vmatmul.mubr.f32.gmra.mrb[0].mxu0 %v1319
        %v1415 = vpop.f32.mrb[0].mxu0
        %v1416 = vadd.f32 0.0, %v1415
        %v1417 = vpop.f32.mrb[0].mxu0
        %1418 = vmatprep.mubr.f32.mxu0 0.0
        %1419 = vmatmul.mubr.f32.gmra.mrb[0].mxu0 %v1322
        %v1420 = vpop.f32.mrb[0].mxu0
        %v1421 = vadd.f32 0.0, %v1420
        %v1422 = vpop.f32.mrb[0].mxu0
        %1423 = vdwg.mxu0
        %v1424 = vadd.f32 %v1129, %v1391
        %v1425 = vadd.f32 %v1134, %v1396
        %v1426 = vadd.f32 %v1139, %v1401
        %v1427 = vadd.f32 %v1144, %v1406
        %v1428 = vadd.f32 %v1149, %v1411
        %v1429 = vadd.f32 %v1154, %v1416
        %v1430 = vadd.f32 %v1159, %v1421
        %s1431 = scalar_lea.vmem %s3, 336
        %v1432 = vld [vmem:[%s1431] sm:$0xff]
        %v1433 = vld [vmem:[%s1431 + $0x8] sm:$0xff]
        %v1434 = vld [vmem:[%s1431 + $0x10] sm:$0xff]
        %v1435 = vld [vmem:[%s1431 + $0x18] sm:$0xff]
        %v1436 = vld [vmem:[%s1431 + $0x20] sm:$0xff]
        %v1437 = vld [vmem:[%s1431 + $0x28] sm:$0xff]
        %v1438 = vld [vmem:[%s1431 + $0x30] sm:$0xff]
        %v1439 = vld [vmem:[%s1431 + $0x38] sm:$0xff]
        %v1440 = vld [vmem:[%s1431 + $0x40] sm:$0xff]
        %v1441 = vld [vmem:[%s1431 + $0x48] sm:$0xff]
        %v1442 = vld [vmem:[%s1431 + $0x50] sm:$0xff]
        %v1443 = vld [vmem:[%s1431 + $0x58] sm:$0xff]
        %v1444 = vld [vmem:[%s1431 + $0x60] sm:$0x1]
        %v1445 = vld [vmem:[%s1431 + $0x68] sm:$0x1]
        %v1447 = vsel %vm648, %v1433, 0
        %v1450 = vsel %vm648, %v1435, 0
        %v1453 = vsel %vm648, %v1437, 0
        %v1456 = vsel %vm648, %v1439, 0
        %v1459 = vsel %vm648, %v1441, 0
        %v1462 = vsel %vm648, %v1443, 0
        %v1465 = vsel %vm648, %v1445, 0
        %1467 = vmatprep.subr.mxu0 0.0
        %1468 = vmatpush1.msra.mxu0 %v609
        %1469 = vmatprep.subr.mxu0 0.0
        %1470 = vmatpush1.msra.mxu0 %v610
        %1471 = vmatprep.subr.mxu0 0.0
        %1472 = vmatpush1.msra.mxu0 %v611
        %1473 = vmatprep.subr.mxu0 0.0
        %1474 = vmatpush1.msra.mxu0 %v612
        %1475 = vmatprep.subr.mxu0 0.0
        %1476 = vmatpush1.msra.mxu0 %v613
        %1477 = vmatprep.subr.mxu0 0.0
        %1478 = vmatpush1.msra.mxu0 %v614
        %1479 = vmatprep.subr.mxu0 0.0
        %1480 = vmatpush1.msra.mxu0 %v615
        %1481 = vmatprep.subr.mxu0 0.0
        %1482 = vmatpush1.msra.mxu0 %v616
        %1483 = vmatprep.subr.mxu0 0.0
        %1484 = vmatpush1.msra.mxu0 %v617
        %1485 = vmatprep.subr.mxu0 0.0
        %1486 = vmatpush1.msra.mxu0 %v618
        %1487 = vmatprep.subr.mxu0 0.0
        %1488 = vmatpush1.msra.mxu0 %v619
        %1489 = vmatprep.subr.mxu0 0.0
        %1490 = vmatpush1.msra.mxu0 %v620
        %1491 = vmatprep.subr.mxu0 0.0
        %1492 = vmatpush1.msra.mxu0 %v621
        %1493 = vmatprep.subr.mxu0 0.0
        %1494 = vmatpush1.msra.mxu0 %v622
        %1495 = vmatprep.subr.mxu0 0.0
        %1496 = vmatpush1.msra.mxu0 %v623
        %1497 = vmatprep.subr.mxu0 0.0
        %1498 = vmatpush1.msra.mxu0 %v624
        %1499 = vmatprep.subr.mxu0 0.0
        %1500 = vmatpush1.msra.mxu0 %v625
        %1501 = vmatprep.subr.mxu0 0.0
        %1502 = vmatpush1.msra.mxu0 %v626
        %1503 = vmatprep.subr.mxu0 0.0
        %1504 = vmatpush1.msra.mxu0 %v627
        %1505 = vmatprep.subr.mxu0 0.0
        %1506 = vmatpush1.msra.mxu0 %v628
        %1507 = vmatprep.subr.mxu0 0.0
        %1508 = vmatpush1.msra.mxu0 %v629
        %1509 = vmatprep.subr.mxu0 0.0
        %1510 = vmatpush1.msra.mxu0 %v630
        %1511 = vmatprep.subr.mxu0 0.0
        %1512 = vmatpush1.msra.mxu0 %v631
        %1513 = vmatprep.subr.mxu0 0.0
        %1514 = vmatpush1.msra.mxu0 %v632
        %1515 = vmatprep.subr.mxu0 0.0
        %1516 = vmatpush1.msra.mxu0 %v672
        %1517 = vmatprep.subr.mxu0 0.0
        %1518 = vmatpush1.msra.mxu0 0.0
        %1519 = vmatprep.subr.mxu0 0.0
        %1520 = vmatpush1.msra.mxu0 0.0
        %1521 = vmatprep.subr.mxu0 0.0
        %1522 = vmatpush1.msra.mxu0 0.0
        %1523 = vmatprep.subr.mxu0 0.0
        %1524 = vmatpush1.msra.mxu0 0.0
        %1525 = vmatprep.subr.mxu0 0.0
        %1526 = vmatpush1.msra.mxu0 0.0
        %1527 = vmatprep.subr.mxu0 0.0
        %1528 = vmatpush1.msra.mxu0 0.0
        %1529 = vmatprep.subr.mxu0 0.0
        %1530 = vmatpush1.msra.mxu0 0.0
        %1531 = vmatprep.mubr.f32.mxu0 %v1447
        %1532 = vmatmul.mubr.f32.gmra.mrb[0].mxu0 %v1432
        %v1533 = vpop.f32.mrb[0].mxu0
        %v1534 = vadd.f32 0.0, %v1533
        %v1535 = vpop.f32.mrb[0].mxu0
        %1536 = vmatprep.mubr.f32.mxu0 %v1450
        %1537 = vmatmul.mubr.f32.gmra.mrb[0].mxu0 %v1434
        %v1538 = vpop.f32.mrb[0].mxu0
        %v1539 = vadd.f32 0.0, %v1538
        %v1540 = vpop.f32.mrb[0].mxu0
        %1541 = vmatprep.mubr.f32.mxu0 %v1453
        %1542 = vmatmul.mubr.f32.gmra.mrb[0].mxu0 %v1436
        %v1543 = vpop.f32.mrb[0].mxu0
        %v1544 = vadd.f32 0.0, %v1543
        %v1545 = vpop.f32.mrb[0].mxu0
        %1546 = vmatprep.mubr.f32.mxu0 %v1456
        %1547 = vmatmul.mubr.f32.gmra.mrb[0].mxu0 %v1438
        %v1548 = vpop.f32.mrb[0].mxu0
        %v1549 = vadd.f32 0.0, %v1548
        %v1550 = vpop.f32.mrb[0].mxu0
        %1551 = vmatprep.mubr.f32.mxu0 %v1459
        %1552 = vmatmul.mubr.f32.gmra.mrb[0].mxu0 %v1440
        %v1553 = vpop.f32.mrb[0].mxu0
        %v1554 = vadd.f32 0.0, %v1553
        %v1555 = vpop.f32.mrb[0].mxu0
        %1556 = vmatprep.mubr.f32.mxu0 %v1462
        %1557 = vmatmul.mubr.f32.gmra.mrb[0].mxu0 %v1442
        %v1558 = vpop.f32.mrb[0].mxu0
        %v1559 = vadd.f32 0.0, %v1558
        %v1560 = vpop.f32.mrb[0].mxu0
        %1561 = vmatprep.mubr.f32.mxu0 %v1465
        %1562 = vmatmul.mubr.f32.gmra.mrb[0].mxu0 %v1444
        %v1563 = vpop.f32.mrb[0].mxu0
        %v1564 = vadd.f32 0.0, %v1563
        %v1565 = vpop.f32.mrb[0].mxu0
        %1566 = vdwg.mxu0
        %s1567 = scalar_lea.vmem %s4, 96
        %v1568 = vld [vmem:[%s1567] sm:$0xff]
        %v1569 = vld [vmem:[%s1567 + $0x8] sm:$0xff]
        %v1570 = vld [vmem:[%s1567 + $0x10] sm:$0xff]
        %v1571 = vld [vmem:[%s1567 + $0x18] sm:$0xff]
        %v1573 = vsel %vm919, %v1534, 0
        %v1576 = vsel %vm919, %v1539, 0
        %v1579 = vsel %vm919, %v1544, 0
        %v1582 = vsel %vm919, %v1549, 0
        %v1585 = vsel %vm919, %v1554, 0
        %v1588 = vsel %vm919, %v1559, 0
        %v1591 = vsel %vm919, %v1564, 0
        %1593 = vmatprep.subr.mxu0 0.0
        %1594 = vmatpush1.msra.mxu0 %v1568
        %1595 = vmatprep.subr.mxu0 0.0
        %1596 = vmatpush1.msra.mxu0 %v1569
        %1597 = vmatprep.subr.mxu0 0.0
        %1598 = vmatpush1.msra.mxu0 %v1570
        %1599 = vmatprep.subr.mxu0 0.0
        %1600 = vmatpush1.msra.mxu0 %v1571
        %1601 = vmatprep.subr.mxu0 0.0
        %1602 = vmatpush1.msra.mxu0 0.0
        %1603 = vmatprep.subr.mxu0 0.0
        %1604 = vmatpush1.msra.mxu0 0.0
        %1605 = vmatprep.subr.mxu0 0.0
        %1606 = vmatpush1.msra.mxu0 0.0
        %1607 = vmatprep.subr.mxu0 0.0
        %1608 = vmatpush1.msra.mxu0 0.0
        %1609 = vmatprep.subr.mxu0 0.0
        %1610 = vmatpush1.msra.mxu0 0.0
        %1611 = vmatprep.subr.mxu0 0.0
        %1612 = vmatpush1.msra.mxu0 0.0
        %1613 = vmatprep.subr.mxu0 0.0
        %1614 = vmatpush1.msra.mxu0 0.0
        %1615 = vmatprep.subr.mxu0 0.0
        %1616 = vmatpush1.msra.mxu0 0.0
        %1617 = vmatprep.subr.mxu0 0.0
        %1618 = vmatpush1.msra.mxu0 0.0
        %1619 = vmatprep.subr.mxu0 0.0
        %1620 = vmatpush1.msra.mxu0 0.0
        %1621 = vmatprep.subr.mxu0 0.0
        %1622 = vmatpush1.msra.mxu0 0.0
        %1623 = vmatprep.subr.mxu0 0.0
        %1624 = vmatpush1.msra.mxu0 0.0
        %1625 = vmatprep.subr.mxu0 0.0
        %1626 = vmatpush1.msra.mxu0 0.0
        %1627 = vmatprep.subr.mxu0 0.0
        %1628 = vmatpush1.msra.mxu0 0.0
        %1629 = vmatprep.subr.mxu0 0.0
        %1630 = vmatpush1.msra.mxu0 0.0
        %1631 = vmatprep.subr.mxu0 0.0
        %1632 = vmatpush1.msra.mxu0 0.0
        %1633 = vmatprep.subr.mxu0 0.0
        %1634 = vmatpush1.msra.mxu0 0.0
        %1635 = vmatprep.subr.mxu0 0.0
        %1636 = vmatpush1.msra.mxu0 0.0
        %1637 = vmatprep.subr.mxu0 0.0
        %1638 = vmatpush1.msra.mxu0 0.0
        %1639 = vmatprep.subr.mxu0 0.0
        %1640 = vmatpush1.msra.mxu0 0.0
        %1641 = vmatprep.subr.mxu0 0.0
        %1642 = vmatpush1.msra.mxu0 0.0
        %1643 = vmatprep.subr.mxu0 0.0
        %1644 = vmatpush1.msra.mxu0 0.0
        %1645 = vmatprep.subr.mxu0 0.0
        %1646 = vmatpush1.msra.mxu0 0.0
        %1647 = vmatprep.subr.mxu0 0.0
        %1648 = vmatpush1.msra.mxu0 0.0
        %1649 = vmatprep.subr.mxu0 0.0
        %1650 = vmatpush1.msra.mxu0 0.0
        %1651 = vmatprep.subr.mxu0 0.0
        %1652 = vmatpush1.msra.mxu0 0.0
        %1653 = vmatprep.subr.mxu0 0.0
        %1654 = vmatpush1.msra.mxu0 0.0
        %1655 = vmatprep.subr.mxu0 0.0
        %1656 = vmatpush1.msra.mxu0 0.0
        %1657 = vmatprep.mubr.f32.mxu0 0.0
        %1658 = vmatmul.mubr.f32.gmra.mrb[0].mxu0 %v1573
        %v1659 = vpop.f32.mrb[0].mxu0
        %v1660 = vadd.f32 0.0, %v1659
        %v1661 = vpop.f32.mrb[0].mxu0
        %1662 = vmatprep.mubr.f32.mxu0 0.0
        %1663 = vmatmul.mubr.f32.gmra.mrb[0].mxu0 %v1576
        %v1664 = vpop.f32.mrb[0].mxu0
        %v1665 = vadd.f32 0.0, %v1664
        %v1666 = vpop.f32.mrb[0].mxu0
        %1667 = vmatprep.mubr.f32.mxu0 0.0
        %1668 = vmatmul.mubr.f32.gmra.mrb[0].mxu0 %v1579
        %v1669 = vpop.f32.mrb[0].mxu0
        %v1670 = vadd.f32 0.0, %v1669
        %v1671 = vpop.f32.mrb[0].mxu0
        %1672 = vmatprep.mubr.f32.mxu0 0.0
        %1673 = vmatmul.mubr.f32.gmra.mrb[0].mxu0 %v1582
        %v1674 = vpop.f32.mrb[0].mxu0
        %v1675 = vadd.f32 0.0, %v1674
        %v1676 = vpop.f32.mrb[0].mxu0
        %1677 = vmatprep.mubr.f32.mxu0 0.0
        %1678 = vmatmul.mubr.f32.gmra.mrb[0].mxu0 %v1585
        %v1679 = vpop.f32.mrb[0].mxu0
        %v1680 = vadd.f32 0.0, %v1679
        %v1681 = vpop.f32.mrb[0].mxu0
        %1682 = vmatprep.mubr.f32.mxu0 0.0
        %1683 = vmatmul.mubr.f32.gmra.mrb[0].mxu0 %v1588
        %v1684 = vpop.f32.mrb[0].mxu0
        %v1685 = vadd.f32 0.0, %v1684
        %v1686 = vpop.f32.mrb[0].mxu0
        %1687 = vmatprep.mubr.f32.mxu0 0.0
        %1688 = vmatmul.mubr.f32.gmra.mrb[0].mxu0 %v1591
        %v1689 = vpop.f32.mrb[0].mxu0
        %v1690 = vadd.f32 0.0, %v1689
        %v1691 = vpop.f32.mrb[0].mxu0
        %1692 = vdwg.mxu0
        %v1693 = vadd.f32 %v1424, %v1660
        %v1694 = vadd.f32 %v1425, %v1665
        %v1695 = vadd.f32 %v1426, %v1670
        %v1696 = vadd.f32 %v1427, %v1675
        %v1697 = vadd.f32 %v1428, %v1680
        %v1698 = vadd.f32 %v1429, %v1685
        %v1699 = vadd.f32 %v1430, %v1690
        %s1700 = scalar_lea.vmem %s3, 448
        %v1701 = vld [vmem:[%s1700] sm:$0xff]
        %v1702 = vld [vmem:[%s1700 + $0x8] sm:$0xff]
        %v1703 = vld [vmem:[%s1700 + $0x10] sm:$0xff]
        %v1704 = vld [vmem:[%s1700 + $0x18] sm:$0xff]
        %v1705 = vld [vmem:[%s1700 + $0x20] sm:$0xff]
        %v1706 = vld [vmem:[%s1700 + $0x28] sm:$0xff]
        %v1707 = vld [vmem:[%s1700 + $0x30] sm:$0xff]
        %v1708 = vld [vmem:[%s1700 + $0x38] sm:$0xff]
        %v1709 = vld [vmem:[%s1700 + $0x40] sm:$0xff]
        %v1710 = vld [vmem:[%s1700 + $0x48] sm:$0xff]
        %v1711 = vld [vmem:[%s1700 + $0x50] sm:$0xff]
        %v1712 = vld [vmem:[%s1700 + $0x58] sm:$0xff]
        %v1713 = vld [vmem:[%s1700 + $0x60] sm:$0x1]
        %v1714 = vld [vmem:[%s1700 + $0x68] sm:$0x1]
        %v1716 = vsel %vm648, %v1702, 0
        %v1719 = vsel %vm648, %v1704, 0
        %v1722 = vsel %vm648, %v1706, 0
        %v1725 = vsel %vm648, %v1708, 0
        %v1728 = vsel %vm648, %v1710, 0
        %v1731 = vsel %vm648, %v1712, 0
        %v1734 = vsel %vm648, %v1714, 0
        %1736 = vmatprep.subr.mxu0 0.0
        %1737 = vmatpush1.msra.mxu0 %v609
        %1738 = vmatprep.subr.mxu0 0.0
        %1739 = vmatpush1.msra.mxu0 %v610
        %1740 = vmatprep.subr.mxu0 0.0
        %1741 = vmatpush1.msra.mxu0 %v611
        %1742 = vmatprep.subr.mxu0 0.0
        %1743 = vmatpush1.msra.mxu0 %v612
        %1744 = vmatprep.subr.mxu0 0.0
        %1745 = vmatpush1.msra.mxu0 %v613
        %1746 = vmatprep.subr.mxu0 0.0
        %1747 = vmatpush1.msra.mxu0 %v614
        %1748 = vmatprep.subr.mxu0 0.0
        %1749 = vmatpush1.msra.mxu0 %v615
        %1750 = vmatprep.subr.mxu0 0.0
        %1751 = vmatpush1.msra.mxu0 %v616
        %1752 = vmatprep.subr.mxu0 0.0
        %1753 = vmatpush1.msra.mxu0 %v617
        %1754 = vmatprep.subr.mxu0 0.0
        %1755 = vmatpush1.msra.mxu0 %v618
        %1756 = vmatprep.subr.mxu0 0.0
        %1757 = vmatpush1.msra.mxu0 %v619
        %1758 = vmatprep.subr.mxu0 0.0
        %1759 = vmatpush1.msra.mxu0 %v620
        %1760 = vmatprep.subr.mxu0 0.0
        %1761 = vmatpush1.msra.mxu0 %v621
        %1762 = vmatprep.subr.mxu0 0.0
        %1763 = vmatpush1.msra.mxu0 %v622
        %1764 = vmatprep.subr.mxu0 0.0
        %1765 = vmatpush1.msra.mxu0 %v623
        %1766 = vmatprep.subr.mxu0 0.0
        %1767 = vmatpush1.msra.mxu0 %v624
        %1768 = vmatprep.subr.mxu0 0.0
        %1769 = vmatpush1.msra.mxu0 %v625
        %1770 = vmatprep.subr.mxu0 0.0
        %1771 = vmatpush1.msra.mxu0 %v626
        %1772 = vmatprep.subr.mxu0 0.0
        %1773 = vmatpush1.msra.mxu0 %v627
        %1774 = vmatprep.subr.mxu0 0.0
        %1775 = vmatpush1.msra.mxu0 %v628
        %1776 = vmatprep.subr.mxu0 0.0
        %1777 = vmatpush1.msra.mxu0 %v629
        %1778 = vmatprep.subr.mxu0 0.0
        %1779 = vmatpush1.msra.mxu0 %v630
        %1780 = vmatprep.subr.mxu0 0.0
        %1781 = vmatpush1.msra.mxu0 %v631
        %1782 = vmatprep.subr.mxu0 0.0
        %1783 = vmatpush1.msra.mxu0 %v632
        %1784 = vmatprep.subr.mxu0 0.0
        %1785 = vmatpush1.msra.mxu0 %v672
        %1786 = vmatprep.subr.mxu0 0.0
        %1787 = vmatpush1.msra.mxu0 0.0
        %1788 = vmatprep.subr.mxu0 0.0
        %1789 = vmatpush1.msra.mxu0 0.0
        %1790 = vmatprep.subr.mxu0 0.0
        %1791 = vmatpush1.msra.mxu0 0.0
        %1792 = vmatprep.subr.mxu0 0.0
        %1793 = vmatpush1.msra.mxu0 0.0
        %1794 = vmatprep.subr.mxu0 0.0
        %1795 = vmatpush1.msra.mxu0 0.0
        %1796 = vmatprep.subr.mxu0 0.0
        %1797 = vmatpush1.msra.mxu0 0.0
        %1798 = vmatprep.subr.mxu0 0.0
        %1799 = vmatpush1.msra.mxu0 0.0
        %1800 = vmatprep.mubr.f32.mxu0 %v1716
        %1801 = vmatmul.mubr.f32.gmra.mrb[0].mxu0 %v1701
        %v1802 = vpop.f32.mrb[0].mxu0
        %v1803 = vadd.f32 0.0, %v1802
        %v1804 = vpop.f32.mrb[0].mxu0
        %1805 = vmatprep.mubr.f32.mxu0 %v1719
        %1806 = vmatmul.mubr.f32.gmra.mrb[0].mxu0 %v1703
        %v1807 = vpop.f32.mrb[0].mxu0
        %v1808 = vadd.f32 0.0, %v1807
        %v1809 = vpop.f32.mrb[0].mxu0
        %1810 = vmatprep.mubr.f32.mxu0 %v1722
        %1811 = vmatmul.mubr.f32.gmra.mrb[0].mxu0 %v1705
        %v1812 = vpop.f32.mrb[0].mxu0
        %v1813 = vadd.f32 0.0, %v1812
        %v1814 = vpop.f32.mrb[0].mxu0
        %1815 = vmatprep.mubr.f32.mxu0 %v1725
        %1816 = vmatmul.mubr.f32.gmra.mrb[0].mxu0 %v1707
        %v1817 = vpop.f32.mrb[0].mxu0
        %v1818 = vadd.f32 0.0, %v1817
        %v1819 = vpop.f32.mrb[0].mxu0
        %1820 = vmatprep.mubr.f32.mxu0 %v1728
        %1821 = vmatmul.mubr.f32.gmra.mrb[0].mxu0 %v1709
        %v1822 = vpop.f32.mrb[0].mxu0
        %v1823 = vadd.f32 0.0, %v1822
        %v1824 = vpop.f32.mrb[0].mxu0
        %1825 = vmatprep.mubr.f32.mxu0 %v1731
        %1826 = vmatmul.mubr.f32.gmra.mrb[0].mxu0 %v1711
        %v1827 = vpop.f32.mrb[0].mxu0
        %v1828 = vadd.f32 0.0, %v1827
        %v1829 = vpop.f32.mrb[0].mxu0
        %1830 = vmatprep.mubr.f32.mxu0 %v1734
        %1831 = vmatmul.mubr.f32.gmra.mrb[0].mxu0 %v1713
        %v1832 = vpop.f32.mrb[0].mxu0
        %v1833 = vadd.f32 0.0, %v1832
        %v1834 = vpop.f32.mrb[0].mxu0
        %1835 = vdwg.mxu0
        %s1836 = scalar_lea.vmem %s4, 128
        %v1837 = vld [vmem:[%s1836] sm:$0xff]
        %v1838 = vld [vmem:[%s1836 + $0x8] sm:$0xff]
        %v1839 = vld [vmem:[%s1836 + $0x10] sm:$0xff]
        %v1840 = vld [vmem:[%s1836 + $0x18] sm:$0xff]
        %v1842 = vsel %vm919, %v1803, 0
        %v1845 = vsel %vm919, %v1808, 0
        %v1848 = vsel %vm919, %v1813, 0
        %v1851 = vsel %vm919, %v1818, 0
        %v1854 = vsel %vm919, %v1823, 0
        %v1857 = vsel %vm919, %v1828, 0
        %v1860 = vsel %vm919, %v1833, 0
        %1862 = vmatprep.subr.mxu0 0.0
        %1863 = vmatpush1.msra.mxu0 %v1837
        %1864 = vmatprep.subr.mxu0 0.0
        %1865 = vmatpush1.msra.mxu0 %v1838
        %1866 = vmatprep.subr.mxu0 0.0
        %1867 = vmatpush1.msra.mxu0 %v1839
        %1868 = vmatprep.subr.mxu0 0.0
        %1869 = vmatpush1.msra.mxu0 %v1840
        %1870 = vmatprep.subr.mxu0 0.0
        %1871 = vmatpush1.msra.mxu0 0.0
        %1872 = vmatprep.subr.mxu0 0.0
        %1873 = vmatpush1.msra.mxu0 0.0
        %1874 = vmatprep.subr.mxu0 0.0
        %1875 = vmatpush1.msra.mxu0 0.0
        %1876 = vmatprep.subr.mxu0 0.0
        %1877 = vmatpush1.msra.mxu0 0.0
        %1878 = vmatprep.subr.mxu0 0.0
        %1879 = vmatpush1.msra.mxu0 0.0
        %1880 = vmatprep.subr.mxu0 0.0
        %1881 = vmatpush1.msra.mxu0 0.0
        %1882 = vmatprep.subr.mxu0 0.0
        %1883 = vmatpush1.msra.mxu0 0.0
        %1884 = vmatprep.subr.mxu0 0.0
        %1885 = vmatpush1.msra.mxu0 0.0
        %1886 = vmatprep.subr.mxu0 0.0
        %1887 = vmatpush1.msra.mxu0 0.0
        %1888 = vmatprep.subr.mxu0 0.0
        %1889 = vmatpush1.msra.mxu0 0.0
        %1890 = vmatprep.subr.mxu0 0.0
        %1891 = vmatpush1.msra.mxu0 0.0
        %1892 = vmatprep.subr.mxu0 0.0
        %1893 = vmatpush1.msra.mxu0 0.0
        %1894 = vmatprep.subr.mxu0 0.0
        %1895 = vmatpush1.msra.mxu0 0.0
        %1896 = vmatprep.subr.mxu0 0.0
        %1897 = vmatpush1.msra.mxu0 0.0
        %1898 = vmatprep.subr.mxu0 0.0
        %1899 = vmatpush1.msra.mxu0 0.0
        %1900 = vmatprep.subr.mxu0 0.0
        %1901 = vmatpush1.msra.mxu0 0.0
        %1902 = vmatprep.subr.mxu0 0.0
        %1903 = vmatpush1.msra.mxu0 0.0
        %1904 = vmatprep.subr.mxu0 0.0
        %1905 = vmatpush1.msra.mxu0 0.0
        %1906 = vmatprep.subr.mxu0 0.0
        %1907 = vmatpush1.msra.mxu0 0.0
        %1908 = vmatprep.subr.mxu0 0.0
        %1909 = vmatpush1.msra.mxu0 0.0
        %1910 = vmatprep.subr.mxu0 0.0
        %1911 = vmatpush1.msra.mxu0 0.0
        %1912 = vmatprep.subr.mxu0 0.0
        %1913 = vmatpush1.msra.mxu0 0.0
        %1914 = vmatprep.subr.mxu0 0.0
        %1915 = vmatpush1.msra.mxu0 0.0
        %1916 = vmatprep.subr.mxu0 0.0
        %1917 = vmatpush1.msra.mxu0 0.0
        %1918 = vmatprep.subr.mxu0 0.0
        %1919 = vmatpush1.msra.mxu0 0.0
        %1920 = vmatprep.subr.mxu0 0.0
        %1921 = vmatpush1.msra.mxu0 0.0
        %1922 = vmatprep.subr.mxu0 0.0
        %1923 = vmatpush1.msra.mxu0 0.0
        %1924 = vmatprep.subr.mxu0 0.0
        %1925 = vmatpush1.msra.mxu0 0.0
        %1926 = vmatprep.mubr.f32.mxu0 0.0
        %1927 = vmatmul.mubr.f32.gmra.mrb[0].mxu0 %v1842
        %v1928 = vpop.f32.mrb[0].mxu0
        %v1929 = vadd.f32 0.0, %v1928
        %v1930 = vpop.f32.mrb[0].mxu0
        %1931 = vmatprep.mubr.f32.mxu0 0.0
        %1932 = vmatmul.mubr.f32.gmra.mrb[0].mxu0 %v1845
        %v1933 = vpop.f32.mrb[0].mxu0
        %v1934 = vadd.f32 0.0, %v1933
        %v1935 = vpop.f32.mrb[0].mxu0
        %1936 = vmatprep.mubr.f32.mxu0 0.0
        %1937 = vmatmul.mubr.f32.gmra.mrb[0].mxu0 %v1848
        %v1938 = vpop.f32.mrb[0].mxu0
        %v1939 = vadd.f32 0.0, %v1938
        %v1940 = vpop.f32.mrb[0].mxu0
        %1941 = vmatprep.mubr.f32.mxu0 0.0
        %1942 = vmatmul.mubr.f32.gmra.mrb[0].mxu0 %v1851
        %v1943 = vpop.f32.mrb[0].mxu0
        %v1944 = vadd.f32 0.0, %v1943
        %v1945 = vpop.f32.mrb[0].mxu0
        %1946 = vmatprep.mubr.f32.mxu0 0.0
        %1947 = vmatmul.mubr.f32.gmra.mrb[0].mxu0 %v1854
        %v1948 = vpop.f32.mrb[0].mxu0
        %v1949 = vadd.f32 0.0, %v1948
        %v1950 = vpop.f32.mrb[0].mxu0
        %1951 = vmatprep.mubr.f32.mxu0 0.0
        %1952 = vmatmul.mubr.f32.gmra.mrb[0].mxu0 %v1857
        %v1953 = vpop.f32.mrb[0].mxu0
        %v1954 = vadd.f32 0.0, %v1953
        %v1955 = vpop.f32.mrb[0].mxu0
        %1956 = vmatprep.mubr.f32.mxu0 0.0
        %1957 = vmatmul.mubr.f32.gmra.mrb[0].mxu0 %v1860
        %v1958 = vpop.f32.mrb[0].mxu0
        %v1959 = vadd.f32 0.0, %v1958
        %v1960 = vpop.f32.mrb[0].mxu0
        %1961 = vdwg.mxu0
        %v1962 = vadd.f32 %v1693, %v1929
        %v1963 = vadd.f32 %v1694, %v1934
        %v1964 = vadd.f32 %v1695, %v1939
        %v1965 = vadd.f32 %v1696, %v1944
        %v1966 = vadd.f32 %v1697, %v1949
        %v1967 = vadd.f32 %v1698, %v1954
        %v1968 = vadd.f32 %v1699, %v1959
        %s1969 = scalar_lea.vmem %s3, 560
        %v1970 = vld [vmem:[%s1969] sm:$0xff]
        %v1971 = vld [vmem:[%s1969 + $0x8] sm:$0xff]
        %v1972 = vld [vmem:[%s1969 + $0x10] sm:$0xff]
        %v1973 = vld [vmem:[%s1969 + $0x18] sm:$0xff]
        %v1974 = vld [vmem:[%s1969 + $0x20] sm:$0xff]
        %v1975 = vld [vmem:[%s1969 + $0x28] sm:$0xff]
        %v1976 = vld [vmem:[%s1969 + $0x30] sm:$0xff]
        %v1977 = vld [vmem:[%s1969 + $0x38] sm:$0xff]
        %v1978 = vld [vmem:[%s1969 + $0x40] sm:$0xff]
        %v1979 = vld [vmem:[%s1969 + $0x48] sm:$0xff]
        %v1980 = vld [vmem:[%s1969 + $0x50] sm:$0xff]
        %v1981 = vld [vmem:[%s1969 + $0x58] sm:$0xff]
        %v1982 = vld [vmem:[%s1969 + $0x60] sm:$0x1]
        %v1983 = vld [vmem:[%s1969 + $0x68] sm:$0x1]
        %v1985 = vsel %vm648, %v1971, 0
        %v1988 = vsel %vm648, %v1973, 0
        %v1991 = vsel %vm648, %v1975, 0
        %v1994 = vsel %vm648, %v1977, 0
        %v1997 = vsel %vm648, %v1979, 0
        %v2000 = vsel %vm648, %v1981, 0
        %v2003 = vsel %vm648, %v1983, 0
        %2005 = vmatprep.subr.mxu0 0.0
        %2006 = vmatpush1.msra.mxu0 %v609
        %2007 = vmatprep.subr.mxu0 0.0
        %2008 = vmatpush1.msra.mxu0 %v610
        %2009 = vmatprep.subr.mxu0 0.0
        %2010 = vmatpush1.msra.mxu0 %v611
        %2011 = vmatprep.subr.mxu0 0.0
        %2012 = vmatpush1.msra.mxu0 %v612
        %2013 = vmatprep.subr.mxu0 0.0
        %2014 = vmatpush1.msra.mxu0 %v613
        %2015 = vmatprep.subr.mxu0 0.0
        %2016 = vmatpush1.msra.mxu0 %v614
        %2017 = vmatprep.subr.mxu0 0.0
        %2018 = vmatpush1.msra.mxu0 %v615
        %2019 = vmatprep.subr.mxu0 0.0
        %2020 = vmatpush1.msra.mxu0 %v616
        %2021 = vmatprep.subr.mxu0 0.0
        %2022 = vmatpush1.msra.mxu0 %v617
        %2023 = vmatprep.subr.mxu0 0.0
        %2024 = vmatpush1.msra.mxu0 %v618
        %2025 = vmatprep.subr.mxu0 0.0
        %2026 = vmatpush1.msra.mxu0 %v619
        %2027 = vmatprep.subr.mxu0 0.0
        %2028 = vmatpush1.msra.mxu0 %v620
        %2029 = vmatprep.subr.mxu0 0.0
        %2030 = vmatpush1.msra.mxu0 %v621
        %2031 = vmatprep.subr.mxu0 0.0
        %2032 = vmatpush1.msra.mxu0 %v622
        %2033 = vmatprep.subr.mxu0 0.0
        %2034 = vmatpush1.msra.mxu0 %v623
        %2035 = vmatprep.subr.mxu0 0.0
        %2036 = vmatpush1.msra.mxu0 %v624
        %2037 = vmatprep.subr.mxu0 0.0
        %2038 = vmatpush1.msra.mxu0 %v625
        %2039 = vmatprep.subr.mxu0 0.0
        %2040 = vmatpush1.msra.mxu0 %v626
        %2041 = vmatprep.subr.mxu0 0.0
        %2042 = vmatpush1.msra.mxu0 %v627
        %2043 = vmatprep.subr.mxu0 0.0
        %2044 = vmatpush1.msra.mxu0 %v628
        %2045 = vmatprep.subr.mxu0 0.0
        %2046 = vmatpush1.msra.mxu0 %v629
        %2047 = vmatprep.subr.mxu0 0.0
        %2048 = vmatpush1.msra.mxu0 %v630
        %2049 = vmatprep.subr.mxu0 0.0
        %2050 = vmatpush1.msra.mxu0 %v631
        %2051 = vmatprep.subr.mxu0 0.0
        %2052 = vmatpush1.msra.mxu0 %v632
        %2053 = vmatprep.subr.mxu0 0.0
        %2054 = vmatpush1.msra.mxu0 %v672
        %2055 = vmatprep.subr.mxu0 0.0
        %2056 = vmatpush1.msra.mxu0 0.0
        %2057 = vmatprep.subr.mxu0 0.0
        %2058 = vmatpush1.msra.mxu0 0.0
        %2059 = vmatprep.subr.mxu0 0.0
        %2060 = vmatpush1.msra.mxu0 0.0
        %2061 = vmatprep.subr.mxu0 0.0
        %2062 = vmatpush1.msra.mxu0 0.0
        %2063 = vmatprep.subr.mxu0 0.0
        %2064 = vmatpush1.msra.mxu0 0.0
        %2065 = vmatprep.subr.mxu0 0.0
        %2066 = vmatpush1.msra.mxu0 0.0
        %2067 = vmatprep.subr.mxu0 0.0
        %2068 = vmatpush1.msra.mxu0 0.0
        %2069 = vmatprep.mubr.f32.mxu0 %v1985
        %2070 = vmatmul.mubr.f32.gmra.mrb[0].mxu0 %v1970
        %v2071 = vpop.f32.mrb[0].mxu0
        %v2072 = vadd.f32 0.0, %v2071
        %v2073 = vpop.f32.mrb[0].mxu0
        %2074 = vmatprep.mubr.f32.mxu0 %v1988
        %2075 = vmatmul.mubr.f32.gmra.mrb[0].mxu0 %v1972
        %v2076 = vpop.f32.mrb[0].mxu0
        %v2077 = vadd.f32 0.0, %v2076
        %v2078 = vpop.f32.mrb[0].mxu0
        %2079 = vmatprep.mubr.f32.mxu0 %v1991
        %2080 = vmatmul.mubr.f32.gmra.mrb[0].mxu0 %v1974
        %v2081 = vpop.f32.mrb[0].mxu0
        %v2082 = vadd.f32 0.0, %v2081
        %v2083 = vpop.f32.mrb[0].mxu0
        %2084 = vmatprep.mubr.f32.mxu0 %v1994
        %2085 = vmatmul.mubr.f32.gmra.mrb[0].mxu0 %v1976
        %v2086 = vpop.f32.mrb[0].mxu0
        %v2087 = vadd.f32 0.0, %v2086
        %v2088 = vpop.f32.mrb[0].mxu0
        %2089 = vmatprep.mubr.f32.mxu0 %v1997
        %2090 = vmatmul.mubr.f32.gmra.mrb[0].mxu0 %v1978
        %v2091 = vpop.f32.mrb[0].mxu0
        %v2092 = vadd.f32 0.0, %v2091
        %v2093 = vpop.f32.mrb[0].mxu0
        %2094 = vmatprep.mubr.f32.mxu0 %v2000
        %2095 = vmatmul.mubr.f32.gmra.mrb[0].mxu0 %v1980
        %v2096 = vpop.f32.mrb[0].mxu0
        %v2097 = vadd.f32 0.0, %v2096
        %v2098 = vpop.f32.mrb[0].mxu0
        %2099 = vmatprep.mubr.f32.mxu0 %v2003
        %2100 = vmatmul.mubr.f32.gmra.mrb[0].mxu0 %v1982
        %v2101 = vpop.f32.mrb[0].mxu0
        %v2102 = vadd.f32 0.0, %v2101
        %v2103 = vpop.f32.mrb[0].mxu0
        %2104 = vdwg.mxu0
        %s2105 = scalar_lea.vmem %s4, 160
        %v2106 = vld [vmem:[%s2105] sm:$0xff]
        %v2107 = vld [vmem:[%s2105 + $0x8] sm:$0xff]
        %v2108 = vld [vmem:[%s2105 + $0x10] sm:$0xff]
        %v2109 = vld [vmem:[%s2105 + $0x18] sm:$0xff]
        %v2111 = vsel %vm919, %v2072, 0
        %v2114 = vsel %vm919, %v2077, 0
        %v2117 = vsel %vm919, %v2082, 0
        %v2120 = vsel %vm919, %v2087, 0
        %v2123 = vsel %vm919, %v2092, 0
        %v2126 = vsel %vm919, %v2097, 0
        %v2129 = vsel %vm919, %v2102, 0
        %2131 = vmatprep.subr.mxu0 0.0
        %2132 = vmatpush1.msra.mxu0 %v2106
        %2133 = vmatprep.subr.mxu0 0.0
        %2134 = vmatpush1.msra.mxu0 %v2107
        %2135 = vmatprep.subr.mxu0 0.0
        %2136 = vmatpush1.msra.mxu0 %v2108
        %2137 = vmatprep.subr.mxu0 0.0
        %2138 = vmatpush1.msra.mxu0 %v2109
        %2139 = vmatprep.subr.mxu0 0.0
        %2140 = vmatpush1.msra.mxu0 0.0
        %2141 = vmatprep.subr.mxu0 0.0
        %2142 = vmatpush1.msra.mxu0 0.0
        %2143 = vmatprep.subr.mxu0 0.0
        %2144 = vmatpush1.msra.mxu0 0.0
        %2145 = vmatprep.subr.mxu0 0.0
        %2146 = vmatpush1.msra.mxu0 0.0
        %2147 = vmatprep.subr.mxu0 0.0
        %2148 = vmatpush1.msra.mxu0 0.0
        %2149 = vmatprep.subr.mxu0 0.0
        %2150 = vmatpush1.msra.mxu0 0.0
        %2151 = vmatprep.subr.mxu0 0.0
        %2152 = vmatpush1.msra.mxu0 0.0
        %2153 = vmatprep.subr.mxu0 0.0
        %2154 = vmatpush1.msra.mxu0 0.0
        %2155 = vmatprep.subr.mxu0 0.0
        %2156 = vmatpush1.msra.mxu0 0.0
        %2157 = vmatprep.subr.mxu0 0.0
        %2158 = vmatpush1.msra.mxu0 0.0
        %2159 = vmatprep.subr.mxu0 0.0
        %2160 = vmatpush1.msra.mxu0 0.0
        %2161 = vmatprep.subr.mxu0 0.0
        %2162 = vmatpush1.msra.mxu0 0.0
        %2163 = vmatprep.subr.mxu0 0.0
        %2164 = vmatpush1.msra.mxu0 0.0
        %2165 = vmatprep.subr.mxu0 0.0
        %2166 = vmatpush1.msra.mxu0 0.0
        %2167 = vmatprep.subr.mxu0 0.0
        %2168 = vmatpush1.msra.mxu0 0.0
        %2169 = vmatprep.subr.mxu0 0.0
        %2170 = vmatpush1.msra.mxu0 0.0
        %2171 = vmatprep.subr.mxu0 0.0
        %2172 = vmatpush1.msra.mxu0 0.0
        %2173 = vmatprep.subr.mxu0 0.0
        %2174 = vmatpush1.msra.mxu0 0.0
        %2175 = vmatprep.subr.mxu0 0.0
        %2176 = vmatpush1.msra.mxu0 0.0
        %2177 = vmatprep.subr.mxu0 0.0
        %2178 = vmatpush1.msra.mxu0 0.0
        %2179 = vmatprep.subr.mxu0 0.0
        %2180 = vmatpush1.msra.mxu0 0.0
        %2181 = vmatprep.subr.mxu0 0.0
        %2182 = vmatpush1.msra.mxu0 0.0
        %2183 = vmatprep.subr.mxu0 0.0
        %2184 = vmatpush1.msra.mxu0 0.0
        %2185 = vmatprep.subr.mxu0 0.0
        %2186 = vmatpush1.msra.mxu0 0.0
        %2187 = vmatprep.subr.mxu0 0.0
        %2188 = vmatpush1.msra.mxu0 0.0
        %2189 = vmatprep.subr.mxu0 0.0
        %2190 = vmatpush1.msra.mxu0 0.0
        %2191 = vmatprep.subr.mxu0 0.0
        %2192 = vmatpush1.msra.mxu0 0.0
        %2193 = vmatprep.subr.mxu0 0.0
        %2194 = vmatpush1.msra.mxu0 0.0
        %2195 = vmatprep.mubr.f32.mxu0 0.0
        %2196 = vmatmul.mubr.f32.gmra.mrb[0].mxu0 %v2111
        %v2197 = vpop.f32.mrb[0].mxu0
        %v2198 = vadd.f32 0.0, %v2197
        %v2199 = vpop.f32.mrb[0].mxu0
        %2200 = vmatprep.mubr.f32.mxu0 0.0
        %2201 = vmatmul.mubr.f32.gmra.mrb[0].mxu0 %v2114
        %v2202 = vpop.f32.mrb[0].mxu0
        %v2203 = vadd.f32 0.0, %v2202
        %v2204 = vpop.f32.mrb[0].mxu0
        %2205 = vmatprep.mubr.f32.mxu0 0.0
        %2206 = vmatmul.mubr.f32.gmra.mrb[0].mxu0 %v2117
        %v2207 = vpop.f32.mrb[0].mxu0
        %v2208 = vadd.f32 0.0, %v2207
        %v2209 = vpop.f32.mrb[0].mxu0
        %2210 = vmatprep.mubr.f32.mxu0 0.0
        %2211 = vmatmul.mubr.f32.gmra.mrb[0].mxu0 %v2120
        %v2212 = vpop.f32.mrb[0].mxu0
        %v2213 = vadd.f32 0.0, %v2212
        %v2214 = vpop.f32.mrb[0].mxu0
        %2215 = vmatprep.mubr.f32.mxu0 0.0
        %2216 = vmatmul.mubr.f32.gmra.mrb[0].mxu0 %v2123
        %v2217 = vpop.f32.mrb[0].mxu0
        %v2218 = vadd.f32 0.0, %v2217
        %v2219 = vpop.f32.mrb[0].mxu0
        %2220 = vmatprep.mubr.f32.mxu0 0.0
        %2221 = vmatmul.mubr.f32.gmra.mrb[0].mxu0 %v2126
        %v2222 = vpop.f32.mrb[0].mxu0
        %v2223 = vadd.f32 0.0, %v2222
        %v2224 = vpop.f32.mrb[0].mxu0
        %2225 = vmatprep.mubr.f32.mxu0 0.0
        %2226 = vmatmul.mubr.f32.gmra.mrb[0].mxu0 %v2129
        %v2227 = vpop.f32.mrb[0].mxu0
        %v2228 = vadd.f32 0.0, %v2227
        %v2229 = vpop.f32.mrb[0].mxu0
        %2230 = vdwg.mxu0
        %v2231 = vadd.f32 %v1962, %v2198
        %v2232 = vadd.f32 %v1963, %v2203
        %v2233 = vadd.f32 %v1964, %v2208
        %v2234 = vadd.f32 %v1965, %v2213
        %v2235 = vadd.f32 %v1966, %v2218
        %v2236 = vadd.f32 %v1967, %v2223
        %v2237 = vadd.f32 %v1968, %v2228
        %s2238 = scalar_lea.vmem %s3, 672
        %v2239 = vld [vmem:[%s2238] sm:$0xff]
        %v2240 = vld [vmem:[%s2238 + $0x8] sm:$0xff]
        %v2241 = vld [vmem:[%s2238 + $0x10] sm:$0xff]
        %v2242 = vld [vmem:[%s2238 + $0x18] sm:$0xff]
        %v2243 = vld [vmem:[%s2238 + $0x20] sm:$0xff]
        %v2244 = vld [vmem:[%s2238 + $0x28] sm:$0xff]
        %v2245 = vld [vmem:[%s2238 + $0x30] sm:$0xff]
        %v2246 = vld [vmem:[%s2238 + $0x38] sm:$0xff]
        %v2247 = vld [vmem:[%s2238 + $0x40] sm:$0xff]
        %v2248 = vld [vmem:[%s2238 + $0x48] sm:$0xff]
        %v2249 = vld [vmem:[%s2238 + $0x50] sm:$0xff]
        %v2250 = vld [vmem:[%s2238 + $0x58] sm:$0xff]
        %v2251 = vld [vmem:[%s2238 + $0x60] sm:$0x1]
        %v2252 = vld [vmem:[%s2238 + $0x68] sm:$0x1]
        %v2254 = vsel %vm648, %v2240, 0
        %v2257 = vsel %vm648, %v2242, 0
        %v2260 = vsel %vm648, %v2244, 0
        %v2263 = vsel %vm648, %v2246, 0
        %v2266 = vsel %vm648, %v2248, 0
        %v2269 = vsel %vm648, %v2250, 0
        %v2272 = vsel %vm648, %v2252, 0
        %2274 = vmatprep.subr.mxu0 0.0
        %2275 = vmatpush1.msra.mxu0 %v609
        %2276 = vmatprep.subr.mxu0 0.0
        %2277 = vmatpush1.msra.mxu0 %v610
        %2278 = vmatprep.subr.mxu0 0.0
        %2279 = vmatpush1.msra.mxu0 %v611
        %2280 = vmatprep.subr.mxu0 0.0
        %2281 = vmatpush1.msra.mxu0 %v612
        %2282 = vmatprep.subr.mxu0 0.0
        %2283 = vmatpush1.msra.mxu0 %v613
        %2284 = vmatprep.subr.mxu0 0.0
        %2285 = vmatpush1.msra.mxu0 %v614
        %2286 = vmatprep.subr.mxu0 0.0
        %2287 = vmatpush1.msra.mxu0 %v615
        %2288 = vmatprep.subr.mxu0 0.0
        %2289 = vmatpush1.msra.mxu0 %v616
        %2290 = vmatprep.subr.mxu0 0.0
        %2291 = vmatpush1.msra.mxu0 %v617
        %2292 = vmatprep.subr.mxu0 0.0
        %2293 = vmatpush1.msra.mxu0 %v618
        %2294 = vmatprep.subr.mxu0 0.0
        %2295 = vmatpush1.msra.mxu0 %v619
        %2296 = vmatprep.subr.mxu0 0.0
        %2297 = vmatpush1.msra.mxu0 %v620
        %2298 = vmatprep.subr.mxu0 0.0
        %2299 = vmatpush1.msra.mxu0 %v621
        %2300 = vmatprep.subr.mxu0 0.0
        %2301 = vmatpush1.msra.mxu0 %v622
        %2302 = vmatprep.subr.mxu0 0.0
        %2303 = vmatpush1.msra.mxu0 %v623
        %2304 = vmatprep.subr.mxu0 0.0
        %2305 = vmatpush1.msra.mxu0 %v624
        %2306 = vmatprep.subr.mxu0 0.0
        %2307 = vmatpush1.msra.mxu0 %v625
        %2308 = vmatprep.subr.mxu0 0.0
        %2309 = vmatpush1.msra.mxu0 %v626
        %2310 = vmatprep.subr.mxu0 0.0
        %2311 = vmatpush1.msra.mxu0 %v627
        %2312 = vmatprep.subr.mxu0 0.0
        %2313 = vmatpush1.msra.mxu0 %v628
        %2314 = vmatprep.subr.mxu0 0.0
        %2315 = vmatpush1.msra.mxu0 %v629
        %2316 = vmatprep.subr.mxu0 0.0
        %2317 = vmatpush1.msra.mxu0 %v630
        %2318 = vmatprep.subr.mxu0 0.0
        %2319 = vmatpush1.msra.mxu0 %v631
        %2320 = vmatprep.subr.mxu0 0.0
        %2321 = vmatpush1.msra.mxu0 %v632
        %2322 = vmatprep.subr.mxu0 0.0
        %2323 = vmatpush1.msra.mxu0 %v672
        %2324 = vmatprep.subr.mxu0 0.0
        %2325 = vmatpush1.msra.mxu0 0.0
        %2326 = vmatprep.subr.mxu0 0.0
        %2327 = vmatpush1.msra.mxu0 0.0
        %2328 = vmatprep.subr.mxu0 0.0
        %2329 = vmatpush1.msra.mxu0 0.0
        %2330 = vmatprep.subr.mxu0 0.0
        %2331 = vmatpush1.msra.mxu0 0.0
        %2332 = vmatprep.subr.mxu0 0.0
        %2333 = vmatpush1.msra.mxu0 0.0
        %2334 = vmatprep.subr.mxu0 0.0
        %2335 = vmatpush1.msra.mxu0 0.0
        %2336 = vmatprep.subr.mxu0 0.0
        %2337 = vmatpush1.msra.mxu0 0.0
        %2338 = vmatprep.mubr.f32.mxu0 %v2254
        %2339 = vmatmul.mubr.f32.gmra.mrb[0].mxu0 %v2239
        %v2340 = vpop.f32.mrb[0].mxu0
        %v2341 = vadd.f32 0.0, %v2340
        %v2342 = vpop.f32.mrb[0].mxu0
        %2343 = vmatprep.mubr.f32.mxu0 %v2257
        %2344 = vmatmul.mubr.f32.gmra.mrb[0].mxu0 %v2241
        %v2345 = vpop.f32.mrb[0].mxu0
        %v2346 = vadd.f32 0.0, %v2345
        %v2347 = vpop.f32.mrb[0].mxu0
        %2348 = vmatprep.mubr.f32.mxu0 %v2260
        %2349 = vmatmul.mubr.f32.gmra.mrb[0].mxu0 %v2243
        %v2350 = vpop.f32.mrb[0].mxu0
        %v2351 = vadd.f32 0.0, %v2350
        %v2352 = vpop.f32.mrb[0].mxu0
        %2353 = vmatprep.mubr.f32.mxu0 %v2263
        %2354 = vmatmul.mubr.f32.gmra.mrb[0].mxu0 %v2245
        %v2355 = vpop.f32.mrb[0].mxu0
        %v2356 = vadd.f32 0.0, %v2355
        %v2357 = vpop.f32.mrb[0].mxu0
        %2358 = vmatprep.mubr.f32.mxu0 %v2266
        %2359 = vmatmul.mubr.f32.gmra.mrb[0].mxu0 %v2247
        %v2360 = vpop.f32.mrb[0].mxu0
        %v2361 = vadd.f32 0.0, %v2360
        %v2362 = vpop.f32.mrb[0].mxu0
        %2363 = vmatprep.mubr.f32.mxu0 %v2269
        %2364 = vmatmul.mubr.f32.gmra.mrb[0].mxu0 %v2249
        %v2365 = vpop.f32.mrb[0].mxu0
        %v2366 = vadd.f32 0.0, %v2365
        %v2367 = vpop.f32.mrb[0].mxu0
        %2368 = vmatprep.mubr.f32.mxu0 %v2272
        %2369 = vmatmul.mubr.f32.gmra.mrb[0].mxu0 %v2251
        %v2370 = vpop.f32.mrb[0].mxu0
        %v2371 = vadd.f32 0.0, %v2370
        %v2372 = vpop.f32.mrb[0].mxu0
        %2373 = vdwg.mxu0
        %s2374 = scalar_lea.vmem %s4, 192
        %v2375 = vld [vmem:[%s2374] sm:$0xff]
        %v2376 = vld [vmem:[%s2374 + $0x8] sm:$0xff]
        %v2377 = vld [vmem:[%s2374 + $0x10] sm:$0xff]
        %v2378 = vld [vmem:[%s2374 + $0x18] sm:$0xff]
        %v2380 = vsel %vm919, %v2341, 0
        %v2383 = vsel %vm919, %v2346, 0
        %v2386 = vsel %vm919, %v2351, 0
        %v2389 = vsel %vm919, %v2356, 0
        %v2392 = vsel %vm919, %v2361, 0
        %v2395 = vsel %vm919, %v2366, 0
        %v2398 = vsel %vm919, %v2371, 0
        %2400 = vmatprep.subr.mxu0 0.0
        %2401 = vmatpush1.msra.mxu0 %v2375
        %2402 = vmatprep.subr.mxu0 0.0
        %2403 = vmatpush1.msra.mxu0 %v2376
        %2404 = vmatprep.subr.mxu0 0.0
        %2405 = vmatpush1.msra.mxu0 %v2377
        %2406 = vmatprep.subr.mxu0 0.0
        %2407 = vmatpush1.msra.mxu0 %v2378
        %2408 = vmatprep.subr.mxu0 0.0
        %2409 = vmatpush1.msra.mxu0 0.0
        %2410 = vmatprep.subr.mxu0 0.0
        %2411 = vmatpush1.msra.mxu0 0.0
        %2412 = vmatprep.subr.mxu0 0.0
        %2413 = vmatpush1.msra.mxu0 0.0
        %2414 = vmatprep.subr.mxu0 0.0
        %2415 = vmatpush1.msra.mxu0 0.0
        %2416 = vmatprep.subr.mxu0 0.0
        %2417 = vmatpush1.msra.mxu0 0.0
        %2418 = vmatprep.subr.mxu0 0.0
        %2419 = vmatpush1.msra.mxu0 0.0
        %2420 = vmatprep.subr.mxu0 0.0
        %2421 = vmatpush1.msra.mxu0 0.0
        %2422 = vmatprep.subr.mxu0 0.0
        %2423 = vmatpush1.msra.mxu0 0.0
        %2424 = vmatprep.subr.mxu0 0.0
        %2425 = vmatpush1.msra.mxu0 0.0
        %2426 = vmatprep.subr.mxu0 0.0
        %2427 = vmatpush1.msra.mxu0 0.0
        %2428 = vmatprep.subr.mxu0 0.0
        %2429 = vmatpush1.msra.mxu0 0.0
        %2430 = vmatprep.subr.mxu0 0.0
        %2431 = vmatpush1.msra.mxu0 0.0
        %2432 = vmatprep.subr.mxu0 0.0
        %2433 = vmatpush1.msra.mxu0 0.0
        %2434 = vmatprep.subr.mxu0 0.0
        %2435 = vmatpush1.msra.mxu0 0.0
        %2436 = vmatprep.subr.mxu0 0.0
        %2437 = vmatpush1.msra.mxu0 0.0
        %2438 = vmatprep.subr.mxu0 0.0
        %2439 = vmatpush1.msra.mxu0 0.0
        %2440 = vmatprep.subr.mxu0 0.0
        %2441 = vmatpush1.msra.mxu0 0.0
        %2442 = vmatprep.subr.mxu0 0.0
        %2443 = vmatpush1.msra.mxu0 0.0
        %2444 = vmatprep.subr.mxu0 0.0
        %2445 = vmatpush1.msra.mxu0 0.0
        %2446 = vmatprep.subr.mxu0 0.0
        %2447 = vmatpush1.msra.mxu0 0.0
        %2448 = vmatprep.subr.mxu0 0.0
        %2449 = vmatpush1.msra.mxu0 0.0
        %2450 = vmatprep.subr.mxu0 0.0
        %2451 = vmatpush1.msra.mxu0 0.0
        %2452 = vmatprep.subr.mxu0 0.0
        %2453 = vmatpush1.msra.mxu0 0.0
        %2454 = vmatprep.subr.mxu0 0.0
        %2455 = vmatpush1.msra.mxu0 0.0
        %2456 = vmatprep.subr.mxu0 0.0
        %2457 = vmatpush1.msra.mxu0 0.0
        %2458 = vmatprep.subr.mxu0 0.0
        %2459 = vmatpush1.msra.mxu0 0.0
        %2460 = vmatprep.subr.mxu0 0.0
        %2461 = vmatpush1.msra.mxu0 0.0
        %2462 = vmatprep.subr.mxu0 0.0
        %2463 = vmatpush1.msra.mxu0 0.0
        %2464 = vmatprep.mubr.f32.mxu0 0.0
        %2465 = vmatmul.mubr.f32.gmra.mrb[0].mxu0 %v2380
        %v2466 = vpop.f32.mrb[0].mxu0
        %v2467 = vadd.f32 0.0, %v2466
        %v2468 = vpop.f32.mrb[0].mxu0
        %2469 = vmatprep.mubr.f32.mxu0 0.0
        %2470 = vmatmul.mubr.f32.gmra.mrb[0].mxu0 %v2383
        %v2471 = vpop.f32.mrb[0].mxu0
        %v2472 = vadd.f32 0.0, %v2471
        %v2473 = vpop.f32.mrb[0].mxu0
        %2474 = vmatprep.mubr.f32.mxu0 0.0
        %2475 = vmatmul.mubr.f32.gmra.mrb[0].mxu0 %v2386
        %v2476 = vpop.f32.mrb[0].mxu0
        %v2477 = vadd.f32 0.0, %v2476
        %v2478 = vpop.f32.mrb[0].mxu0
        %2479 = vmatprep.mubr.f32.mxu0 0.0
        %2480 = vmatmul.mubr.f32.gmra.mrb[0].mxu0 %v2389
        %v2481 = vpop.f32.mrb[0].mxu0
        %v2482 = vadd.f32 0.0, %v2481
        %v2483 = vpop.f32.mrb[0].mxu0
        %2484 = vmatprep.mubr.f32.mxu0 0.0
        %2485 = vmatmul.mubr.f32.gmra.mrb[0].mxu0 %v2392
        %v2486 = vpop.f32.mrb[0].mxu0
        %v2487 = vadd.f32 0.0, %v2486
        %v2488 = vpop.f32.mrb[0].mxu0
        %2489 = vmatprep.mubr.f32.mxu0 0.0
        %2490 = vmatmul.mubr.f32.gmra.mrb[0].mxu0 %v2395
        %v2491 = vpop.f32.mrb[0].mxu0
        %v2492 = vadd.f32 0.0, %v2491
        %v2493 = vpop.f32.mrb[0].mxu0
        %2494 = vmatprep.mubr.f32.mxu0 0.0
        %2495 = vmatmul.mubr.f32.gmra.mrb[0].mxu0 %v2398
        %v2496 = vpop.f32.mrb[0].mxu0
        %v2497 = vadd.f32 0.0, %v2496
        %v2498 = vpop.f32.mrb[0].mxu0
        %2499 = vdwg.mxu0
        %v2500 = vadd.f32 %v2231, %v2467
        %v2501 = vadd.f32 %v2232, %v2472
        %v2502 = vadd.f32 %v2233, %v2477
        %v2503 = vadd.f32 %v2234, %v2482
        %v2504 = vadd.f32 %v2235, %v2487
        %v2505 = vadd.f32 %v2236, %v2492
        %v2506 = vadd.f32 %v2237, %v2497
        %s2507 = scalar_lea.vmem %s3, 784
        %v2508 = vld [vmem:[%s2507] sm:$0xff]
        %v2509 = vld [vmem:[%s2507 + $0x8] sm:$0xff]
        %v2510 = vld [vmem:[%s2507 + $0x10] sm:$0xff]
        %v2511 = vld [vmem:[%s2507 + $0x18] sm:$0xff]
        %v2512 = vld [vmem:[%s2507 + $0x20] sm:$0xff]
        %v2513 = vld [vmem:[%s2507 + $0x28] sm:$0xff]
        %v2514 = vld [vmem:[%s2507 + $0x30] sm:$0xff]
        %v2515 = vld [vmem:[%s2507 + $0x38] sm:$0xff]
        %v2516 = vld [vmem:[%s2507 + $0x40] sm:$0xff]
        %v2517 = vld [vmem:[%s2507 + $0x48] sm:$0xff]
        %v2518 = vld [vmem:[%s2507 + $0x50] sm:$0xff]
        %v2519 = vld [vmem:[%s2507 + $0x58] sm:$0xff]
        %v2520 = vld [vmem:[%s2507 + $0x60] sm:$0x1]
        %v2521 = vld [vmem:[%s2507 + $0x68] sm:$0x1]
        %v2523 = vsel %vm648, %v2509, 0
        %v2526 = vsel %vm648, %v2511, 0
        %v2529 = vsel %vm648, %v2513, 0
        %v2532 = vsel %vm648, %v2515, 0
        %v2535 = vsel %vm648, %v2517, 0
        %v2538 = vsel %vm648, %v2519, 0
        %v2541 = vsel %vm648, %v2521, 0
        %2543 = vmatprep.subr.mxu0 0.0
        %2544 = vmatpush1.msra.mxu0 %v609
        %2545 = vmatprep.subr.mxu0 0.0
        %2546 = vmatpush1.msra.mxu0 %v610
        %2547 = vmatprep.subr.mxu0 0.0
        %2548 = vmatpush1.msra.mxu0 %v611
        %2549 = vmatprep.subr.mxu0 0.0
        %2550 = vmatpush1.msra.mxu0 %v612
        %2551 = vmatprep.subr.mxu0 0.0
        %2552 = vmatpush1.msra.mxu0 %v613
        %2553 = vmatprep.subr.mxu0 0.0
        %2554 = vmatpush1.msra.mxu0 %v614
        %2555 = vmatprep.subr.mxu0 0.0
        %2556 = vmatpush1.msra.mxu0 %v615
        %2557 = vmatprep.subr.mxu0 0.0
        %2558 = vmatpush1.msra.mxu0 %v616
        %2559 = vmatprep.subr.mxu0 0.0
        %2560 = vmatpush1.msra.mxu0 %v617
        %2561 = vmatprep.subr.mxu0 0.0
        %2562 = vmatpush1.msra.mxu0 %v618
        %2563 = vmatprep.subr.mxu0 0.0
        %2564 = vmatpush1.msra.mxu0 %v619
        %2565 = vmatprep.subr.mxu0 0.0
        %2566 = vmatpush1.msra.mxu0 %v620
        %2567 = vmatprep.subr.mxu0 0.0
        %2568 = vmatpush1.msra.mxu0 %v621
        %2569 = vmatprep.subr.mxu0 0.0
        %2570 = vmatpush1.msra.mxu0 %v622
        %2571 = vmatprep.subr.mxu0 0.0
        %2572 = vmatpush1.msra.mxu0 %v623
        %2573 = vmatprep.subr.mxu0 0.0
        %2574 = vmatpush1.msra.mxu0 %v624
        %2575 = vmatprep.subr.mxu0 0.0
        %2576 = vmatpush1.msra.mxu0 %v625
        %2577 = vmatprep.subr.mxu0 0.0
        %2578 = vmatpush1.msra.mxu0 %v626
        %2579 = vmatprep.subr.mxu0 0.0
        %2580 = vmatpush1.msra.mxu0 %v627
        %2581 = vmatprep.subr.mxu0 0.0
        %2582 = vmatpush1.msra.mxu0 %v628
        %2583 = vmatprep.subr.mxu0 0.0
        %2584 = vmatpush1.msra.mxu0 %v629
        %2585 = vmatprep.subr.mxu0 0.0
        %2586 = vmatpush1.msra.mxu0 %v630
        %2587 = vmatprep.subr.mxu0 0.0
        %2588 = vmatpush1.msra.mxu0 %v631
        %2589 = vmatprep.subr.mxu0 0.0
        %2590 = vmatpush1.msra.mxu0 %v632
        %2591 = vmatprep.subr.mxu0 0.0
        %2592 = vmatpush1.msra.mxu0 %v672
        %2593 = vmatprep.subr.mxu0 0.0
        %2594 = vmatpush1.msra.mxu0 0.0
        %2595 = vmatprep.subr.mxu0 0.0
        %2596 = vmatpush1.msra.mxu0 0.0
        %2597 = vmatprep.subr.mxu0 0.0
        %2598 = vmatpush1.msra.mxu0 0.0
        %2599 = vmatprep.subr.mxu0 0.0
        %2600 = vmatpush1.msra.mxu0 0.0
        %2601 = vmatprep.subr.mxu0 0.0
        %2602 = vmatpush1.msra.mxu0 0.0
        %2603 = vmatprep.subr.mxu0 0.0
        %2604 = vmatpush1.msra.mxu0 0.0
        %2605 = vmatprep.subr.mxu0 0.0
        %2606 = vmatpush1.msra.mxu0 0.0
        %2607 = vmatprep.mubr.f32.mxu0 %v2523
        %2608 = vmatmul.mubr.f32.gmra.mrb[0].mxu0 %v2508
        %v2609 = vpop.f32.mrb[0].mxu0
        %v2610 = vadd.f32 0.0, %v2609
        %v2611 = vpop.f32.mrb[0].mxu0
        %2612 = vmatprep.mubr.f32.mxu0 %v2526
        %2613 = vmatmul.mubr.f32.gmra.mrb[0].mxu0 %v2510
        %v2614 = vpop.f32.mrb[0].mxu0
        %v2615 = vadd.f32 0.0, %v2614
        %v2616 = vpop.f32.mrb[0].mxu0
        %2617 = vmatprep.mubr.f32.mxu0 %v2529
        %2618 = vmatmul.mubr.f32.gmra.mrb[0].mxu0 %v2512
        %v2619 = vpop.f32.mrb[0].mxu0
        %v2620 = vadd.f32 0.0, %v2619
        %v2621 = vpop.f32.mrb[0].mxu0
        %2622 = vmatprep.mubr.f32.mxu0 %v2532
        %2623 = vmatmul.mubr.f32.gmra.mrb[0].mxu0 %v2514
        %v2624 = vpop.f32.mrb[0].mxu0
        %v2625 = vadd.f32 0.0, %v2624
        %v2626 = vpop.f32.mrb[0].mxu0
        %2627 = vmatprep.mubr.f32.mxu0 %v2535
        %2628 = vmatmul.mubr.f32.gmra.mrb[0].mxu0 %v2516
        %v2629 = vpop.f32.mrb[0].mxu0
        %v2630 = vadd.f32 0.0, %v2629
        %v2631 = vpop.f32.mrb[0].mxu0
        %2632 = vmatprep.mubr.f32.mxu0 %v2538
        %2633 = vmatmul.mubr.f32.gmra.mrb[0].mxu0 %v2518
        %v2634 = vpop.f32.mrb[0].mxu0
        %v2635 = vadd.f32 0.0, %v2634
        %v2636 = vpop.f32.mrb[0].mxu0
        %2637 = vmatprep.mubr.f32.mxu0 %v2541
        %2638 = vmatmul.mubr.f32.gmra.mrb[0].mxu0 %v2520
        %v2639 = vpop.f32.mrb[0].mxu0
        %v2640 = vadd.f32 0.0, %v2639
        %v2641 = vpop.f32.mrb[0].mxu0
        %2642 = vdwg.mxu0
        %s2643 = scalar_lea.vmem %s4, 224
        %v2644 = vld [vmem:[%s2643] sm:$0xff]
        %v2645 = vld [vmem:[%s2643 + $0x8] sm:$0xff]
        %v2646 = vld [vmem:[%s2643 + $0x10] sm:$0xff]
        %v2647 = vld [vmem:[%s2643 + $0x18] sm:$0xff]
        %v2649 = vsel %vm919, %v2610, 0
        %v2652 = vsel %vm919, %v2615, 0
        %v2655 = vsel %vm919, %v2620, 0
        %v2658 = vsel %vm919, %v2625, 0
        %v2661 = vsel %vm919, %v2630, 0
        %v2664 = vsel %vm919, %v2635, 0
        %v2667 = vsel %vm919, %v2640, 0
        %2669 = vmatprep.subr.mxu0 0.0
        %2670 = vmatpush1.msra.mxu0 %v2644
        %2671 = vmatprep.subr.mxu0 0.0
        %2672 = vmatpush1.msra.mxu0 %v2645
        %2673 = vmatprep.subr.mxu0 0.0
        %2674 = vmatpush1.msra.mxu0 %v2646
        %2675 = vmatprep.subr.mxu0 0.0
        %2676 = vmatpush1.msra.mxu0 %v2647
        %2677 = vmatprep.subr.mxu0 0.0
        %2678 = vmatpush1.msra.mxu0 0.0
        %2679 = vmatprep.subr.mxu0 0.0
        %2680 = vmatpush1.msra.mxu0 0.0
        %2681 = vmatprep.subr.mxu0 0.0
        %2682 = vmatpush1.msra.mxu0 0.0
        %2683 = vmatprep.subr.mxu0 0.0
        %2684 = vmatpush1.msra.mxu0 0.0
        %2685 = vmatprep.subr.mxu0 0.0
        %2686 = vmatpush1.msra.mxu0 0.0
        %2687 = vmatprep.subr.mxu0 0.0
        %2688 = vmatpush1.msra.mxu0 0.0
        %2689 = vmatprep.subr.mxu0 0.0
        %2690 = vmatpush1.msra.mxu0 0.0
        %2691 = vmatprep.subr.mxu0 0.0
        %2692 = vmatpush1.msra.mxu0 0.0
        %2693 = vmatprep.subr.mxu0 0.0
        %2694 = vmatpush1.msra.mxu0 0.0
        %2695 = vmatprep.subr.mxu0 0.0
        %2696 = vmatpush1.msra.mxu0 0.0
        %2697 = vmatprep.subr.mxu0 0.0
        %2698 = vmatpush1.msra.mxu0 0.0
        %2699 = vmatprep.subr.mxu0 0.0
        %2700 = vmatpush1.msra.mxu0 0.0
        %2701 = vmatprep.subr.mxu0 0.0
        %2702 = vmatpush1.msra.mxu0 0.0
        %2703 = vmatprep.subr.mxu0 0.0
        %2704 = vmatpush1.msra.mxu0 0.0
        %2705 = vmatprep.subr.mxu0 0.0
        %2706 = vmatpush1.msra.mxu0 0.0
        %2707 = vmatprep.subr.mxu0 0.0
        %2708 = vmatpush1.msra.mxu0 0.0
        %2709 = vmatprep.subr.mxu0 0.0
        %2710 = vmatpush1.msra.mxu0 0.0
        %2711 = vmatprep.subr.mxu0 0.0
        %2712 = vmatpush1.msra.mxu0 0.0
        %2713 = vmatprep.subr.mxu0 0.0
        %2714 = vmatpush1.msra.mxu0 0.0
        %2715 = vmatprep.subr.mxu0 0.0
        %2716 = vmatpush1.msra.mxu0 0.0
        %2717 = vmatprep.subr.mxu0 0.0
        %2718 = vmatpush1.msra.mxu0 0.0
        %2719 = vmatprep.subr.mxu0 0.0
        %2720 = vmatpush1.msra.mxu0 0.0
        %2721 = vmatprep.subr.mxu0 0.0
        %2722 = vmatpush1.msra.mxu0 0.0
        %2723 = vmatprep.subr.mxu0 0.0
        %2724 = vmatpush1.msra.mxu0 0.0
        %2725 = vmatprep.subr.mxu0 0.0
        %2726 = vmatpush1.msra.mxu0 0.0
        %2727 = vmatprep.subr.mxu0 0.0
        %2728 = vmatpush1.msra.mxu0 0.0
        %2729 = vmatprep.subr.mxu0 0.0
        %2730 = vmatpush1.msra.mxu0 0.0
        %2731 = vmatprep.subr.mxu0 0.0
        %2732 = vmatpush1.msra.mxu0 0.0
        %2733 = vmatprep.mubr.f32.mxu0 0.0
        %2734 = vmatmul.mubr.f32.gmra.mrb[0].mxu0 %v2649
        %v2735 = vpop.f32.mrb[0].mxu0
        %v2736 = vadd.f32 0.0, %v2735
        %v2737 = vpop.f32.mrb[0].mxu0
        %2738 = vmatprep.mubr.f32.mxu0 0.0
        %2739 = vmatmul.mubr.f32.gmra.mrb[0].mxu0 %v2652
        %v2740 = vpop.f32.mrb[0].mxu0
        %v2741 = vadd.f32 0.0, %v2740
        %v2742 = vpop.f32.mrb[0].mxu0
        %2743 = vmatprep.mubr.f32.mxu0 0.0
        %2744 = vmatmul.mubr.f32.gmra.mrb[0].mxu0 %v2655
        %v2745 = vpop.f32.mrb[0].mxu0
        %v2746 = vadd.f32 0.0, %v2745
        %v2747 = vpop.f32.mrb[0].mxu0
        %2748 = vmatprep.mubr.f32.mxu0 0.0
        %2749 = vmatmul.mubr.f32.gmra.mrb[0].mxu0 %v2658
        %v2750 = vpop.f32.mrb[0].mxu0
        %v2751 = vadd.f32 0.0, %v2750
        %v2752 = vpop.f32.mrb[0].mxu0
        %2753 = vmatprep.mubr.f32.mxu0 0.0
        %2754 = vmatmul.mubr.f32.gmra.mrb[0].mxu0 %v2661
        %v2755 = vpop.f32.mrb[0].mxu0
        %v2756 = vadd.f32 0.0, %v2755
        %v2757 = vpop.f32.mrb[0].mxu0
        %2758 = vmatprep.mubr.f32.mxu0 0.0
        %2759 = vmatmul.mubr.f32.gmra.mrb[0].mxu0 %v2664
        %v2760 = vpop.f32.mrb[0].mxu0
        %v2761 = vadd.f32 0.0, %v2760
        %v2762 = vpop.f32.mrb[0].mxu0
        %2763 = vmatprep.mubr.f32.mxu0 0.0
        %2764 = vmatmul.mubr.f32.gmra.mrb[0].mxu0 %v2667
        %v2765 = vpop.f32.mrb[0].mxu0
        %v2766 = vadd.f32 0.0, %v2765
        %v2767 = vpop.f32.mrb[0].mxu0
        %2768 = vdwg.mxu0
        %v2769 = vadd.f32 %v2500, %v2736
        %v2770 = vadd.f32 %v2501, %v2741
        %v2771 = vadd.f32 %v2502, %v2746
        %v2772 = vadd.f32 %v2503, %v2751
        %v2773 = vadd.f32 %v2504, %v2756
        %v2774 = vadd.f32 %v2505, %v2761
        %v2775 = vadd.f32 %v2506, %v2766
        %s2776 = scalar_lea.vmem %s3, 896
        %v2777 = vld [vmem:[%s2776] sm:$0xff]
        %v2778 = vld [vmem:[%s2776 + $0x8] sm:$0xff]
        %v2779 = vld [vmem:[%s2776 + $0x10] sm:$0xff]
        %v2780 = vld [vmem:[%s2776 + $0x18] sm:$0xff]
        %v2781 = vld [vmem:[%s2776 + $0x20] sm:$0xff]
        %v2782 = vld [vmem:[%s2776 + $0x28] sm:$0xff]
        %v2783 = vld [vmem:[%s2776 + $0x30] sm:$0xff]
        %v2784 = vld [vmem:[%s2776 + $0x38] sm:$0xff]
        %v2785 = vld [vmem:[%s2776 + $0x40] sm:$0xff]
        %v2786 = vld [vmem:[%s2776 + $0x48] sm:$0xff]
        %v2787 = vld [vmem:[%s2776 + $0x50] sm:$0xff]
        %v2788 = vld [vmem:[%s2776 + $0x58] sm:$0xff]
        %v2789 = vld [vmem:[%s2776 + $0x60] sm:$0x1]
        %v2790 = vld [vmem:[%s2776 + $0x68] sm:$0x1]
        %v2792 = vsel %vm648, %v2778, 0
        %v2795 = vsel %vm648, %v2780, 0
        %v2798 = vsel %vm648, %v2782, 0
        %v2801 = vsel %vm648, %v2784, 0
        %v2804 = vsel %vm648, %v2786, 0
        %v2807 = vsel %vm648, %v2788, 0
        %v2810 = vsel %vm648, %v2790, 0
        %2812 = vmatprep.subr.mxu0 0.0
        %2813 = vmatpush1.msra.mxu0 %v609
        %2814 = vmatprep.subr.mxu0 0.0
        %2815 = vmatpush1.msra.mxu0 %v610
        %2816 = vmatprep.subr.mxu0 0.0
        %2817 = vmatpush1.msra.mxu0 %v611
        %2818 = vmatprep.subr.mxu0 0.0
        %2819 = vmatpush1.msra.mxu0 %v612
        %2820 = vmatprep.subr.mxu0 0.0
        %2821 = vmatpush1.msra.mxu0 %v613
        %2822 = vmatprep.subr.mxu0 0.0
        %2823 = vmatpush1.msra.mxu0 %v614
        %2824 = vmatprep.subr.mxu0 0.0
        %2825 = vmatpush1.msra.mxu0 %v615
        %2826 = vmatprep.subr.mxu0 0.0
        %2827 = vmatpush1.msra.mxu0 %v616
        %2828 = vmatprep.subr.mxu0 0.0
        %2829 = vmatpush1.msra.mxu0 %v617
        %2830 = vmatprep.subr.mxu0 0.0
        %2831 = vmatpush1.msra.mxu0 %v618
        %2832 = vmatprep.subr.mxu0 0.0
        %2833 = vmatpush1.msra.mxu0 %v619
        %2834 = vmatprep.subr.mxu0 0.0
        %2835 = vmatpush1.msra.mxu0 %v620
        %2836 = vmatprep.subr.mxu0 0.0
        %2837 = vmatpush1.msra.mxu0 %v621
        %2838 = vmatprep.subr.mxu0 0.0
        %2839 = vmatpush1.msra.mxu0 %v622
        %2840 = vmatprep.subr.mxu0 0.0
        %2841 = vmatpush1.msra.mxu0 %v623
        %2842 = vmatprep.subr.mxu0 0.0
        %2843 = vmatpush1.msra.mxu0 %v624
        %2844 = vmatprep.subr.mxu0 0.0
        %2845 = vmatpush1.msra.mxu0 %v625
        %2846 = vmatprep.subr.mxu0 0.0
        %2847 = vmatpush1.msra.mxu0 %v626
        %2848 = vmatprep.subr.mxu0 0.0
        %2849 = vmatpush1.msra.mxu0 %v627
        %2850 = vmatprep.subr.mxu0 0.0
        %2851 = vmatpush1.msra.mxu0 %v628
        %2852 = vmatprep.subr.mxu0 0.0
        %2853 = vmatpush1.msra.mxu0 %v629
        %2854 = vmatprep.subr.mxu0 0.0
        %2855 = vmatpush1.msra.mxu0 %v630
        %2856 = vmatprep.subr.mxu0 0.0
        %2857 = vmatpush1.msra.mxu0 %v631
        %2858 = vmatprep.subr.mxu0 0.0
        %2859 = vmatpush1.msra.mxu0 %v632
        %2860 = vmatprep.subr.mxu0 0.0
        %2861 = vmatpush1.msra.mxu0 %v672
        %2862 = vmatprep.subr.mxu0 0.0
        %2863 = vmatpush1.msra.mxu0 0.0
        %2864 = vmatprep.subr.mxu0 0.0
        %2865 = vmatpush1.msra.mxu0 0.0
        %2866 = vmatprep.subr.mxu0 0.0
        %2867 = vmatpush1.msra.mxu0 0.0
        %2868 = vmatprep.subr.mxu0 0.0
        %2869 = vmatpush1.msra.mxu0 0.0
        %2870 = vmatprep.subr.mxu0 0.0
        %2871 = vmatpush1.msra.mxu0 0.0
        %2872 = vmatprep.subr.mxu0 0.0
        %2873 = vmatpush1.msra.mxu0 0.0
        %2874 = vmatprep.subr.mxu0 0.0
        %2875 = vmatpush1.msra.mxu0 0.0
        %2876 = vmatprep.mubr.f32.mxu0 %v2792
        %2877 = vmatmul.mubr.f32.gmra.mrb[0].mxu0 %v2777
        %v2878 = vpop.f32.mrb[0].mxu0
        %v2879 = vadd.f32 0.0, %v2878
        %v2880 = vpop.f32.mrb[0].mxu0
        %2881 = vmatprep.mubr.f32.mxu0 %v2795
        %2882 = vmatmul.mubr.f32.gmra.mrb[0].mxu0 %v2779
        %v2883 = vpop.f32.mrb[0].mxu0
        %v2884 = vadd.f32 0.0, %v2883
        %v2885 = vpop.f32.mrb[0].mxu0
        %2886 = vmatprep.mubr.f32.mxu0 %v2798
        %2887 = vmatmul.mubr.f32.gmra.mrb[0].mxu0 %v2781
        %v2888 = vpop.f32.mrb[0].mxu0
        %v2889 = vadd.f32 0.0, %v2888
        %v2890 = vpop.f32.mrb[0].mxu0
        %2891 = vmatprep.mubr.f32.mxu0 %v2801
        %2892 = vmatmul.mubr.f32.gmra.mrb[0].mxu0 %v2783
        %v2893 = vpop.f32.mrb[0].mxu0
        %v2894 = vadd.f32 0.0, %v2893
        %v2895 = vpop.f32.mrb[0].mxu0
        %2896 = vmatprep.mubr.f32.mxu0 %v2804
        %2897 = vmatmul.mubr.f32.gmra.mrb[0].mxu0 %v2785
        %v2898 = vpop.f32.mrb[0].mxu0
        %v2899 = vadd.f32 0.0, %v2898
        %v2900 = vpop.f32.mrb[0].mxu0
        %2901 = vmatprep.mubr.f32.mxu0 %v2807
        %2902 = vmatmul.mubr.f32.gmra.mrb[0].mxu0 %v2787
        %v2903 = vpop.f32.mrb[0].mxu0
        %v2904 = vadd.f32 0.0, %v2903
        %v2905 = vpop.f32.mrb[0].mxu0
        %2906 = vmatprep.mubr.f32.mxu0 %v2810
        %2907 = vmatmul.mubr.f32.gmra.mrb[0].mxu0 %v2789
        %v2908 = vpop.f32.mrb[0].mxu0
        %v2909 = vadd.f32 0.0, %v2908
        %v2910 = vpop.f32.mrb[0].mxu0
        %2911 = vdwg.mxu0
        %s2912 = scalar_lea.vmem %s4, 256
        %v2913 = vld [vmem:[%s2912] sm:$0xff]
        %v2914 = vld [vmem:[%s2912 + $0x8] sm:$0xff]
        %v2915 = vld [vmem:[%s2912 + $0x10] sm:$0xff]
        %v2916 = vld [vmem:[%s2912 + $0x18] sm:$0xff]
        %v2918 = vsel %vm919, %v2879, 0
        %v2921 = vsel %vm919, %v2884, 0
        %v2924 = vsel %vm919, %v2889, 0
        %v2927 = vsel %vm919, %v2894, 0
        %v2930 = vsel %vm919, %v2899, 0
        %v2933 = vsel %vm919, %v2904, 0
        %v2936 = vsel %vm919, %v2909, 0
        %2938 = vmatprep.subr.mxu0 0.0
        %2939 = vmatpush1.msra.mxu0 %v2913
        %2940 = vmatprep.subr.mxu0 0.0
        %2941 = vmatpush1.msra.mxu0 %v2914
        %2942 = vmatprep.subr.mxu0 0.0
        %2943 = vmatpush1.msra.mxu0 %v2915
        %2944 = vmatprep.subr.mxu0 0.0
        %2945 = vmatpush1.msra.mxu0 %v2916
        %2946 = vmatprep.subr.mxu0 0.0
        %2947 = vmatpush1.msra.mxu0 0.0
        %2948 = vmatprep.subr.mxu0 0.0
        %2949 = vmatpush1.msra.mxu0 0.0
        %2950 = vmatprep.subr.mxu0 0.0
        %2951 = vmatpush1.msra.mxu0 0.0
        %2952 = vmatprep.subr.mxu0 0.0
        %2953 = vmatpush1.msra.mxu0 0.0
        %2954 = vmatprep.subr.mxu0 0.0
        %2955 = vmatpush1.msra.mxu0 0.0
        %2956 = vmatprep.subr.mxu0 0.0
        %2957 = vmatpush1.msra.mxu0 0.0
        %2958 = vmatprep.subr.mxu0 0.0
        %2959 = vmatpush1.msra.mxu0 0.0
        %2960 = vmatprep.subr.mxu0 0.0
        %2961 = vmatpush1.msra.mxu0 0.0
        %2962 = vmatprep.subr.mxu0 0.0
        %2963 = vmatpush1.msra.mxu0 0.0
        %2964 = vmatprep.subr.mxu0 0.0
        %2965 = vmatpush1.msra.mxu0 0.0
        %2966 = vmatprep.subr.mxu0 0.0
        %2967 = vmatpush1.msra.mxu0 0.0
        %2968 = vmatprep.subr.mxu0 0.0
        %2969 = vmatpush1.msra.mxu0 0.0
        %2970 = vmatprep.subr.mxu0 0.0
        %2971 = vmatpush1.msra.mxu0 0.0
        %2972 = vmatprep.subr.mxu0 0.0
        %2973 = vmatpush1.msra.mxu0 0.0
        %2974 = vmatprep.subr.mxu0 0.0
        %2975 = vmatpush1.msra.mxu0 0.0
        %2976 = vmatprep.subr.mxu0 0.0
        %2977 = vmatpush1.msra.mxu0 0.0
        %2978 = vmatprep.subr.mxu0 0.0
        %2979 = vmatpush1.msra.mxu0 0.0
        %2980 = vmatprep.subr.mxu0 0.0
        %2981 = vmatpush1.msra.mxu0 0.0
        %2982 = vmatprep.subr.mxu0 0.0
        %2983 = vmatpush1.msra.mxu0 0.0
        %2984 = vmatprep.subr.mxu0 0.0
        %2985 = vmatpush1.msra.mxu0 0.0
        %2986 = vmatprep.subr.mxu0 0.0
        %2987 = vmatpush1.msra.mxu0 0.0
        %2988 = vmatprep.subr.mxu0 0.0
        %2989 = vmatpush1.msra.mxu0 0.0
        %2990 = vmatprep.subr.mxu0 0.0
        %2991 = vmatpush1.msra.mxu0 0.0
        %2992 = vmatprep.subr.mxu0 0.0
        %2993 = vmatpush1.msra.mxu0 0.0
        %2994 = vmatprep.subr.mxu0 0.0
        %2995 = vmatpush1.msra.mxu0 0.0
        %2996 = vmatprep.subr.mxu0 0.0
        %2997 = vmatpush1.msra.mxu0 0.0
        %2998 = vmatprep.subr.mxu0 0.0
        %2999 = vmatpush1.msra.mxu0 0.0
        %3000 = vmatprep.subr.mxu0 0.0
        %3001 = vmatpush1.msra.mxu0 0.0
        %3002 = vmatprep.mubr.f32.mxu0 0.0
        %3003 = vmatmul.mubr.f32.gmra.mrb[0].mxu0 %v2918
        %v3004 = vpop.f32.mrb[0].mxu0
        %v3005 = vadd.f32 0.0, %v3004
        %v3006 = vpop.f32.mrb[0].mxu0
        %3007 = vmatprep.mubr.f32.mxu0 0.0
        %3008 = vmatmul.mubr.f32.gmra.mrb[0].mxu0 %v2921
        %v3009 = vpop.f32.mrb[0].mxu0
        %v3010 = vadd.f32 0.0, %v3009
        %v3011 = vpop.f32.mrb[0].mxu0
        %3012 = vmatprep.mubr.f32.mxu0 0.0
        %3013 = vmatmul.mubr.f32.gmra.mrb[0].mxu0 %v2924
        %v3014 = vpop.f32.mrb[0].mxu0
        %v3015 = vadd.f32 0.0, %v3014
        %v3016 = vpop.f32.mrb[0].mxu0
        %3017 = vmatprep.mubr.f32.mxu0 0.0
        %3018 = vmatmul.mubr.f32.gmra.mrb[0].mxu0 %v2927
        %v3019 = vpop.f32.mrb[0].mxu0
        %v3020 = vadd.f32 0.0, %v3019
        %v3021 = vpop.f32.mrb[0].mxu0
        %3022 = vmatprep.mubr.f32.mxu0 0.0
        %3023 = vmatmul.mubr.f32.gmra.mrb[0].mxu0 %v2930
        %v3024 = vpop.f32.mrb[0].mxu0
        %v3025 = vadd.f32 0.0, %v3024
        %v3026 = vpop.f32.mrb[0].mxu0
        %3027 = vmatprep.mubr.f32.mxu0 0.0
        %3028 = vmatmul.mubr.f32.gmra.mrb[0].mxu0 %v2933
        %v3029 = vpop.f32.mrb[0].mxu0
        %v3030 = vadd.f32 0.0, %v3029
        %v3031 = vpop.f32.mrb[0].mxu0
        %3032 = vmatprep.mubr.f32.mxu0 0.0
        %3033 = vmatmul.mubr.f32.gmra.mrb[0].mxu0 %v2936
        %v3034 = vpop.f32.mrb[0].mxu0
        %v3035 = vadd.f32 0.0, %v3034
        %v3036 = vpop.f32.mrb[0].mxu0
        %3037 = vdwg.mxu0
        %v3038 = vadd.f32 %v2769, %v3005
        %v3039 = vadd.f32 %v2770, %v3010
        %v3040 = vadd.f32 %v2771, %v3015
        %v3041 = vadd.f32 %v2772, %v3020
        %v3042 = vadd.f32 %v2773, %v3025
        %v3043 = vadd.f32 %v2774, %v3030
        %v3044 = vadd.f32 %v2775, %v3035
        %v3045 = vld [vmem:[%s5] sm:$0x1]
        %v3047 = vlaneseq
        %v3048 = vshrl.u32 %v3047, 7
        %v3049 = vsub.s32 0, %v3048
        %v3050 = vrot.slane %v3045, %v3049
        %v3052 = vadd.f32 %v3038, %v3050
        %v3053 = vadd.f32 %v3039, %v3050
        %v3054 = vadd.f32 %v3040, %v3050
        %v3055 = vadd.f32 %v3041, %v3050
        %v3056 = vadd.f32 %v3042, %v3050
        %v3057 = vadd.f32 %v3043, %v3050
        %v3058 = vadd.f32 %v3044, %v3050
        %v3059 = vmax.f32 %v3052, 0.0
        %v3060 = vmax.f32 %v3053, 0.0
        %v3061 = vmax.f32 %v3054, 0.0
        %v3062 = vmax.f32 %v3055, 0.0
        %v3063 = vmax.f32 %v3056, 0.0
        %v3064 = vmax.f32 %v3057, 0.0
        %v3065 = vmax.f32 %v3058, 0.0
        %v3066 = vld [vmem:[%s6] sm:$0xff]
        %v3067 = vld [vmem:[%s6 + $0x8] sm:$0xff]
        %vm3068 = vcmask 400384
        %v3070 = vsel %vm3068, %v3066, 0
        %v3073 = vsel %vm3068, %v3067, 0
        %vm3075 = vcmask 1040384
        %v3077 = vsel %vm3075, %v3065, 0
        %3079 = vmatprep.subr.mxu0 0.0
        %3080 = vmatpush1.msra.mxu0 %v3059
        %3081 = vmatprep.subr.mxu0 0.0
        %3082 = vmatpush1.msra.mxu0 %v3060
        %3083 = vmatprep.subr.mxu0 0.0
        %3084 = vmatpush1.msra.mxu0 %v3061
        %3085 = vmatprep.subr.mxu0 0.0
        %3086 = vmatpush1.msra.mxu0 %v3062
        %3087 = vmatprep.subr.mxu0 0.0
        %3088 = vmatpush1.msra.mxu0 %v3063
        %3089 = vmatprep.subr.mxu0 0.0
        %3090 = vmatpush1.msra.mxu0 %v3064
        %3091 = vmatprep.subr.mxu0 0.0
        %3092 = vmatpush1.msra.mxu0 %v3077
        %3093 = vmatprep.subr.mxu0 0.0
        %3094 = vmatpush1.msra.mxu0 0.0
        %3095 = vmatprep.subr.mxu0 0.0
        %3096 = vmatpush1.msra.mxu0 0.0
        %3097 = vmatprep.subr.mxu0 0.0
        %3098 = vmatpush1.msra.mxu0 0.0
        %3099 = vmatprep.subr.mxu0 0.0
        %3100 = vmatpush1.msra.mxu0 0.0
        %3101 = vmatprep.subr.mxu0 0.0
        %3102 = vmatpush1.msra.mxu0 0.0
        %3103 = vmatprep.subr.mxu0 0.0
        %3104 = vmatpush1.msra.mxu0 0.0
        %3105 = vmatprep.subr.mxu0 0.0
        %3106 = vmatpush1.msra.mxu0 0.0
        %3107 = vmatprep.subr.mxu0 0.0
        %3108 = vmatpush1.msra.mxu0 0.0
        %3109 = vmatprep.subr.mxu0 0.0
        %3110 = vmatpush1.msra.mxu0 0.0
        %3111 = vmatprep.subr.mxu0 0.0
        %3112 = vmatpush1.msra.mxu0 0.0
        %3113 = vmatprep.subr.mxu0 0.0
        %3114 = vmatpush1.msra.mxu0 0.0
        %3115 = vmatprep.subr.mxu0 0.0
        %3116 = vmatpush1.msra.mxu0 0.0
        %3117 = vmatprep.subr.mxu0 0.0
        %3118 = vmatpush1.msra.mxu0 0.0
        %3119 = vmatprep.subr.mxu0 0.0
        %3120 = vmatpush1.msra.mxu0 0.0
        %3121 = vmatprep.subr.mxu0 0.0
        %3122 = vmatpush1.msra.mxu0 0.0
        %3123 = vmatprep.subr.mxu0 0.0
        %3124 = vmatpush1.msra.mxu0 0.0
        %3125 = vmatprep.subr.mxu0 0.0
        %3126 = vmatpush1.msra.mxu0 0.0
        %3127 = vmatprep.subr.mxu0 0.0
        %3128 = vmatpush1.msra.mxu0 0.0
        %3129 = vmatprep.subr.mxu0 0.0
        %3130 = vmatpush1.msra.mxu0 0.0
        %3131 = vmatprep.subr.mxu0 0.0
        %3132 = vmatpush1.msra.mxu0 0.0
        %3133 = vmatprep.subr.mxu0 0.0
        %3134 = vmatpush1.msra.mxu0 0.0
        %3135 = vmatprep.subr.mxu0 0.0
        %3136 = vmatpush1.msra.mxu0 0.0
        %3137 = vmatprep.subr.mxu0 0.0
        %3138 = vmatpush1.msra.mxu0 0.0
        %3139 = vmatprep.subr.mxu0 0.0
        %3140 = vmatpush1.msra.mxu0 0.0
        %3141 = vmatprep.subr.mxu0 0.0
        %3142 = vmatpush1.msra.mxu0 0.0
        %3143 = vmatprep.mubr.f32.mxu0 0.0
        %3144 = vmatmul.mubr.f32.gmra.mrb[0].mxu0 %v3070
        %v3145 = vpop.f32.mrb[0].mxu0
        %v3146 = vadd.f32 0.0, %v3145
        %v3147 = vpop.f32.mrb[0].mxu0
        %3148 = vmatprep.mubr.f32.mxu0 0.0
        %3149 = vmatmul.mubr.f32.gmra.mrb[0].mxu0 %v3073
        %v3150 = vpop.f32.mrb[0].mxu0
        %v3151 = vadd.f32 0.0, %v3150
        %v3152 = vpop.f32.mrb[0].mxu0
        %3153 = vdwg.mxu0
        %v3154 = vld [vmem:[%s7] sm:$0xff]
        %v3155 = vld [vmem:[%s7 + $0x8] sm:$0xff]
        %v3156 = vld [vmem:[%s7 + $0x10] sm:$0xff]
        %v3157 = vld [vmem:[%s7 + $0x18] sm:$0xff]
        %s3158 = scalar_lea.vmem %s6, 16
        %v3159 = vld [vmem:[%s3158] sm:$0xff]
        %v3160 = vld [vmem:[%s3158 + $0x8] sm:$0xff]
        %v3162 = vsel %vm3068, %v3159, 0
        %v3165 = vsel %vm3068, %v3160, 0
        %3167 = vmatprep.subr.mxu0 0.0
        %3168 = vmatpush1.msra.mxu0 %v3059
        %3169 = vmatprep.subr.mxu0 0.0
        %3170 = vmatpush1.msra.mxu0 %v3060
        %3171 = vmatprep.subr.mxu0 0.0
        %3172 = vmatpush1.msra.mxu0 %v3061
        %3173 = vmatprep.subr.mxu0 0.0
        %3174 = vmatpush1.msra.mxu0 %v3062
        %3175 = vmatprep.subr.mxu0 0.0
        %3176 = vmatpush1.msra.mxu0 %v3063
        %3177 = vmatprep.subr.mxu0 0.0
        %3178 = vmatpush1.msra.mxu0 %v3064
        %3179 = vmatprep.subr.mxu0 0.0
        %3180 = vmatpush1.msra.mxu0 %v3077
        %3181 = vmatprep.subr.mxu0 0.0
        %3182 = vmatpush1.msra.mxu0 0.0
        %3183 = vmatprep.subr.mxu0 0.0
        %3184 = vmatpush1.msra.mxu0 0.0
        %3185 = vmatprep.subr.mxu0 0.0
        %3186 = vmatpush1.msra.mxu0 0.0
        %3187 = vmatprep.subr.mxu0 0.0
        %3188 = vmatpush1.msra.mxu0 0.0
        %3189 = vmatprep.subr.mxu0 0.0
        %3190 = vmatpush1.msra.mxu0 0.0
        %3191 = vmatprep.subr.mxu0 0.0
        %3192 = vmatpush1.msra.mxu0 0.0
        %3193 = vmatprep.subr.mxu0 0.0
        %3194 = vmatpush1.msra.mxu0 0.0
        %3195 = vmatprep.subr.mxu0 0.0
        %3196 = vmatpush1.msra.mxu0 0.0
        %3197 = vmatprep.subr.mxu0 0.0
        %3198 = vmatpush1.msra.mxu0 0.0
        %3199 = vmatprep.subr.mxu0 0.0
        %3200 = vmatpush1.msra.mxu0 0.0
        %3201 = vmatprep.subr.mxu0 0.0
        %3202 = vmatpush1.msra.mxu0 0.0
        %3203 = vmatprep.subr.mxu0 0.0
        %3204 = vmatpush1.msra.mxu0 0.0
        %3205 = vmatprep.subr.mxu0 0.0
        %3206 = vmatpush1.msra.mxu0 0.0
        %3207 = vmatprep.subr.mxu0 0.0
        %3208 = vmatpush1.msra.mxu0 0.0
        %3209 = vmatprep.subr.mxu0 0.0
        %3210 = vmatpush1.msra.mxu0 0.0
        %3211 = vmatprep.subr.mxu0 0.0
        %3212 = vmatpush1.msra.mxu0 0.0
        %3213 = vmatprep.subr.mxu0 0.0
        %3214 = vmatpush1.msra.mxu0 0.0
        %3215 = vmatprep.subr.mxu0 0.0
        %3216 = vmatpush1.msra.mxu0 0.0
        %3217 = vmatprep.subr.mxu0 0.0
        %3218 = vmatpush1.msra.mxu0 0.0
        %3219 = vmatprep.subr.mxu0 0.0
        %3220 = vmatpush1.msra.mxu0 0.0
        %3221 = vmatprep.subr.mxu0 0.0
        %3222 = vmatpush1.msra.mxu0 0.0
        %3223 = vmatprep.subr.mxu0 0.0
        %3224 = vmatpush1.msra.mxu0 0.0
        %3225 = vmatprep.subr.mxu0 0.0
        %3226 = vmatpush1.msra.mxu0 0.0
        %3227 = vmatprep.subr.mxu0 0.0
        %3228 = vmatpush1.msra.mxu0 0.0
        %3229 = vmatprep.subr.mxu0 0.0
        %3230 = vmatpush1.msra.mxu0 0.0
        %3231 = vmatprep.mubr.f32.mxu0 0.0
        %3232 = vmatmul.mubr.f32.gmra.mrb[0].mxu0 %v3162
        %v3233 = vpop.f32.mrb[0].mxu0
        %v3234 = vadd.f32 0.0, %v3233
        %v3235 = vpop.f32.mrb[0].mxu0
        %3236 = vmatprep.mubr.f32.mxu0 0.0
        %3237 = vmatmul.mubr.f32.gmra.mrb[0].mxu0 %v3165
        %v3238 = vpop.f32.mrb[0].mxu0
        %v3239 = vadd.f32 0.0, %v3238
        %v3240 = vpop.f32.mrb[0].mxu0
        %3241 = vdwg.mxu0
        %s3242 = scalar_lea.vmem %s7, 32
        %v3243 = vld [vmem:[%s3242] sm:$0xff]
        %v3244 = vld [vmem:[%s3242 + $0x8] sm:$0xff]
        %v3245 = vld [vmem:[%s3242 + $0x10] sm:$0xff]
        %v3246 = vld [vmem:[%s3242 + $0x18] sm:$0xff]
        %v3248 = vsel %vm919, %v3234, 0
        %v3251 = vsel %vm919, %v3239, 0
        %3253 = vmatprep.subr.mxu0 0.0
        %3254 = vmatpush1.msra.mxu0 %v3243
        %3255 = vmatprep.subr.mxu0 0.0
        %3256 = vmatpush1.msra.mxu0 %v3244
        %3257 = vmatprep.subr.mxu0 0.0
        %3258 = vmatpush1.msra.mxu0 %v3245
        %3259 = vmatprep.subr.mxu0 0.0
        %3260 = vmatpush1.msra.mxu0 %v3246
        %3261 = vmatprep.subr.mxu0 0.0
        %3262 = vmatpush1.msra.mxu0 0.0
        %3263 = vmatprep.subr.mxu0 0.0
        %3264 = vmatpush1.msra.mxu0 0.0
        %3265 = vmatprep.subr.mxu0 0.0
        %3266 = vmatpush1.msra.mxu0 0.0
        %3267 = vmatprep.subr.mxu0 0.0
        %3268 = vmatpush1.msra.mxu0 0.0
        %3269 = vmatprep.subr.mxu0 0.0
        %3270 = vmatpush1.msra.mxu0 0.0
        %3271 = vmatprep.subr.mxu0 0.0
        %3272 = vmatpush1.msra.mxu0 0.0
        %3273 = vmatprep.subr.mxu0 0.0
        %3274 = vmatpush1.msra.mxu0 0.0
        %3275 = vmatprep.subr.mxu0 0.0
        %3276 = vmatpush1.msra.mxu0 0.0
        %3277 = vmatprep.subr.mxu0 0.0
        %3278 = vmatpush1.msra.mxu0 0.0
        %3279 = vmatprep.subr.mxu0 0.0
        %3280 = vmatpush1.msra.mxu0 0.0
        %3281 = vmatprep.subr.mxu0 0.0
        %3282 = vmatpush1.msra.mxu0 0.0
        %3283 = vmatprep.subr.mxu0 0.0
        %3284 = vmatpush1.msra.mxu0 0.0
        %3285 = vmatprep.subr.mxu0 0.0
        %3286 = vmatpush1.msra.mxu0 0.0
        %3287 = vmatprep.subr.mxu0 0.0
        %3288 = vmatpush1.msra.mxu0 0.0
        %3289 = vmatprep.subr.mxu0 0.0
        %3290 = vmatpush1.msra.mxu0 0.0
        %3291 = vmatprep.subr.mxu0 0.0
        %3292 = vmatpush1.msra.mxu0 0.0
        %3293 = vmatprep.subr.mxu0 0.0
        %3294 = vmatpush1.msra.mxu0 0.0
        %3295 = vmatprep.subr.mxu0 0.0
        %3296 = vmatpush1.msra.mxu0 0.0
        %3297 = vmatprep.subr.mxu0 0.0
        %3298 = vmatpush1.msra.mxu0 0.0
        %3299 = vmatprep.subr.mxu0 0.0
        %3300 = vmatpush1.msra.mxu0 0.0
        %3301 = vmatprep.subr.mxu0 0.0
        %3302 = vmatpush1.msra.mxu0 0.0
        %3303 = vmatprep.subr.mxu0 0.0
        %3304 = vmatpush1.msra.mxu0 0.0
        %3305 = vmatprep.subr.mxu0 0.0
        %3306 = vmatpush1.msra.mxu0 0.0
        %3307 = vmatprep.subr.mxu0 0.0
        %3308 = vmatpush1.msra.mxu0 0.0
        %3309 = vmatprep.subr.mxu0 0.0
        %3310 = vmatpush1.msra.mxu0 0.0
        %3311 = vmatprep.subr.mxu0 0.0
        %3312 = vmatpush1.msra.mxu0 0.0
        %3313 = vmatprep.subr.mxu0 0.0
        %3314 = vmatpush1.msra.mxu0 0.0
        %3315 = vmatprep.subr.mxu0 0.0
        %3316 = vmatpush1.msra.mxu0 0.0
        %3317 = vmatprep.mubr.f32.mxu0 0.0
        %3318 = vmatmul.mubr.f32.gmra.mrb[0].mxu0 %v3248
        %v3319 = vpop.f32.mrb[0].mxu0
        %v3320 = vadd.f32 0.0, %v3319
        %v3321 = vpop.f32.mrb[0].mxu0
        %3322 = vmatprep.mubr.f32.mxu0 0.0
        %3323 = vmatmul.mubr.f32.gmra.mrb[0].mxu0 %v3251
        %v3324 = vpop.f32.mrb[0].mxu0
        %v3325 = vadd.f32 0.0, %v3324
        %v3326 = vpop.f32.mrb[0].mxu0
        %3327 = vdwg.mxu0
        %v3329 = vsel %vm919, %v3146, 0
        %v3332 = vsel %vm919, %v3151, 0
        %3334 = vmatprep.subr.mxu0 0.0
        %3335 = vmatpush1.msra.mxu0 %v3154
        %3336 = vmatprep.subr.mxu0 0.0
        %3337 = vmatpush1.msra.mxu0 %v3155
        %3338 = vmatprep.subr.mxu0 0.0
        %3339 = vmatpush1.msra.mxu0 %v3156
        %3340 = vmatprep.subr.mxu0 0.0
        %3341 = vmatpush1.msra.mxu0 %v3157
        %3342 = vmatprep.subr.mxu0 0.0
        %3343 = vmatpush1.msra.mxu0 0.0
        %3344 = vmatprep.subr.mxu0 0.0
        %3345 = vmatpush1.msra.mxu0 0.0
        %3346 = vmatprep.subr.mxu0 0.0
        %3347 = vmatpush1.msra.mxu0 0.0
        %3348 = vmatprep.subr.mxu0 0.0
        %3349 = vmatpush1.msra.mxu0 0.0
        %3350 = vmatprep.subr.mxu0 0.0
        %3351 = vmatpush1.msra.mxu0 0.0
        %3352 = vmatprep.subr.mxu0 0.0
        %3353 = vmatpush1.msra.mxu0 0.0
        %3354 = vmatprep.subr.mxu0 0.0
        %3355 = vmatpush1.msra.mxu0 0.0
        %3356 = vmatprep.subr.mxu0 0.0
        %3357 = vmatpush1.msra.mxu0 0.0
        %3358 = vmatprep.subr.mxu0 0.0
        %3359 = vmatpush1.msra.mxu0 0.0
        %3360 = vmatprep.subr.mxu0 0.0
        %3361 = vmatpush1.msra.mxu0 0.0
        %3362 = vmatprep.subr.mxu0 0.0
        %3363 = vmatpush1.msra.mxu0 0.0
        %3364 = vmatprep.subr.mxu0 0.0
        %3365 = vmatpush1.msra.mxu0 0.0
        %3366 = vmatprep.subr.mxu0 0.0
        %3367 = vmatpush1.msra.mxu0 0.0
        %3368 = vmatprep.subr.mxu0 0.0
        %3369 = vmatpush1.msra.mxu0 0.0
        %3370 = vmatprep.subr.mxu0 0.0
        %3371 = vmatpush1.msra.mxu0 0.0
        %3372 = vmatprep.subr.mxu0 0.0
        %3373 = vmatpush1.msra.mxu0 0.0
        %3374 = vmatprep.subr.mxu0 0.0
        %3375 = vmatpush1.msra.mxu0 0.0
        %3376 = vmatprep.subr.mxu0 0.0
        %3377 = vmatpush1.msra.mxu0 0.0
        %3378 = vmatprep.subr.mxu0 0.0
        %3379 = vmatpush1.msra.mxu0 0.0
        %3380 = vmatprep.subr.mxu0 0.0
        %3381 = vmatpush1.msra.mxu0 0.0
        %3382 = vmatprep.subr.mxu0 0.0
        %3383 = vmatpush1.msra.mxu0 0.0
        %3384 = vmatprep.subr.mxu0 0.0
        %3385 = vmatpush1.msra.mxu0 0.0
        %3386 = vmatprep.subr.mxu0 0.0
        %3387 = vmatpush1.msra.mxu0 0.0
        %3388 = vmatprep.subr.mxu0 0.0
        %3389 = vmatpush1.msra.mxu0 0.0
        %3390 = vmatprep.subr.mxu0 0.0
        %3391 = vmatpush1.msra.mxu0 0.0
        %3392 = vmatprep.subr.mxu0 0.0
        %3393 = vmatpush1.msra.mxu0 0.0
        %3394 = vmatprep.subr.mxu0 0.0
        %3395 = vmatpush1.msra.mxu0 0.0
        %3396 = vmatprep.subr.mxu0 0.0
        %3397 = vmatpush1.msra.mxu0 0.0
        %3398 = vmatprep.mubr.f32.mxu0 0.0
        %3399 = vmatmul.mubr.f32.gmra.mrb[0].mxu0 %v3329
        %v3400 = vpop.f32.mrb[0].mxu0
        %v3401 = vadd.f32 %v3320, %v3400
        %v3402 = vpop.f32.mrb[0].mxu0
        %3403 = vmatprep.mubr.f32.mxu0 0.0
        %3404 = vmatmul.mubr.f32.gmra.mrb[0].mxu0 %v3332
        %v3405 = vpop.f32.mrb[0].mxu0
        %v3406 = vadd.f32 %v3325, %v3405
        %v3407 = vpop.f32.mrb[0].mxu0
        %3408 = vdwg.mxu0
        %s3409 = scalar_lea.vmem %s6, 32
        %v3410 = vld [vmem:[%s3409] sm:$0xff]
        %v3411 = vld [vmem:[%s3409 + $0x8] sm:$0xff]
        %v3413 = vsel %vm3068, %v3410, 0
        %v3416 = vsel %vm3068, %v3411, 0
        %3418 = vmatprep.subr.mxu0 0.0
        %3419 = vmatpush1.msra.mxu0 %v3059
        %3420 = vmatprep.subr.mxu0 0.0
        %3421 = vmatpush1.msra.mxu0 %v3060
        %3422 = vmatprep.subr.mxu0 0.0
        %3423 = vmatpush1.msra.mxu0 %v3061
        %3424 = vmatprep.subr.mxu0 0.0
        %3425 = vmatpush1.msra.mxu0 %v3062
        %3426 = vmatprep.subr.mxu0 0.0
        %3427 = vmatpush1.msra.mxu0 %v3063
        %3428 = vmatprep.subr.mxu0 0.0
        %3429 = vmatpush1.msra.mxu0 %v3064
        %3430 = vmatprep.subr.mxu0 0.0
        %3431 = vmatpush1.msra.mxu0 %v3077
        %3432 = vmatprep.subr.mxu0 0.0
        %3433 = vmatpush1.msra.mxu0 0.0
        %3434 = vmatprep.subr.mxu0 0.0
        %3435 = vmatpush1.msra.mxu0 0.0
        %3436 = vmatprep.subr.mxu0 0.0
        %3437 = vmatpush1.msra.mxu0 0.0
        %3438 = vmatprep.subr.mxu0 0.0
        %3439 = vmatpush1.msra.mxu0 0.0
        %3440 = vmatprep.subr.mxu0 0.0
        %3441 = vmatpush1.msra.mxu0 0.0
        %3442 = vmatprep.subr.mxu0 0.0
        %3443 = vmatpush1.msra.mxu0 0.0
        %3444 = vmatprep.subr.mxu0 0.0
        %3445 = vmatpush1.msra.mxu0 0.0
        %3446 = vmatprep.subr.mxu0 0.0
        %3447 = vmatpush1.msra.mxu0 0.0
        %3448 = vmatprep.subr.mxu0 0.0
        %3449 = vmatpush1.msra.mxu0 0.0
        %3450 = vmatprep.subr.mxu0 0.0
        %3451 = vmatpush1.msra.mxu0 0.0
        %3452 = vmatprep.subr.mxu0 0.0
        %3453 = vmatpush1.msra.mxu0 0.0
        %3454 = vmatprep.subr.mxu0 0.0
        %3455 = vmatpush1.msra.mxu0 0.0
        %3456 = vmatprep.subr.mxu0 0.0
        %3457 = vmatpush1.msra.mxu0 0.0
        %3458 = vmatprep.subr.mxu0 0.0
        %3459 = vmatpush1.msra.mxu0 0.0
        %3460 = vmatprep.subr.mxu0 0.0
        %3461 = vmatpush1.msra.mxu0 0.0
        %3462 = vmatprep.subr.mxu0 0.0
        %3463 = vmatpush1.msra.mxu0 0.0
        %3464 = vmatprep.subr.mxu0 0.0
        %3465 = vmatpush1.msra.mxu0 0.0
        %3466 = vmatprep.subr.mxu0 0.0
        %3467 = vmatpush1.msra.mxu0 0.0
        %3468 = vmatprep.subr.mxu0 0.0
        %3469 = vmatpush1.msra.mxu0 0.0
        %3470 = vmatprep.subr.mxu0 0.0
        %3471 = vmatpush1.msra.mxu0 0.0
        %3472 = vmatprep.subr.mxu0 0.0
        %3473 = vmatpush1.msra.mxu0 0.0
        %3474 = vmatprep.subr.mxu0 0.0
        %3475 = vmatpush1.msra.mxu0 0.0
        %3476 = vmatprep.subr.mxu0 0.0
        %3477 = vmatpush1.msra.mxu0 0.0
        %3478 = vmatprep.subr.mxu0 0.0
        %3479 = vmatpush1.msra.mxu0 0.0
        %3480 = vmatprep.subr.mxu0 0.0
        %3481 = vmatpush1.msra.mxu0 0.0
        %3482 = vmatprep.mubr.f32.mxu0 0.0
        %3483 = vmatmul.mubr.f32.gmra.mrb[0].mxu0 %v3413
        %v3484 = vpop.f32.mrb[0].mxu0
        %v3485 = vadd.f32 0.0, %v3484
        %v3486 = vpop.f32.mrb[0].mxu0
        %3487 = vmatprep.mubr.f32.mxu0 0.0
        %3488 = vmatmul.mubr.f32.gmra.mrb[0].mxu0 %v3416
        %v3489 = vpop.f32.mrb[0].mxu0
        %v3490 = vadd.f32 0.0, %v3489
        %v3491 = vpop.f32.mrb[0].mxu0
        %3492 = vdwg.mxu0
        %s3493 = scalar_lea.vmem %s7, 64
        %v3494 = vld [vmem:[%s3493] sm:$0xff]
        %v3495 = vld [vmem:[%s3493 + $0x8] sm:$0xff]
        %v3496 = vld [vmem:[%s3493 + $0x10] sm:$0xff]
        %v3497 = vld [vmem:[%s3493 + $0x18] sm:$0xff]
        %v3499 = vsel %vm919, %v3485, 0
        %v3502 = vsel %vm919, %v3490, 0
        %3504 = vmatprep.subr.mxu0 0.0
        %3505 = vmatpush1.msra.mxu0 %v3494
        %3506 = vmatprep.subr.mxu0 0.0
        %3507 = vmatpush1.msra.mxu0 %v3495
        %3508 = vmatprep.subr.mxu0 0.0
        %3509 = vmatpush1.msra.mxu0 %v3496
        %3510 = vmatprep.subr.mxu0 0.0
        %3511 = vmatpush1.msra.mxu0 %v3497
        %3512 = vmatprep.subr.mxu0 0.0
        %3513 = vmatpush1.msra.mxu0 0.0
        %3514 = vmatprep.subr.mxu0 0.0
        %3515 = vmatpush1.msra.mxu0 0.0
        %3516 = vmatprep.subr.mxu0 0.0
        %3517 = vmatpush1.msra.mxu0 0.0
        %3518 = vmatprep.subr.mxu0 0.0
        %3519 = vmatpush1.msra.mxu0 0.0
        %3520 = vmatprep.subr.mxu0 0.0
        %3521 = vmatpush1.msra.mxu0 0.0
        %3522 = vmatprep.subr.mxu0 0.0
        %3523 = vmatpush1.msra.mxu0 0.0
        %3524 = vmatprep.subr.mxu0 0.0
        %3525 = vmatpush1.msra.mxu0 0.0
        %3526 = vmatprep.subr.mxu0 0.0
        %3527 = vmatpush1.msra.mxu0 0.0
        %3528 = vmatprep.subr.mxu0 0.0
        %3529 = vmatpush1.msra.mxu0 0.0
        %3530 = vmatprep.subr.mxu0 0.0
        %3531 = vmatpush1.msra.mxu0 0.0
        %3532 = vmatprep.subr.mxu0 0.0
        %3533 = vmatpush1.msra.mxu0 0.0
        %3534 = vmatprep.subr.mxu0 0.0
        %3535 = vmatpush1.msra.mxu0 0.0
        %3536 = vmatprep.subr.mxu0 0.0
        %3537 = vmatpush1.msra.mxu0 0.0
        %3538 = vmatprep.subr.mxu0 0.0
        %3539 = vmatpush1.msra.mxu0 0.0
        %3540 = vmatprep.subr.mxu0 0.0
        %3541 = vmatpush1.msra.mxu0 0.0
        %3542 = vmatprep.subr.mxu0 0.0
        %3543 = vmatpush1.msra.mxu0 0.0
        %3544 = vmatprep.subr.mxu0 0.0
        %3545 = vmatpush1.msra.mxu0 0.0
        %3546 = vmatprep.subr.mxu0 0.0
        %3547 = vmatpush1.msra.mxu0 0.0
        %3548 = vmatprep.subr.mxu0 0.0
        %3549 = vmatpush1.msra.mxu0 0.0
        %3550 = vmatprep.subr.mxu0 0.0
        %3551 = vmatpush1.msra.mxu0 0.0
        %3552 = vmatprep.subr.mxu0 0.0
        %3553 = vmatpush1.msra.mxu0 0.0
        %3554 = vmatprep.subr.mxu0 0.0
        %3555 = vmatpush1.msra.mxu0 0.0
        %3556 = vmatprep.subr.mxu0 0.0
        %3557 = vmatpush1.msra.mxu0 0.0
        %3558 = vmatprep.subr.mxu0 0.0
        %3559 = vmatpush1.msra.mxu0 0.0
        %3560 = vmatprep.subr.mxu0 0.0
        %3561 = vmatpush1.msra.mxu0 0.0
        %3562 = vmatprep.subr.mxu0 0.0
        %3563 = vmatpush1.msra.mxu0 0.0
        %3564 = vmatprep.subr.mxu0 0.0
        %3565 = vmatpush1.msra.mxu0 0.0
        %3566 = vmatprep.subr.mxu0 0.0
        %3567 = vmatpush1.msra.mxu0 0.0
        %3568 = vmatprep.mubr.f32.mxu0 0.0
        %3569 = vmatmul.mubr.f32.gmra.mrb[0].mxu0 %v3499
        %v3570 = vpop.f32.mrb[0].mxu0
        %v3571 = vadd.f32 0.0, %v3570
        %v3572 = vpop.f32.mrb[0].mxu0
        %3573 = vmatprep.mubr.f32.mxu0 0.0
        %3574 = vmatmul.mubr.f32.gmra.mrb[0].mxu0 %v3502
        %v3575 = vpop.f32.mrb[0].mxu0
        %v3576 = vadd.f32 0.0, %v3575
        %v3577 = vpop.f32.mrb[0].mxu0
        %3578 = vdwg.mxu0
        %v3579 = vadd.f32 %v3401, %v3571
        %v3580 = vadd.f32 %v3406, %v3576
        %s3581 = scalar_lea.vmem %s6, 48
        %v3582 = vld [vmem:[%s3581] sm:$0xff]
        %v3583 = vld [vmem:[%s3581 + $0x8] sm:$0xff]
        %v3585 = vsel %vm3068, %v3582, 0
        %v3588 = vsel %vm3068, %v3583, 0
        %3590 = vmatprep.subr.mxu0 0.0
        %3591 = vmatpush1.msra.mxu0 %v3059
        %3592 = vmatprep.subr.mxu0 0.0
        %3593 = vmatpush1.msra.mxu0 %v3060
        %3594 = vmatprep.subr.mxu0 0.0
        %3595 = vmatpush1.msra.mxu0 %v3061
        %3596 = vmatprep.subr.mxu0 0.0
        %3597 = vmatpush1.msra.mxu0 %v3062
        %3598 = vmatprep.subr.mxu0 0.0
        %3599 = vmatpush1.msra.mxu0 %v3063
        %3600 = vmatprep.subr.mxu0 0.0
        %3601 = vmatpush1.msra.mxu0 %v3064
        %3602 = vmatprep.subr.mxu0 0.0
        %3603 = vmatpush1.msra.mxu0 %v3077
        %3604 = vmatprep.subr.mxu0 0.0
        %3605 = vmatpush1.msra.mxu0 0.0
        %3606 = vmatprep.subr.mxu0 0.0
        %3607 = vmatpush1.msra.mxu0 0.0
        %3608 = vmatprep.subr.mxu0 0.0
        %3609 = vmatpush1.msra.mxu0 0.0
        %3610 = vmatprep.subr.mxu0 0.0
        %3611 = vmatpush1.msra.mxu0 0.0
        %3612 = vmatprep.subr.mxu0 0.0
        %3613 = vmatpush1.msra.mxu0 0.0
        %3614 = vmatprep.subr.mxu0 0.0
        %3615 = vmatpush1.msra.mxu0 0.0
        %3616 = vmatprep.subr.mxu0 0.0
        %3617 = vmatpush1.msra.mxu0 0.0
        %3618 = vmatprep.subr.mxu0 0.0
        %3619 = vmatpush1.msra.mxu0 0.0
        %3620 = vmatprep.subr.mxu0 0.0
        %3621 = vmatpush1.msra.mxu0 0.0
        %3622 = vmatprep.subr.mxu0 0.0
        %3623 = vmatpush1.msra.mxu0 0.0
        %3624 = vmatprep.subr.mxu0 0.0
        %3625 = vmatpush1.msra.mxu0 0.0
        %3626 = vmatprep.subr.mxu0 0.0
        %3627 = vmatpush1.msra.mxu0 0.0
        %3628 = vmatprep.subr.mxu0 0.0
        %3629 = vmatpush1.msra.mxu0 0.0
        %3630 = vmatprep.subr.mxu0 0.0
        %3631 = vmatpush1.msra.mxu0 0.0
        %3632 = vmatprep.subr.mxu0 0.0
        %3633 = vmatpush1.msra.mxu0 0.0
        %3634 = vmatprep.subr.mxu0 0.0
        %3635 = vmatpush1.msra.mxu0 0.0
        %3636 = vmatprep.subr.mxu0 0.0
        %3637 = vmatpush1.msra.mxu0 0.0
        %3638 = vmatprep.subr.mxu0 0.0
        %3639 = vmatpush1.msra.mxu0 0.0
        %3640 = vmatprep.subr.mxu0 0.0
        %3641 = vmatpush1.msra.mxu0 0.0
        %3642 = vmatprep.subr.mxu0 0.0
        %3643 = vmatpush1.msra.mxu0 0.0
        %3644 = vmatprep.subr.mxu0 0.0
        %3645 = vmatpush1.msra.mxu0 0.0
        %3646 = vmatprep.subr.mxu0 0.0
        %3647 = vmatpush1.msra.mxu0 0.0
        %3648 = vmatprep.subr.mxu0 0.0
        %3649 = vmatpush1.msra.mxu0 0.0
        %3650 = vmatprep.subr.mxu0 0.0
        %3651 = vmatpush1.msra.mxu0 0.0
        %3652 = vmatprep.subr.mxu0 0.0
        %3653 = vmatpush1.msra.mxu0 0.0
        %3654 = vmatprep.mubr.f32.mxu0 0.0
        %3655 = vmatmul.mubr.f32.gmra.mrb[0].mxu0 %v3585
        %v3656 = vpop.f32.mrb[0].mxu0
        %v3657 = vadd.f32 0.0, %v3656
        %v3658 = vpop.f32.mrb[0].mxu0
        %3659 = vmatprep.mubr.f32.mxu0 0.0
        %3660 = vmatmul.mubr.f32.gmra.mrb[0].mxu0 %v3588
        %v3661 = vpop.f32.mrb[0].mxu0
        %v3662 = vadd.f32 0.0, %v3661
        %v3663 = vpop.f32.mrb[0].mxu0
        %3664 = vdwg.mxu0
        %s3665 = scalar_lea.vmem %s7, 96
        %v3666 = vld [vmem:[%s3665] sm:$0xff]
        %v3667 = vld [vmem:[%s3665 + $0x8] sm:$0xff]
        %v3668 = vld [vmem:[%s3665 + $0x10] sm:$0xff]
        %v3669 = vld [vmem:[%s3665 + $0x18] sm:$0xff]
        %v3671 = vsel %vm919, %v3657, 0
        %v3674 = vsel %vm919, %v3662, 0
        %3676 = vmatprep.subr.mxu0 0.0
        %3677 = vmatpush1.msra.mxu0 %v3666
        %3678 = vmatprep.subr.mxu0 0.0
        %3679 = vmatpush1.msra.mxu0 %v3667
        %3680 = vmatprep.subr.mxu0 0.0
        %3681 = vmatpush1.msra.mxu0 %v3668
        %3682 = vmatprep.subr.mxu0 0.0
        %3683 = vmatpush1.msra.mxu0 %v3669
        %3684 = vmatprep.subr.mxu0 0.0
        %3685 = vmatpush1.msra.mxu0 0.0
        %3686 = vmatprep.subr.mxu0 0.0
        %3687 = vmatpush1.msra.mxu0 0.0
        %3688 = vmatprep.subr.mxu0 0.0
        %3689 = vmatpush1.msra.mxu0 0.0
        %3690 = vmatprep.subr.mxu0 0.0
        %3691 = vmatpush1.msra.mxu0 0.0
        %3692 = vmatprep.subr.mxu0 0.0
        %3693 = vmatpush1.msra.mxu0 0.0
        %3694 = vmatprep.subr.mxu0 0.0
        %3695 = vmatpush1.msra.mxu0 0.0
        %3696 = vmatprep.subr.mxu0 0.0
        %3697 = vmatpush1.msra.mxu0 0.0
        %3698 = vmatprep.subr.mxu0 0.0
        %3699 = vmatpush1.msra.mxu0 0.0
        %3700 = vmatprep.subr.mxu0 0.0
        %3701 = vmatpush1.msra.mxu0 0.0
        %3702 = vmatprep.subr.mxu0 0.0
        %3703 = vmatpush1.msra.mxu0 0.0
        %3704 = vmatprep.subr.mxu0 0.0
        %3705 = vmatpush1.msra.mxu0 0.0
        %3706 = vmatprep.subr.mxu0 0.0
        %3707 = vmatpush1.msra.mxu0 0.0
        %3708 = vmatprep.subr.mxu0 0.0
        %3709 = vmatpush1.msra.mxu0 0.0
        %3710 = vmatprep.subr.mxu0 0.0
        %3711 = vmatpush1.msra.mxu0 0.0
        %3712 = vmatprep.subr.mxu0 0.0
        %3713 = vmatpush1.msra.mxu0 0.0
        %3714 = vmatprep.subr.mxu0 0.0
        %3715 = vmatpush1.msra.mxu0 0.0
        %3716 = vmatprep.subr.mxu0 0.0
        %3717 = vmatpush1.msra.mxu0 0.0
        %3718 = vmatprep.subr.mxu0 0.0
        %3719 = vmatpush1.msra.mxu0 0.0
        %3720 = vmatprep.subr.mxu0 0.0
        %3721 = vmatpush1.msra.mxu0 0.0
        %3722 = vmatprep.subr.mxu0 0.0
        %3723 = vmatpush1.msra.mxu0 0.0
        %3724 = vmatprep.subr.mxu0 0.0
        %3725 = vmatpush1.msra.mxu0 0.0
        %3726 = vmatprep.subr.mxu0 0.0
        %3727 = vmatpush1.msra.mxu0 0.0
        %3728 = vmatprep.subr.mxu0 0.0
        %3729 = vmatpush1.msra.mxu0 0.0
        %3730 = vmatprep.subr.mxu0 0.0
        %3731 = vmatpush1.msra.mxu0 0.0
        %3732 = vmatprep.subr.mxu0 0.0
        %3733 = vmatpush1.msra.mxu0 0.0
        %3734 = vmatprep.subr.mxu0 0.0
        %3735 = vmatpush1.msra.mxu0 0.0
        %3736 = vmatprep.subr.mxu0 0.0
        %3737 = vmatpush1.msra.mxu0 0.0
        %3738 = vmatprep.subr.mxu0 0.0
        %3739 = vmatpush1.msra.mxu0 0.0
        %3740 = vmatprep.mubr.f32.mxu0 0.0
        %3741 = vmatmul.mubr.f32.gmra.mrb[0].mxu0 %v3671
        %v3742 = vpop.f32.mrb[0].mxu0
        %v3743 = vadd.f32 0.0, %v3742
        %v3744 = vpop.f32.mrb[0].mxu0
        %3745 = vmatprep.mubr.f32.mxu0 0.0
        %3746 = vmatmul.mubr.f32.gmra.mrb[0].mxu0 %v3674
        %v3747 = vpop.f32.mrb[0].mxu0
        %v3748 = vadd.f32 0.0, %v3747
        %v3749 = vpop.f32.mrb[0].mxu0
        %3750 = vdwg.mxu0
        %v3751 = vadd.f32 %v3579, %v3743
        %v3752 = vadd.f32 %v3580, %v3748
        %s3753 = scalar_lea.vmem %s6, 64
        %v3754 = vld [vmem:[%s3753] sm:$0xff]
        %v3755 = vld [vmem:[%s3753 + $0x8] sm:$0xff]
        %v3757 = vsel %vm3068, %v3754, 0
        %v3760 = vsel %vm3068, %v3755, 0
        %3762 = vmatprep.subr.mxu0 0.0
        %3763 = vmatpush1.msra.mxu0 %v3059
        %3764 = vmatprep.subr.mxu0 0.0
        %3765 = vmatpush1.msra.mxu0 %v3060
        %3766 = vmatprep.subr.mxu0 0.0
        %3767 = vmatpush1.msra.mxu0 %v3061
        %3768 = vmatprep.subr.mxu0 0.0
        %3769 = vmatpush1.msra.mxu0 %v3062
        %3770 = vmatprep.subr.mxu0 0.0
        %3771 = vmatpush1.msra.mxu0 %v3063
        %3772 = vmatprep.subr.mxu0 0.0
        %3773 = vmatpush1.msra.mxu0 %v3064
        %3774 = vmatprep.subr.mxu0 0.0
        %3775 = vmatpush1.msra.mxu0 %v3077
        %3776 = vmatprep.subr.mxu0 0.0
        %3777 = vmatpush1.msra.mxu0 0.0
        %3778 = vmatprep.subr.mxu0 0.0
        %3779 = vmatpush1.msra.mxu0 0.0
        %3780 = vmatprep.subr.mxu0 0.0
        %3781 = vmatpush1.msra.mxu0 0.0
        %3782 = vmatprep.subr.mxu0 0.0
        %3783 = vmatpush1.msra.mxu0 0.0
        %3784 = vmatprep.subr.mxu0 0.0
        %3785 = vmatpush1.msra.mxu0 0.0
        %3786 = vmatprep.subr.mxu0 0.0
        %3787 = vmatpush1.msra.mxu0 0.0
        %3788 = vmatprep.subr.mxu0 0.0
        %3789 = vmatpush1.msra.mxu0 0.0
        %3790 = vmatprep.subr.mxu0 0.0
        %3791 = vmatpush1.msra.mxu0 0.0
        %3792 = vmatprep.subr.mxu0 0.0
        %3793 = vmatpush1.msra.mxu0 0.0
        %3794 = vmatprep.subr.mxu0 0.0
        %3795 = vmatpush1.msra.mxu0 0.0
        %3796 = vmatprep.subr.mxu0 0.0
        %3797 = vmatpush1.msra.mxu0 0.0
        %3798 = vmatprep.subr.mxu0 0.0
        %3799 = vmatpush1.msra.mxu0 0.0
        %3800 = vmatprep.subr.mxu0 0.0
        %3801 = vmatpush1.msra.mxu0 0.0
        %3802 = vmatprep.subr.mxu0 0.0
        %3803 = vmatpush1.msra.mxu0 0.0
        %3804 = vmatprep.subr.mxu0 0.0
        %3805 = vmatpush1.msra.mxu0 0.0
        %3806 = vmatprep.subr.mxu0 0.0
        %3807 = vmatpush1.msra.mxu0 0.0
        %3808 = vmatprep.subr.mxu0 0.0
        %3809 = vmatpush1.msra.mxu0 0.0
        %3810 = vmatprep.subr.mxu0 0.0
        %3811 = vmatpush1.msra.mxu0 0.0
        %3812 = vmatprep.subr.mxu0 0.0
        %3813 = vmatpush1.msra.mxu0 0.0
        %3814 = vmatprep.subr.mxu0 0.0
        %3815 = vmatpush1.msra.mxu0 0.0
        %3816 = vmatprep.subr.mxu0 0.0
        %3817 = vmatpush1.msra.mxu0 0.0
        %3818 = vmatprep.subr.mxu0 0.0
        %3819 = vmatpush1.msra.mxu0 0.0
        %3820 = vmatprep.subr.mxu0 0.0
        %3821 = vmatpush1.msra.mxu0 0.0
        %3822 = vmatprep.subr.mxu0 0.0
        %3823 = vmatpush1.msra.mxu0 0.0
        %3824 = vmatprep.subr.mxu0 0.0
        %3825 = vmatpush1.msra.mxu0 0.0
        %3826 = vmatprep.mubr.f32.mxu0 0.0
        %3827 = vmatmul.mubr.f32.gmra.mrb[0].mxu0 %v3757
        %v3828 = vpop.f32.mrb[0].mxu0
        %v3829 = vadd.f32 0.0, %v3828
        %v3830 = vpop.f32.mrb[0].mxu0
        %3831 = vmatprep.mubr.f32.mxu0 0.0
        %3832 = vmatmul.mubr.f32.gmra.mrb[0].mxu0 %v3760
        %v3833 = vpop.f32.mrb[0].mxu0
        %v3834 = vadd.f32 0.0, %v3833
        %v3835 = vpop.f32.mrb[0].mxu0
        %3836 = vdwg.mxu0
        %s3837 = scalar_lea.vmem %s7, 128
        %v3838 = vld [vmem:[%s3837] sm:$0xff]
        %v3839 = vld [vmem:[%s3837 + $0x8] sm:$0xff]
        %v3840 = vld [vmem:[%s3837 + $0x10] sm:$0xff]
        %v3841 = vld [vmem:[%s3837 + $0x18] sm:$0xff]
        %v3843 = vsel %vm919, %v3829, 0
        %v3846 = vsel %vm919, %v3834, 0
        %3848 = vmatprep.subr.mxu0 0.0
        %3849 = vmatpush1.msra.mxu0 %v3838
        %3850 = vmatprep.subr.mxu0 0.0
        %3851 = vmatpush1.msra.mxu0 %v3839
        %3852 = vmatprep.subr.mxu0 0.0
        %3853 = vmatpush1.msra.mxu0 %v3840
        %3854 = vmatprep.subr.mxu0 0.0
        %3855 = vmatpush1.msra.mxu0 %v3841
        %3856 = vmatprep.subr.mxu0 0.0
        %3857 = vmatpush1.msra.mxu0 0.0
        %3858 = vmatprep.subr.mxu0 0.0
        %3859 = vmatpush1.msra.mxu0 0.0
        %3860 = vmatprep.subr.mxu0 0.0
        %3861 = vmatpush1.msra.mxu0 0.0
        %3862 = vmatprep.subr.mxu0 0.0
        %3863 = vmatpush1.msra.mxu0 0.0
        %3864 = vmatprep.subr.mxu0 0.0
        %3865 = vmatpush1.msra.mxu0 0.0
        %3866 = vmatprep.subr.mxu0 0.0
        %3867 = vmatpush1.msra.mxu0 0.0
        %3868 = vmatprep.subr.mxu0 0.0
        %3869 = vmatpush1.msra.mxu0 0.0
        %3870 = vmatprep.subr.mxu0 0.0
        %3871 = vmatpush1.msra.mxu0 0.0
        %3872 = vmatprep.subr.mxu0 0.0
        %3873 = vmatpush1.msra.mxu0 0.0
        %3874 = vmatprep.subr.mxu0 0.0
        %3875 = vmatpush1.msra.mxu0 0.0
        %3876 = vmatprep.subr.mxu0 0.0
        %3877 = vmatpush1.msra.mxu0 0.0
        %3878 = vmatprep.subr.mxu0 0.0
        %3879 = vmatpush1.msra.mxu0 0.0
        %3880 = vmatprep.subr.mxu0 0.0
        %3881 = vmatpush1.msra.mxu0 0.0
        %3882 = vmatprep.subr.mxu0 0.0
        %3883 = vmatpush1.msra.mxu0 0.0
        %3884 = vmatprep.subr.mxu0 0.0
        %3885 = vmatpush1.msra.mxu0 0.0
        %3886 = vmatprep.subr.mxu0 0.0
        %3887 = vmatpush1.msra.mxu0 0.0
        %3888 = vmatprep.subr.mxu0 0.0
        %3889 = vmatpush1.msra.mxu0 0.0
        %3890 = vmatprep.subr.mxu0 0.0
        %3891 = vmatpush1.msra.mxu0 0.0
        %3892 = vmatprep.subr.mxu0 0.0
        %3893 = vmatpush1.msra.mxu0 0.0
        %3894 = vmatprep.subr.mxu0 0.0
        %3895 = vmatpush1.msra.mxu0 0.0
        %3896 = vmatprep.subr.mxu0 0.0
        %3897 = vmatpush1.msra.mxu0 0.0
        %3898 = vmatprep.subr.mxu0 0.0
        %3899 = vmatpush1.msra.mxu0 0.0
        %3900 = vmatprep.subr.mxu0 0.0
        %3901 = vmatpush1.msra.mxu0 0.0
        %3902 = vmatprep.subr.mxu0 0.0
        %3903 = vmatpush1.msra.mxu0 0.0
        %3904 = vmatprep.subr.mxu0 0.0
        %3905 = vmatpush1.msra.mxu0 0.0
        %3906 = vmatprep.subr.mxu0 0.0
        %3907 = vmatpush1.msra.mxu0 0.0
        %3908 = vmatprep.subr.mxu0 0.0
        %3909 = vmatpush1.msra.mxu0 0.0
        %3910 = vmatprep.subr.mxu0 0.0
        %3911 = vmatpush1.msra.mxu0 0.0
        %3912 = vmatprep.mubr.f32.mxu0 0.0
        %3913 = vmatmul.mubr.f32.gmra.mrb[0].mxu0 %v3843
        %v3914 = vpop.f32.mrb[0].mxu0
        %v3915 = vadd.f32 0.0, %v3914
        %v3916 = vpop.f32.mrb[0].mxu0
        %3917 = vmatprep.mubr.f32.mxu0 0.0
        %3918 = vmatmul.mubr.f32.gmra.mrb[0].mxu0 %v3846
        %v3919 = vpop.f32.mrb[0].mxu0
        %v3920 = vadd.f32 0.0, %v3919
        %v3921 = vpop.f32.mrb[0].mxu0
        %3922 = vdwg.mxu0
        %v3923 = vadd.f32 %v3751, %v3915
        %v3924 = vadd.f32 %v3752, %v3920
        %s3925 = scalar_lea.vmem %s6, 80
        %v3926 = vld [vmem:[%s3925] sm:$0xff]
        %v3927 = vld [vmem:[%s3925 + $0x8] sm:$0xff]
        %v3929 = vsel %vm3068, %v3926, 0
        %v3932 = vsel %vm3068, %v3927, 0
        %3934 = vmatprep.subr.mxu0 0.0
        %3935 = vmatpush1.msra.mxu0 %v3059
        %3936 = vmatprep.subr.mxu0 0.0
        %3937 = vmatpush1.msra.mxu0 %v3060
        %3938 = vmatprep.subr.mxu0 0.0
        %3939 = vmatpush1.msra.mxu0 %v3061
        %3940 = vmatprep.subr.mxu0 0.0
        %3941 = vmatpush1.msra.mxu0 %v3062
        %3942 = vmatprep.subr.mxu0 0.0
        %3943 = vmatpush1.msra.mxu0 %v3063
        %3944 = vmatprep.subr.mxu0 0.0
        %3945 = vmatpush1.msra.mxu0 %v3064
        %3946 = vmatprep.subr.mxu0 0.0
        %3947 = vmatpush1.msra.mxu0 %v3077
        %3948 = vmatprep.subr.mxu0 0.0
        %3949 = vmatpush1.msra.mxu0 0.0
        %3950 = vmatprep.subr.mxu0 0.0
        %3951 = vmatpush1.msra.mxu0 0.0
        %3952 = vmatprep.subr.mxu0 0.0
        %3953 = vmatpush1.msra.mxu0 0.0
        %3954 = vmatprep.subr.mxu0 0.0
        %3955 = vmatpush1.msra.mxu0 0.0
        %3956 = vmatprep.subr.mxu0 0.0
        %3957 = vmatpush1.msra.mxu0 0.0
        %3958 = vmatprep.subr.mxu0 0.0
        %3959 = vmatpush1.msra.mxu0 0.0
        %3960 = vmatprep.subr.mxu0 0.0
        %3961 = vmatpush1.msra.mxu0 0.0
        %3962 = vmatprep.subr.mxu0 0.0
        %3963 = vmatpush1.msra.mxu0 0.0
        %3964 = vmatprep.subr.mxu0 0.0
        %3965 = vmatpush1.msra.mxu0 0.0
        %3966 = vmatprep.subr.mxu0 0.0
        %3967 = vmatpush1.msra.mxu0 0.0
        %3968 = vmatprep.subr.mxu0 0.0
        %3969 = vmatpush1.msra.mxu0 0.0
        %3970 = vmatprep.subr.mxu0 0.0
        %3971 = vmatpush1.msra.mxu0 0.0
        %3972 = vmatprep.subr.mxu0 0.0
        %3973 = vmatpush1.msra.mxu0 0.0
        %3974 = vmatprep.subr.mxu0 0.0
        %3975 = vmatpush1.msra.mxu0 0.0
        %3976 = vmatprep.subr.mxu0 0.0
        %3977 = vmatpush1.msra.mxu0 0.0
        %3978 = vmatprep.subr.mxu0 0.0
        %3979 = vmatpush1.msra.mxu0 0.0
        %3980 = vmatprep.subr.mxu0 0.0
        %3981 = vmatpush1.msra.mxu0 0.0
        %3982 = vmatprep.subr.mxu0 0.0
        %3983 = vmatpush1.msra.mxu0 0.0
        %3984 = vmatprep.subr.mxu0 0.0
        %3985 = vmatpush1.msra.mxu0 0.0
        %3986 = vmatprep.subr.mxu0 0.0
        %3987 = vmatpush1.msra.mxu0 0.0
        %3988 = vmatprep.subr.mxu0 0.0
        %3989 = vmatpush1.msra.mxu0 0.0
        %3990 = vmatprep.subr.mxu0 0.0
        %3991 = vmatpush1.msra.mxu0 0.0
        %3992 = vmatprep.subr.mxu0 0.0
        %3993 = vmatpush1.msra.mxu0 0.0
        %3994 = vmatprep.subr.mxu0 0.0
        %3995 = vmatpush1.msra.mxu0 0.0
        %3996 = vmatprep.subr.mxu0 0.0
        %3997 = vmatpush1.msra.mxu0 0.0
        %3998 = vmatprep.mubr.f32.mxu0 0.0
        %3999 = vmatmul.mubr.f32.gmra.mrb[0].mxu0 %v3929
        %v4000 = vpop.f32.mrb[0].mxu0
        %v4001 = vadd.f32 0.0, %v4000
        %v4002 = vpop.f32.mrb[0].mxu0
        %4003 = vmatprep.mubr.f32.mxu0 0.0
        %4004 = vmatmul.mubr.f32.gmra.mrb[0].mxu0 %v3932
        %v4005 = vpop.f32.mrb[0].mxu0
        %v4006 = vadd.f32 0.0, %v4005
        %v4007 = vpop.f32.mrb[0].mxu0
        %4008 = vdwg.mxu0
        %s4009 = scalar_lea.vmem %s7, 160
        %v4010 = vld [vmem:[%s4009] sm:$0xff]
        %v4011 = vld [vmem:[%s4009 + $0x8] sm:$0xff]
        %v4012 = vld [vmem:[%s4009 + $0x10] sm:$0xff]
        %v4013 = vld [vmem:[%s4009 + $0x18] sm:$0xff]
        %v4015 = vsel %vm919, %v4001, 0
        %v4018 = vsel %vm919, %v4006, 0
        %4020 = vmatprep.subr.mxu0 0.0
        %4021 = vmatpush1.msra.mxu0 %v4010
        %4022 = vmatprep.subr.mxu0 0.0
        %4023 = vmatpush1.msra.mxu0 %v4011
        %4024 = vmatprep.subr.mxu0 0.0
        %4025 = vmatpush1.msra.mxu0 %v4012
        %4026 = vmatprep.subr.mxu0 0.0
        %4027 = vmatpush1.msra.mxu0 %v4013
        %4028 = vmatprep.subr.mxu0 0.0
        %4029 = vmatpush1.msra.mxu0 0.0
        %4030 = vmatprep.subr.mxu0 0.0
        %4031 = vmatpush1.msra.mxu0 0.0
        %4032 = vmatprep.subr.mxu0 0.0
        %4033 = vmatpush1.msra.mxu0 0.0
        %4034 = vmatprep.subr.mxu0 0.0
        %4035 = vmatpush1.msra.mxu0 0.0
        %4036 = vmatprep.subr.mxu0 0.0
        %4037 = vmatpush1.msra.mxu0 0.0
        %4038 = vmatprep.subr.mxu0 0.0
        %4039 = vmatpush1.msra.mxu0 0.0
        %4040 = vmatprep.subr.mxu0 0.0
        %4041 = vmatpush1.msra.mxu0 0.0
        %4042 = vmatprep.subr.mxu0 0.0
        %4043 = vmatpush1.msra.mxu0 0.0
        %4044 = vmatprep.subr.mxu0 0.0
        %4045 = vmatpush1.msra.mxu0 0.0
        %4046 = vmatprep.subr.mxu0 0.0
        %4047 = vmatpush1.msra.mxu0 0.0
        %4048 = vmatprep.subr.mxu0 0.0
        %4049 = vmatpush1.msra.mxu0 0.0
        %4050 = vmatprep.subr.mxu0 0.0
        %4051 = vmatpush1.msra.mxu0 0.0
        %4052 = vmatprep.subr.mxu0 0.0
        %4053 = vmatpush1.msra.mxu0 0.0
        %4054 = vmatprep.subr.mxu0 0.0
        %4055 = vmatpush1.msra.mxu0 0.0
        %4056 = vmatprep.subr.mxu0 0.0
        %4057 = vmatpush1.msra.mxu0 0.0
        %4058 = vmatprep.subr.mxu0 0.0
        %4059 = vmatpush1.msra.mxu0 0.0
        %4060 = vmatprep.subr.mxu0 0.0
        %4061 = vmatpush1.msra.mxu0 0.0
        %4062 = vmatprep.subr.mxu0 0.0
        %4063 = vmatpush1.msra.mxu0 0.0
        %4064 = vmatprep.subr.mxu0 0.0
        %4065 = vmatpush1.msra.mxu0 0.0
        %4066 = vmatprep.subr.mxu0 0.0
        %4067 = vmatpush1.msra.mxu0 0.0
        %4068 = vmatprep.subr.mxu0 0.0
        %4069 = vmatpush1.msra.mxu0 0.0
        %4070 = vmatprep.subr.mxu0 0.0
        %4071 = vmatpush1.msra.mxu0 0.0
        %4072 = vmatprep.subr.mxu0 0.0
        %4073 = vmatpush1.msra.mxu0 0.0
        %4074 = vmatprep.subr.mxu0 0.0
        %4075 = vmatpush1.msra.mxu0 0.0
        %4076 = vmatprep.subr.mxu0 0.0
        %4077 = vmatpush1.msra.mxu0 0.0
        %4078 = vmatprep.subr.mxu0 0.0
        %4079 = vmatpush1.msra.mxu0 0.0
        %4080 = vmatprep.subr.mxu0 0.0
        %4081 = vmatpush1.msra.mxu0 0.0
        %4082 = vmatprep.subr.mxu0 0.0
        %4083 = vmatpush1.msra.mxu0 0.0
        %4084 = vmatprep.mubr.f32.mxu0 0.0
        %4085 = vmatmul.mubr.f32.gmra.mrb[0].mxu0 %v4015
        %v4086 = vpop.f32.mrb[0].mxu0
        %v4087 = vadd.f32 0.0, %v4086
        %v4088 = vpop.f32.mrb[0].mxu0
        %4089 = vmatprep.mubr.f32.mxu0 0.0
        %4090 = vmatmul.mubr.f32.gmra.mrb[0].mxu0 %v4018
        %v4091 = vpop.f32.mrb[0].mxu0
        %v4092 = vadd.f32 0.0, %v4091
        %v4093 = vpop.f32.mrb[0].mxu0
        %4094 = vdwg.mxu0
        %v4095 = vadd.f32 %v3923, %v4087
        %v4096 = vadd.f32 %v3924, %v4092
        %s4097 = scalar_lea.vmem %s6, 96
        %v4098 = vld [vmem:[%s4097] sm:$0xff]
        %v4099 = vld [vmem:[%s4097 + $0x8] sm:$0xff]
        %v4101 = vsel %vm3068, %v4098, 0
        %v4104 = vsel %vm3068, %v4099, 0
        %4106 = vmatprep.subr.mxu0 0.0
        %4107 = vmatpush1.msra.mxu0 %v3059
        %4108 = vmatprep.subr.mxu0 0.0
        %4109 = vmatpush1.msra.mxu0 %v3060
        %4110 = vmatprep.subr.mxu0 0.0
        %4111 = vmatpush1.msra.mxu0 %v3061
        %4112 = vmatprep.subr.mxu0 0.0
        %4113 = vmatpush1.msra.mxu0 %v3062
        %4114 = vmatprep.subr.mxu0 0.0
        %4115 = vmatpush1.msra.mxu0 %v3063
        %4116 = vmatprep.subr.mxu0 0.0
        %4117 = vmatpush1.msra.mxu0 %v3064
        %4118 = vmatprep.subr.mxu0 0.0
        %4119 = vmatpush1.msra.mxu0 %v3077
        %4120 = vmatprep.subr.mxu0 0.0
        %4121 = vmatpush1.msra.mxu0 0.0
        %4122 = vmatprep.subr.mxu0 0.0
        %4123 = vmatpush1.msra.mxu0 0.0
        %4124 = vmatprep.subr.mxu0 0.0
        %4125 = vmatpush1.msra.mxu0 0.0
        %4126 = vmatprep.subr.mxu0 0.0
        %4127 = vmatpush1.msra.mxu0 0.0
        %4128 = vmatprep.subr.mxu0 0.0
        %4129 = vmatpush1.msra.mxu0 0.0
        %4130 = vmatprep.subr.mxu0 0.0
        %4131 = vmatpush1.msra.mxu0 0.0
        %4132 = vmatprep.subr.mxu0 0.0
        %4133 = vmatpush1.msra.mxu0 0.0
        %4134 = vmatprep.subr.mxu0 0.0
        %4135 = vmatpush1.msra.mxu0 0.0
        %4136 = vmatprep.subr.mxu0 0.0
        %4137 = vmatpush1.msra.mxu0 0.0
        %4138 = vmatprep.subr.mxu0 0.0
        %4139 = vmatpush1.msra.mxu0 0.0
        %4140 = vmatprep.subr.mxu0 0.0
        %4141 = vmatpush1.msra.mxu0 0.0
        %4142 = vmatprep.subr.mxu0 0.0
        %4143 = vmatpush1.msra.mxu0 0.0
        %4144 = vmatprep.subr.mxu0 0.0
        %4145 = vmatpush1.msra.mxu0 0.0
        %4146 = vmatprep.subr.mxu0 0.0
        %4147 = vmatpush1.msra.mxu0 0.0
        %4148 = vmatprep.subr.mxu0 0.0
        %4149 = vmatpush1.msra.mxu0 0.0
        %4150 = vmatprep.subr.mxu0 0.0
        %4151 = vmatpush1.msra.mxu0 0.0
        %4152 = vmatprep.subr.mxu0 0.0
        %4153 = vmatpush1.msra.mxu0 0.0
        %4154 = vmatprep.subr.mxu0 0.0
        %4155 = vmatpush1.msra.mxu0 0.0
        %4156 = vmatprep.subr.mxu0 0.0
        %4157 = vmatpush1.msra.mxu0 0.0
        %4158 = vmatprep.subr.mxu0 0.0
        %4159 = vmatpush1.msra.mxu0 0.0
        %4160 = vmatprep.subr.mxu0 0.0
        %4161 = vmatpush1.msra.mxu0 0.0
        %4162 = vmatprep.subr.mxu0 0.0
        %4163 = vmatpush1.msra.mxu0 0.0
        %4164 = vmatprep.subr.mxu0 0.0
        %4165 = vmatpush1.msra.mxu0 0.0
        %4166 = vmatprep.subr.mxu0 0.0
        %4167 = vmatpush1.msra.mxu0 0.0
        %4168 = vmatprep.subr.mxu0 0.0
        %4169 = vmatpush1.msra.mxu0 0.0
        %4170 = vmatprep.mubr.f32.mxu0 0.0
        %4171 = vmatmul.mubr.f32.gmra.mrb[0].mxu0 %v4101
        %v4172 = vpop.f32.mrb[0].mxu0
        %v4173 = vadd.f32 0.0, %v4172
        %v4174 = vpop.f32.mrb[0].mxu0
        %4175 = vmatprep.mubr.f32.mxu0 0.0
        %4176 = vmatmul.mubr.f32.gmra.mrb[0].mxu0 %v4104
        %v4177 = vpop.f32.mrb[0].mxu0
        %v4178 = vadd.f32 0.0, %v4177
        %v4179 = vpop.f32.mrb[0].mxu0
        %4180 = vdwg.mxu0
        %s4181 = scalar_lea.vmem %s7, 192
        %v4182 = vld [vmem:[%s4181] sm:$0xff]
        %v4183 = vld [vmem:[%s4181 + $0x8] sm:$0xff]
        %v4184 = vld [vmem:[%s4181 + $0x10] sm:$0xff]
        %v4185 = vld [vmem:[%s4181 + $0x18] sm:$0xff]
        %v4187 = vsel %vm919, %v4173, 0
        %v4190 = vsel %vm919, %v4178, 0
        %4192 = vmatprep.subr.mxu0 0.0
        %4193 = vmatpush1.msra.mxu0 %v4182
        %4194 = vmatprep.subr.mxu0 0.0
        %4195 = vmatpush1.msra.mxu0 %v4183
        %4196 = vmatprep.subr.mxu0 0.0
        %4197 = vmatpush1.msra.mxu0 %v4184
        %4198 = vmatprep.subr.mxu0 0.0
        %4199 = vmatpush1.msra.mxu0 %v4185
        %4200 = vmatprep.subr.mxu0 0.0
        %4201 = vmatpush1.msra.mxu0 0.0
        %4202 = vmatprep.subr.mxu0 0.0
        %4203 = vmatpush1.msra.mxu0 0.0
        %4204 = vmatprep.subr.mxu0 0.0
        %4205 = vmatpush1.msra.mxu0 0.0
        %4206 = vmatprep.subr.mxu0 0.0
        %4207 = vmatpush1.msra.mxu0 0.0
        %4208 = vmatprep.subr.mxu0 0.0
        %4209 = vmatpush1.msra.mxu0 0.0
        %4210 = vmatprep.subr.mxu0 0.0
        %4211 = vmatpush1.msra.mxu0 0.0
        %4212 = vmatprep.subr.mxu0 0.0
        %4213 = vmatpush1.msra.mxu0 0.0
        %4214 = vmatprep.subr.mxu0 0.0
        %4215 = vmatpush1.msra.mxu0 0.0
        %4216 = vmatprep.subr.mxu0 0.0
        %4217 = vmatpush1.msra.mxu0 0.0
        %4218 = vmatprep.subr.mxu0 0.0
        %4219 = vmatpush1.msra.mxu0 0.0
        %4220 = vmatprep.subr.mxu0 0.0
        %4221 = vmatpush1.msra.mxu0 0.0
        %4222 = vmatprep.subr.mxu0 0.0
        %4223 = vmatpush1.msra.mxu0 0.0
        %4224 = vmatprep.subr.mxu0 0.0
        %4225 = vmatpush1.msra.mxu0 0.0
        %4226 = vmatprep.subr.mxu0 0.0
        %4227 = vmatpush1.msra.mxu0 0.0
        %4228 = vmatprep.subr.mxu0 0.0
        %4229 = vmatpush1.msra.mxu0 0.0
        %4230 = vmatprep.subr.mxu0 0.0
        %4231 = vmatpush1.msra.mxu0 0.0
        %4232 = vmatprep.subr.mxu0 0.0
        %4233 = vmatpush1.msra.mxu0 0.0
        %4234 = vmatprep.subr.mxu0 0.0
        %4235 = vmatpush1.msra.mxu0 0.0
        %4236 = vmatprep.subr.mxu0 0.0
        %4237 = vmatpush1.msra.mxu0 0.0
        %4238 = vmatprep.subr.mxu0 0.0
        %4239 = vmatpush1.msra.mxu0 0.0
        %4240 = vmatprep.subr.mxu0 0.0
        %4241 = vmatpush1.msra.mxu0 0.0
        %4242 = vmatprep.subr.mxu0 0.0
        %4243 = vmatpush1.msra.mxu0 0.0
        %4244 = vmatprep.subr.mxu0 0.0
        %4245 = vmatpush1.msra.mxu0 0.0
        %4246 = vmatprep.subr.mxu0 0.0
        %4247 = vmatpush1.msra.mxu0 0.0
        %4248 = vmatprep.subr.mxu0 0.0
        %4249 = vmatpush1.msra.mxu0 0.0
        %4250 = vmatprep.subr.mxu0 0.0
        %4251 = vmatpush1.msra.mxu0 0.0
        %4252 = vmatprep.subr.mxu0 0.0
        %4253 = vmatpush1.msra.mxu0 0.0
        %4254 = vmatprep.subr.mxu0 0.0
        %4255 = vmatpush1.msra.mxu0 0.0
        %4256 = vmatprep.mubr.f32.mxu0 0.0
        %4257 = vmatmul.mubr.f32.gmra.mrb[0].mxu0 %v4187
        %v4258 = vpop.f32.mrb[0].mxu0
        %v4259 = vadd.f32 0.0, %v4258
        %v4260 = vpop.f32.mrb[0].mxu0
        %4261 = vmatprep.mubr.f32.mxu0 0.0
        %4262 = vmatmul.mubr.f32.gmra.mrb[0].mxu0 %v4190
        %v4263 = vpop.f32.mrb[0].mxu0
        %v4264 = vadd.f32 0.0, %v4263
        %v4265 = vpop.f32.mrb[0].mxu0
        %4266 = vdwg.mxu0
        %v4267 = vadd.f32 %v4095, %v4259
        %v4268 = vadd.f32 %v4096, %v4264
        %s4269 = scalar_lea.vmem %s6, 112
        %v4270 = vld [vmem:[%s4269] sm:$0xff]
        %v4271 = vld [vmem:[%s4269 + $0x8] sm:$0xff]
        %v4273 = vsel %vm3068, %v4270, 0
        %v4276 = vsel %vm3068, %v4271, 0
        %4278 = vmatprep.subr.mxu0 0.0
        %4279 = vmatpush1.msra.mxu0 %v3059
        %4280 = vmatprep.subr.mxu0 0.0
        %4281 = vmatpush1.msra.mxu0 %v3060
        %4282 = vmatprep.subr.mxu0 0.0
        %4283 = vmatpush1.msra.mxu0 %v3061
        %4284 = vmatprep.subr.mxu0 0.0
        %4285 = vmatpush1.msra.mxu0 %v3062
        %4286 = vmatprep.subr.mxu0 0.0
        %4287 = vmatpush1.msra.mxu0 %v3063
        %4288 = vmatprep.subr.mxu0 0.0
        %4289 = vmatpush1.msra.mxu0 %v3064
        %4290 = vmatprep.subr.mxu0 0.0
        %4291 = vmatpush1.msra.mxu0 %v3077
        %4292 = vmatprep.subr.mxu0 0.0
        %4293 = vmatpush1.msra.mxu0 0.0
        %4294 = vmatprep.subr.mxu0 0.0
        %4295 = vmatpush1.msra.mxu0 0.0
        %4296 = vmatprep.subr.mxu0 0.0
        %4297 = vmatpush1.msra.mxu0 0.0
        %4298 = vmatprep.subr.mxu0 0.0
        %4299 = vmatpush1.msra.mxu0 0.0
        %4300 = vmatprep.subr.mxu0 0.0
        %4301 = vmatpush1.msra.mxu0 0.0
        %4302 = vmatprep.subr.mxu0 0.0
        %4303 = vmatpush1.msra.mxu0 0.0
        %4304 = vmatprep.subr.mxu0 0.0
        %4305 = vmatpush1.msra.mxu0 0.0
        %4306 = vmatprep.subr.mxu0 0.0
        %4307 = vmatpush1.msra.mxu0 0.0
        %4308 = vmatprep.subr.mxu0 0.0
        %4309 = vmatpush1.msra.mxu0 0.0
        %4310 = vmatprep.subr.mxu0 0.0
        %4311 = vmatpush1.msra.mxu0 0.0
        %4312 = vmatprep.subr.mxu0 0.0
        %4313 = vmatpush1.msra.mxu0 0.0
        %4314 = vmatprep.subr.mxu0 0.0
        %4315 = vmatpush1.msra.mxu0 0.0
        %4316 = vmatprep.subr.mxu0 0.0
        %4317 = vmatpush1.msra.mxu0 0.0
        %4318 = vmatprep.subr.mxu0 0.0
        %4319 = vmatpush1.msra.mxu0 0.0
        %4320 = vmatprep.subr.mxu0 0.0
        %4321 = vmatpush1.msra.mxu0 0.0
        %4322 = vmatprep.subr.mxu0 0.0
        %4323 = vmatpush1.msra.mxu0 0.0
        %4324 = vmatprep.subr.mxu0 0.0
        %4325 = vmatpush1.msra.mxu0 0.0
        %4326 = vmatprep.subr.mxu0 0.0
        %4327 = vmatpush1.msra.mxu0 0.0
        %4328 = vmatprep.subr.mxu0 0.0
        %4329 = vmatpush1.msra.mxu0 0.0
        %4330 = vmatprep.subr.mxu0 0.0
        %4331 = vmatpush1.msra.mxu0 0.0
        %4332 = vmatprep.subr.mxu0 0.0
        %4333 = vmatpush1.msra.mxu0 0.0
        %4334 = vmatprep.subr.mxu0 0.0
        %4335 = vmatpush1.msra.mxu0 0.0
        %4336 = vmatprep.subr.mxu0 0.0
        %4337 = vmatpush1.msra.mxu0 0.0
        %4338 = vmatprep.subr.mxu0 0.0
        %4339 = vmatpush1.msra.mxu0 0.0
        %4340 = vmatprep.subr.mxu0 0.0
        %4341 = vmatpush1.msra.mxu0 0.0
        %4342 = vmatprep.mubr.f32.mxu0 0.0
        %4343 = vmatmul.mubr.f32.gmra.mrb[0].mxu0 %v4273
        %v4344 = vpop.f32.mrb[0].mxu0
        %v4345 = vadd.f32 0.0, %v4344
        %v4346 = vpop.f32.mrb[0].mxu0
        %4347 = vmatprep.mubr.f32.mxu0 0.0
        %4348 = vmatmul.mubr.f32.gmra.mrb[0].mxu0 %v4276
        %v4349 = vpop.f32.mrb[0].mxu0
        %v4350 = vadd.f32 0.0, %v4349
        %v4351 = vpop.f32.mrb[0].mxu0
        %4352 = vdwg.mxu0
        %s4353 = scalar_lea.vmem %s7, 224
        %v4354 = vld [vmem:[%s4353] sm:$0xff]
        %v4355 = vld [vmem:[%s4353 + $0x8] sm:$0xff]
        %v4356 = vld [vmem:[%s4353 + $0x10] sm:$0xff]
        %v4357 = vld [vmem:[%s4353 + $0x18] sm:$0xff]
        %v4359 = vsel %vm919, %v4345, 0
        %v4362 = vsel %vm919, %v4350, 0
        %4364 = vmatprep.subr.mxu0 0.0
        %4365 = vmatpush1.msra.mxu0 %v4354
        %4366 = vmatprep.subr.mxu0 0.0
        %4367 = vmatpush1.msra.mxu0 %v4355
        %4368 = vmatprep.subr.mxu0 0.0
        %4369 = vmatpush1.msra.mxu0 %v4356
        %4370 = vmatprep.subr.mxu0 0.0
        %4371 = vmatpush1.msra.mxu0 %v4357
        %4372 = vmatprep.subr.mxu0 0.0
        %4373 = vmatpush1.msra.mxu0 0.0
        %4374 = vmatprep.subr.mxu0 0.0
        %4375 = vmatpush1.msra.mxu0 0.0
        %4376 = vmatprep.subr.mxu0 0.0
        %4377 = vmatpush1.msra.mxu0 0.0
        %4378 = vmatprep.subr.mxu0 0.0
        %4379 = vmatpush1.msra.mxu0 0.0
        %4380 = vmatprep.subr.mxu0 0.0
        %4381 = vmatpush1.msra.mxu0 0.0
        %4382 = vmatprep.subr.mxu0 0.0
        %4383 = vmatpush1.msra.mxu0 0.0
        %4384 = vmatprep.subr.mxu0 0.0
        %4385 = vmatpush1.msra.mxu0 0.0
        %4386 = vmatprep.subr.mxu0 0.0
        %4387 = vmatpush1.msra.mxu0 0.0
        %4388 = vmatprep.subr.mxu0 0.0
        %4389 = vmatpush1.msra.mxu0 0.0
        %4390 = vmatprep.subr.mxu0 0.0
        %4391 = vmatpush1.msra.mxu0 0.0
        %4392 = vmatprep.subr.mxu0 0.0
        %4393 = vmatpush1.msra.mxu0 0.0
        %4394 = vmatprep.subr.mxu0 0.0
        %4395 = vmatpush1.msra.mxu0 0.0
        %4396 = vmatprep.subr.mxu0 0.0
        %4397 = vmatpush1.msra.mxu0 0.0
        %4398 = vmatprep.subr.mxu0 0.0
        %4399 = vmatpush1.msra.mxu0 0.0
        %4400 = vmatprep.subr.mxu0 0.0
        %4401 = vmatpush1.msra.mxu0 0.0
        %4402 = vmatprep.subr.mxu0 0.0
        %4403 = vmatpush1.msra.mxu0 0.0
        %4404 = vmatprep.subr.mxu0 0.0
        %4405 = vmatpush1.msra.mxu0 0.0
        %4406 = vmatprep.subr.mxu0 0.0
        %4407 = vmatpush1.msra.mxu0 0.0
        %4408 = vmatprep.subr.mxu0 0.0
        %4409 = vmatpush1.msra.mxu0 0.0
        %4410 = vmatprep.subr.mxu0 0.0
        %4411 = vmatpush1.msra.mxu0 0.0
        %4412 = vmatprep.subr.mxu0 0.0
        %4413 = vmatpush1.msra.mxu0 0.0
        %4414 = vmatprep.subr.mxu0 0.0
        %4415 = vmatpush1.msra.mxu0 0.0
        %4416 = vmatprep.subr.mxu0 0.0
        %4417 = vmatpush1.msra.mxu0 0.0
        %4418 = vmatprep.subr.mxu0 0.0
        %4419 = vmatpush1.msra.mxu0 0.0
        %4420 = vmatprep.subr.mxu0 0.0
        %4421 = vmatpush1.msra.mxu0 0.0
        %4422 = vmatprep.subr.mxu0 0.0
        %4423 = vmatpush1.msra.mxu0 0.0
        %4424 = vmatprep.subr.mxu0 0.0
        %4425 = vmatpush1.msra.mxu0 0.0
        %4426 = vmatprep.subr.mxu0 0.0
        %4427 = vmatpush1.msra.mxu0 0.0
        %4428 = vmatprep.mubr.f32.mxu0 0.0
        %4429 = vmatmul.mubr.f32.gmra.mrb[0].mxu0 %v4359
        %v4430 = vpop.f32.mrb[0].mxu0
        %v4431 = vadd.f32 0.0, %v4430
        %v4432 = vpop.f32.mrb[0].mxu0
        %4433 = vmatprep.mubr.f32.mxu0 0.0
        %4434 = vmatmul.mubr.f32.gmra.mrb[0].mxu0 %v4362
        %v4435 = vpop.f32.mrb[0].mxu0
        %v4436 = vadd.f32 0.0, %v4435
        %v4437 = vpop.f32.mrb[0].mxu0
        %4438 = vdwg.mxu0
        %v4439 = vadd.f32 %v4267, %v4431
        %v4440 = vadd.f32 %v4268, %v4436
        %s4441 = scalar_lea.vmem %s6, 128
        %v4442 = vld [vmem:[%s4441] sm:$0xff]
        %v4443 = vld [vmem:[%s4441 + $0x8] sm:$0xff]
        %v4445 = vsel %vm3068, %v4442, 0
        %v4448 = vsel %vm3068, %v4443, 0
        %4450 = vmatprep.subr.mxu0 0.0
        %4451 = vmatpush1.msra.mxu0 %v3059
        %4452 = vmatprep.subr.mxu0 0.0
        %4453 = vmatpush1.msra.mxu0 %v3060
        %4454 = vmatprep.subr.mxu0 0.0
        %4455 = vmatpush1.msra.mxu0 %v3061
        %4456 = vmatprep.subr.mxu0 0.0
        %4457 = vmatpush1.msra.mxu0 %v3062
        %4458 = vmatprep.subr.mxu0 0.0
        %4459 = vmatpush1.msra.mxu0 %v3063
        %4460 = vmatprep.subr.mxu0 0.0
        %4461 = vmatpush1.msra.mxu0 %v3064
        %4462 = vmatprep.subr.mxu0 0.0
        %4463 = vmatpush1.msra.mxu0 %v3077
        %4464 = vmatprep.subr.mxu0 0.0
        %4465 = vmatpush1.msra.mxu0 0.0
        %4466 = vmatprep.subr.mxu0 0.0
        %4467 = vmatpush1.msra.mxu0 0.0
        %4468 = vmatprep.subr.mxu0 0.0
        %4469 = vmatpush1.msra.mxu0 0.0
        %4470 = vmatprep.subr.mxu0 0.0
        %4471 = vmatpush1.msra.mxu0 0.0
        %4472 = vmatprep.subr.mxu0 0.0
        %4473 = vmatpush1.msra.mxu0 0.0
        %4474 = vmatprep.subr.mxu0 0.0
        %4475 = vmatpush1.msra.mxu0 0.0
        %4476 = vmatprep.subr.mxu0 0.0
        %4477 = vmatpush1.msra.mxu0 0.0
        %4478 = vmatprep.subr.mxu0 0.0
        %4479 = vmatpush1.msra.mxu0 0.0
        %4480 = vmatprep.subr.mxu0 0.0
        %4481 = vmatpush1.msra.mxu0 0.0
        %4482 = vmatprep.subr.mxu0 0.0
        %4483 = vmatpush1.msra.mxu0 0.0
        %4484 = vmatprep.subr.mxu0 0.0
        %4485 = vmatpush1.msra.mxu0 0.0
        %4486 = vmatprep.subr.mxu0 0.0
        %4487 = vmatpush1.msra.mxu0 0.0
        %4488 = vmatprep.subr.mxu0 0.0
        %4489 = vmatpush1.msra.mxu0 0.0
        %4490 = vmatprep.subr.mxu0 0.0
        %4491 = vmatpush1.msra.mxu0 0.0
        %4492 = vmatprep.subr.mxu0 0.0
        %4493 = vmatpush1.msra.mxu0 0.0
        %4494 = vmatprep.subr.mxu0 0.0
        %4495 = vmatpush1.msra.mxu0 0.0
        %4496 = vmatprep.subr.mxu0 0.0
        %4497 = vmatpush1.msra.mxu0 0.0
        %4498 = vmatprep.subr.mxu0 0.0
        %4499 = vmatpush1.msra.mxu0 0.0
        %4500 = vmatprep.subr.mxu0 0.0
        %4501 = vmatpush1.msra.mxu0 0.0
        %4502 = vmatprep.subr.mxu0 0.0
        %4503 = vmatpush1.msra.mxu0 0.0
        %4504 = vmatprep.subr.mxu0 0.0
        %4505 = vmatpush1.msra.mxu0 0.0
        %4506 = vmatprep.subr.mxu0 0.0
        %4507 = vmatpush1.msra.mxu0 0.0
        %4508 = vmatprep.subr.mxu0 0.0
        %4509 = vmatpush1.msra.mxu0 0.0
        %4510 = vmatprep.subr.mxu0 0.0
        %4511 = vmatpush1.msra.mxu0 0.0
        %4512 = vmatprep.subr.mxu0 0.0
        %4513 = vmatpush1.msra.mxu0 0.0
        %4514 = vmatprep.mubr.f32.mxu0 0.0
        %4515 = vmatmul.mubr.f32.gmra.mrb[0].mxu0 %v4445
        %v4516 = vpop.f32.mrb[0].mxu0
        %v4517 = vadd.f32 0.0, %v4516
        %v4518 = vpop.f32.mrb[0].mxu0
        %4519 = vmatprep.mubr.f32.mxu0 0.0
        %4520 = vmatmul.mubr.f32.gmra.mrb[0].mxu0 %v4448
        %v4521 = vpop.f32.mrb[0].mxu0
        %v4522 = vadd.f32 0.0, %v4521
        %v4523 = vpop.f32.mrb[0].mxu0
        %4524 = vdwg.mxu0
        %s4525 = scalar_lea.vmem %s7, 256
        %v4526 = vld [vmem:[%s4525] sm:$0xff]
        %v4527 = vld [vmem:[%s4525 + $0x8] sm:$0xff]
        %v4528 = vld [vmem:[%s4525 + $0x10] sm:$0xff]
        %v4529 = vld [vmem:[%s4525 + $0x18] sm:$0xff]
        %v4531 = vsel %vm919, %v4517, 0
        %v4534 = vsel %vm919, %v4522, 0
        %4536 = vmatprep.subr.mxu0 0.0
        %4537 = vmatpush1.msra.mxu0 %v4526
        %4538 = vmatprep.subr.mxu0 0.0
        %4539 = vmatpush1.msra.mxu0 %v4527
        %4540 = vmatprep.subr.mxu0 0.0
        %4541 = vmatpush1.msra.mxu0 %v4528
        %4542 = vmatprep.subr.mxu0 0.0
        %4543 = vmatpush1.msra.mxu0 %v4529
        %4544 = vmatprep.subr.mxu0 0.0
        %4545 = vmatpush1.msra.mxu0 0.0
        %4546 = vmatprep.subr.mxu0 0.0
        %4547 = vmatpush1.msra.mxu0 0.0
        %4548 = vmatprep.subr.mxu0 0.0
        %4549 = vmatpush1.msra.mxu0 0.0
        %4550 = vmatprep.subr.mxu0 0.0
        %4551 = vmatpush1.msra.mxu0 0.0
        %4552 = vmatprep.subr.mxu0 0.0
        %4553 = vmatpush1.msra.mxu0 0.0
        %4554 = vmatprep.subr.mxu0 0.0
        %4555 = vmatpush1.msra.mxu0 0.0
        %4556 = vmatprep.subr.mxu0 0.0
        %4557 = vmatpush1.msra.mxu0 0.0
        %4558 = vmatprep.subr.mxu0 0.0
        %4559 = vmatpush1.msra.mxu0 0.0
        %4560 = vmatprep.subr.mxu0 0.0
        %4561 = vmatpush1.msra.mxu0 0.0
        %4562 = vmatprep.subr.mxu0 0.0
        %4563 = vmatpush1.msra.mxu0 0.0
        %4564 = vmatprep.subr.mxu0 0.0
        %4565 = vmatpush1.msra.mxu0 0.0
        %4566 = vmatprep.subr.mxu0 0.0
        %4567 = vmatpush1.msra.mxu0 0.0
        %4568 = vmatprep.subr.mxu0 0.0
        %4569 = vmatpush1.msra.mxu0 0.0
        %4570 = vmatprep.subr.mxu0 0.0
        %4571 = vmatpush1.msra.mxu0 0.0
        %4572 = vmatprep.subr.mxu0 0.0
        %4573 = vmatpush1.msra.mxu0 0.0
        %4574 = vmatprep.subr.mxu0 0.0
        %4575 = vmatpush1.msra.mxu0 0.0
        %4576 = vmatprep.subr.mxu0 0.0
        %4577 = vmatpush1.msra.mxu0 0.0
        %4578 = vmatprep.subr.mxu0 0.0
        %4579 = vmatpush1.msra.mxu0 0.0
        %4580 = vmatprep.subr.mxu0 0.0
        %4581 = vmatpush1.msra.mxu0 0.0
        %4582 = vmatprep.subr.mxu0 0.0
        %4583 = vmatpush1.msra.mxu0 0.0
        %4584 = vmatprep.subr.mxu0 0.0
        %4585 = vmatpush1.msra.mxu0 0.0
        %4586 = vmatprep.subr.mxu0 0.0
        %4587 = vmatpush1.msra.mxu0 0.0
        %4588 = vmatprep.subr.mxu0 0.0
        %4589 = vmatpush1.msra.mxu0 0.0
        %4590 = vmatprep.subr.mxu0 0.0
        %4591 = vmatpush1.msra.mxu0 0.0
        %4592 = vmatprep.subr.mxu0 0.0
        %4593 = vmatpush1.msra.mxu0 0.0
        %4594 = vmatprep.subr.mxu0 0.0
        %4595 = vmatpush1.msra.mxu0 0.0
        %4596 = vmatprep.subr.mxu0 0.0
        %4597 = vmatpush1.msra.mxu0 0.0
        %4598 = vmatprep.subr.mxu0 0.0
        %4599 = vmatpush1.msra.mxu0 0.0
        %4600 = vmatprep.mubr.f32.mxu0 0.0
        %4601 = vmatmul.mubr.f32.gmra.mrb[0].mxu0 %v4531
        %v4602 = vpop.f32.mrb[0].mxu0
        %v4603 = vadd.f32 0.0, %v4602
        %v4604 = vpop.f32.mrb[0].mxu0
        %4605 = vmatprep.mubr.f32.mxu0 0.0
        %4606 = vmatmul.mubr.f32.gmra.mrb[0].mxu0 %v4534
        %v4607 = vpop.f32.mrb[0].mxu0
        %v4608 = vadd.f32 0.0, %v4607
        %v4609 = vpop.f32.mrb[0].mxu0
        %4610 = vdwg.mxu0
        %v4611 = vadd.f32 %v4439, %v4603
        %v4612 = vadd.f32 %v4440, %v4608
        %v4613 = vld [vmem:[%s8] sm:$0x1]
        %v4615 = vlaneseq
        %v4616 = vshrl.u32 %v4615, 7
        %v4617 = vsub.s32 0, %v4616
        %v4618 = vrot.slane %v4613, %v4617
        %v4620 = vadd.f32 %v4611, %v4618
        %v4621 = vadd.f32 %v4612, %v4618
        %v4622 = vmax.f32 %v4620, 0.0
        %v4623 = vmax.f32 %v4621, 0.0
        %v4624 = vsel %vm919, %v4622, 0.0
        %v4625 = vsel %vm919, %v4623, 0.0
        %v4626 = vadd.f32 %v4624, %v4625
        %v4627 = vrot.slane %v4626, 4
        %v4628 = vadd.f32 %v4626, %v4627
        %v4629 = vrot.slane %v4628, 2
        %v4630 = vadd.f32 %v4628, %v4629
        %v4631 = vrot.slane %v4630, 1
        %v4632 = vadd.f32 %v4630, %v4631
        %v4633 = vmul.f32 %v4632, 0.0625
        %vm4634 = vcmask 253952
        %4635 = vst.msk [vmem:[%s324] sm:$0x1] %vm4634, %v4633
        %s4636 = sand.u32 %s225, 1
        %s4637 = scalar_lea.sflag [#allocation3], %s4636
        %s4638 = sand.u32 %s225, 1
        %s4639 = scalar_lea.vmem [#allocation2], %s4638
        // Predicated region
        $region57: #{_lambda_.1} parent=55 // pred_check
          %p4640 = pneg %p235
        $region58: #{_lambda_.1} parent=55 // pred_check_branch
          %4642 = sbr.rel (%p4640) target = $region60
        $region59: #{_lambda_.1} parent=55 // pred_region
          %s4644 = ssub.s32 16, 16
          %4645 = vsyncadd %s4637, %s4644
          %s4646 = smul.addr %s23, 16
          %s4647 = scalar_lea.hbm %s9, %s4646
          %s4649 = sshll.u32 %s4639, 4
          %s4650 = int_to_ptr.vmem [resolvable:$true] %s4649
          %4652 = dma.vmem_to_hbm [thread:$0]  %s4650, 16, %s4647, %s4637
        $region60: #{_lambda_.1} parent=55 // pred_fallthru
          _
      $region56: #{_lambda_.1} parent=5 // pred_fallthru
        _
      %p4653 = scmp.le.s32.totalorder 2, %s18
      // Predicated region
      $region61: #{_lambda_.1} parent=5 // pred_check
        %p4654 = pneg %p4653
      $region62: #{_lambda_.1} parent=5 // pred_check_branch
        %4656 = sbr.rel (%p4654) target = $region64
      $region63: #{_lambda_.1} parent=5 // pred_region
        %s4657 = ssub.s32 %s18, 2
        // Predicated region
        $region65: #{_lambda_.1} parent=63 // pred_check
          %p4658 = pneg %p241
        $region66: #{_lambda_.1} parent=63 // pred_check_branch
          %4660 = sbr.rel (%p4658) target = $region68
        $region67: #{_lambda_.1} parent=63 // pred_region
          %s4661 = sand.u32 %s226, 1
          %s4662 = scalar_lea.sflag [#allocation3], %s4661
          %s4663 = sand.u32 %s226, 1
          %s4664 = scalar_lea.vmem [#allocation2], %s4663
          %4665 = dma.done %s4662, 16
        $region68: #{_lambda_.1} parent=63 // pred_fallthru
          _
      $region64: #{_lambda_.1} parent=5 // pred_fallthru
        _
    $region6: #{_lambda_.1} parent=1 // loop_footer
      %s22 = sadd.s32 1, %s18
    $region7: #{_lambda_.1} parent=1 // loop_footer_branch
      %17 = sbr.rel target = $region3
    $region8: #{_lambda_.1} parent=1 // loop_exit
      _
    %4666 = vsyncpa [#allocation3], 1
    %s4667 = scalar_lea.sflag [#allocation3], 1
    %4668 = vsyncpa %s4667, 1

</llo_original>
